<compile_context>
chip_gen: v5e
topology: v5e:2x2
jax: 0.10.0
libtpu: 0.0.40
codegen_flags: <defaults>
</compile_context>

<pallas_src>
import math
import functools

import jax
import jax.numpy as jnp
from jax import lax
from jax.experimental import pallas as pl
from jax.experimental.pallas import tpu as pltpu


# ----------------------------- small helpers -----------------------------

def _cdiv(a, b):
    return -(-a // b)


def _round_up(x, m):
    return _cdiv(x, m) * m


def _choose_angle_block(A, R):
    """Angles per grid step (ta) and padded angle count (Ap).

    Constraints: out-block lane width ta*R must be a multiple of 128 (or the full
    extent) and should be >= 256 so every MXU pass uses its full width.  If the
    128-aligned grouping would pad the angle axis by more than ~12.5%, fall back to
    a single full-extent angle block (always legal, zero padding).
    """
    step = 128 // math.gcd(R, 128)               # smallest ta with (ta*R) % 128 == 0
    ta = step * max(1, _cdiv(256, step * R))     # >= 256 lanes per MXU slab
    if ta >= A:
        return A, A
    Ap = _round_up(A, ta)
    if (Ap - A) * 8 > A:                         # too much wasted MXU work
        return A, A
    return ta, Ap


# ----------------------------- Hough bin table -----------------------------

def _rho_bin_table(H, W, num_angle, num_rho):
    """rbin[a, p] = rho bin of pixel p (= y*W + x) at angle a.  Matches initTab()."""
    irho = float(int(math.sqrt(H * H + W * W) + 1)) / float(num_rho - 1)
    itheta = math.pi / num_angle
    angles = jnp.arange(num_angle, dtype=jnp.float32) * itheta
    tab_cos = jnp.cos(angles) / irho                       # [A]
    tab_sin = jnp.sin(angles) / irho                       # [A]
    ys = jnp.arange(H, dtype=jnp.float32) - (H // 2)       # yy = y - H//2
    xs = jnp.arange(W, dtype=jnp.float32) - (W // 2)       # xx = x - W//2
    val = (xs[None, None, :] * tab_cos[:, None, None]
           + ys[None, :, None] * tab_sin[:, None, None])   # [A, H, W]
    r = jnp.sign(val) * jnp.floor(jnp.abs(val) + 0.5)      # CUDA roundf (half away from 0)
    r = r.astype(jnp.int32) + (num_rho // 2)
    r = jnp.where((r >= 0) & (r < num_rho), r, -1)         # defensively drop OOB bins
    return r.reshape(num_angle, H * W)                     # [A, H*W] int32


@functools.lru_cache(maxsize=None)
def _build_rbin_blocked(H, W, num_angle, num_rho, Kp, Ap, ta):
    """Compact bin table, padded with -1 sentinels and pre-blocked to (ga, Kp, ta)
    contiguous tiles (one dense DMA per grid step).  Built once per config."""
    rbin = _rho_bin_table(H, W, num_angle, num_rho)
    rbin = jnp.pad(rbin, ((0, Ap - num_angle), (0, Kp - H * W)), constant_values=-1)
    ga = Ap // ta
    rbin = rbin.reshape(ga, ta, Kp).transpose(0, 2, 1)     # (ga, Kp, ta) int32
    return jax.block_until_ready(rbin.astype(jnp.int32))


# ----------------------------- Pallas kernel -----------------------------

def _dht_kernel(rbin_ref, feat_ref, out_ref, *, num_rho, groups):
    """One (row-tile, angle-block, pixel-tile) grid step.

    rbin_ref : (1, tk, ta)  int32  rho bin of each pixel (sublanes) per angle (lanes)
    feat_ref : (tm, tk)     bf16   feature rows (N*C) x pixel tile
    out_ref  : (tm, ta*R)   f32    accumulator; resident across the pixel (k) axis
    groups   : static ((j0, g), ...) angle sub-groups fused per MXU dot (g*R >= 256)
    """
    @pl.when(pl.program_id(2) == 0)
    def _():
        out_ref[...] = jnp.zeros_like(out_ref)

    feat = feat_ref[...]                                   # (tm, tk) bf16
    rb = rbin_ref[0]                                       # (tk, ta) int32
    tk = feat.shape[1]
    cols = lax.broadcasted_iota(jnp.int32, (tk, num_rho), 1)

    results = []
    for j0, g in groups:                                   # static unroll
        # One-hot generated on the VPU (exact 0/1) -- no HBM stream for the Hough matrix.
        onehot = jnp.concatenate(
            [(rb[:, j:j + 1] == cols).astype(feat.dtype) for j in range(j0, j0 + g)],
            axis=1)                                        # (tk, g*R) bf16
        results.append(jnp.dot(feat, onehot, preferred_element_type=jnp.float32))
    acc = results[0] if len(results) == 1 else jnp.concatenate(results, axis=1)
    out_ref[...] += acc                                    # (tm, ta*R) f32


# ----------------------------- RT forward -----------------------------

def rt_forward(x, num_angle, num_rho):
    """RT.forward: x [N, C, H, W] -> accum [N, C, numAngle, numRho] (float32)."""
    N, C, H, W = x.shape
    M, K = N * C, H * W
    R = num_rho

    # ---- tile selection (minimal padding, generation-agnostic granules) ----
    gm = max(1, _cdiv(M, 256))
    tm = _round_up(_cdiv(M, gm), 16)          # bf16 packs 2 rows per sublane
    Mp = tm * gm

    ta, Ap = _choose_angle_block(num_angle, R)
    ga = Ap // ta

    gsub = min(ta, max(1, _cdiv(256, R)))     # angles fused per MXU dot
    gsub_w = gsub * R                         # per-dot one-hot lane width (>= 256 or full)

    tk_cap = max(256, min(2048, (4 * 1024 * 1024 // (gsub_w * 2)) // 128 * 128))
    gk = max(1, _cdiv(K, tk_cap))
    tk = _round_up(_cdiv(K, gk), 128)
    Kp = tk * gk

    # ---- cached compact bin table (the only "weight" stream) ----
    rbin = _build_rbin_blocked(H, W, num_angle, R, Kp, Ap, ta)        # (ga, Kp, ta)

    feat = x.reshape(M, K).astype(jnp.bfloat16)
    feat_p = jnp.pad(feat, ((0, Mp - M), (0, Kp - K)))                # (Mp, Kp)

    groups = tuple((j, min(gsub, ta - j)) for j in range(0, ta, gsub))
    kernel = functools.partial(_dht_kernel, num_rho=R, groups=groups)

    # ---- VMEM budget derived from actual need (safe on v7x's 64 MiB/TC) ----
    need = (2 * tm * tk * 2            # feat double buffer (bf16)
            + 2 * tk * ta * 4          # rbin double buffer (int32)
            + 2 * tm * ta * R * 4      # f32 output block (+1 buffer headroom)
            + tk * gsub_w * 2          # in-kernel one-hot staging
            + tm * gsub_w * 4)         # dot result staging
    vmem_limit = int(min(40 * 2 ** 20, max(16 * 2 ** 20, 2 * need)))

    ce = pl.CostEstimate(
        flops=2 * Mp * Kp * Ap * R,
        transcendentals=0,
        bytes_accessed=gm * ga * gk * (tm * tk * 2 + tk * ta * 4) + Mp * Ap * R * 4)

    out = pl.pallas_call(
        kernel,
        out_shape=jax.ShapeDtypeStruct((Mp, Ap * R), jnp.float32),
        grid_spec=pltpu.PrefetchScalarGridSpec(
            num_scalar_prefetch=0,
            grid=(gm, ga, gk),                              # reduction (pixel) axis last
            in_specs=[
                pl.BlockSpec((1, tk, ta), lambda i, a, k: (a, k, 0)),
                pl.BlockSpec((tm, tk), lambda i, a, k: (i, k)),
            ],
            out_specs=pl.BlockSpec((tm, ta * R), lambda i, a, k: (i, a)),
        ),
        compiler_params=pltpu.CompilerParams(
            dimension_semantics=("parallel", "parallel", "arbitrary"),
            vmem_limit_bytes=vmem_limit),
        cost_estimate=ce,
    )(rbin, feat_p)

    out = out[:M, :num_angle * R]
    return out.reshape(N, C, num_angle, R)


# ----------------------------- self-test -----------------------------

if __name__ == "__main__":
    key = jax.random.PRNGKey(0)
    N, C, H, W = 2, 4, 16, 16
    numAngle, numRho = 16, 16
    x = jax.random.normal(key, (N, C, H, W), dtype=jnp.float32)

    out = rt_forward(x, numAngle, numRho)
    out = jax.block_until_ready(out)
    assert out.shape == (N, C, numAngle, numRho)
    assert out.dtype == jnp.float32

    # Reference: explicit one-hot scatter-add on the same bf16-quantized features,
    # f32 accumulation (weights are exact 0/1, so only summation order differs).
    rbin_tab = _rho_bin_table(H, W, numAngle, numRho)                    # [A, K]
    onehot = jax.nn.one_hot(rbin_tab, numRho, dtype=jnp.float32)         # [A, K, R]
    feat_q = x.reshape(N * C, H * W).astype(jnp.bfloat16).astype(jnp.float32)
    ref = jnp.einsum("mk,akr->mar", feat_q, onehot).reshape(N, C, numAngle, numRho)
    assert jnp.allclose(out, ref, rtol=1e-4, atol=1e-4), "mismatch vs scatter-add reference"

    # Mass conservation: every pixel lands in exactly one rho bin per angle.
    plane = feat_q.reshape(N, C, H, W).sum(axis=(2, 3))
    assert jnp.allclose(out.sum(axis=(2, 3)), numAngle * plane,
                        rtol=1e-3, atol=1e-2), "mass not conserved"

    print("KERNEL_OK")
</pallas_src>

<mosaic_0001>
module attributes {stable_mosaic.version = 11 : i64} {
  func.func @_dht_kernel(%arg0: i32, %arg1: i32, %arg2: i32, %arg3: memref<1x256x16xi32, #tpu.memory_space<vmem>>, %arg4: memref<16x256xbf16, #tpu.memory_space<vmem>>, %arg5: memref<16x256xf32, #tpu.memory_space<vmem>>) attributes {dimension_semantics = [#tpu.dimension_semantics<parallel>, #tpu.dimension_semantics<parallel>, #tpu.dimension_semantics<arbitrary>], iteration_bounds = array<i64: 1, 1, 1>, scalar_prefetch = 0 : i64, scratch_operands = 0 : i64, tpu.core_type = #tpu.core_type<tc>, window_params = [{transform_indices = @transform_0, window_bounds = array<i64: 1, 256, 16>}, {transform_indices = @transform_1, window_bounds = array<i64: 16, 256>}, {transform_indices = @transform_2, window_bounds = array<i64: 16, 256>}]} {
    %c0_i32 = arith.constant 0 : i32
    %0 = arith.cmpi eq, %arg2, %c0_i32 : i32
    %1 = arith.extui %0 : i1 to i32
    %c0_i32_0 = arith.constant 0 : i32
    %2 = arith.cmpi ne, %1, %c0_i32_0 : i32
    scf.if %2 {
      %cst_9 = arith.constant 0.000000e+00 : f32
      %108 = vector.broadcast %cst_9 : f32 to vector<16x256xf32>
      %c0_10 = arith.constant 0 : index
      %c0_11 = arith.constant 0 : index
      %109 = vector.load %arg5[%c0_10, %c0_11] : memref<16x256xf32, #tpu.memory_space<vmem>>, vector<16x256xf32>
      tpu.vector_store %arg5[%c0_10, %c0_11], %108 {strides = array<i32>} : memref<16x256xf32, #tpu.memory_space<vmem>>, vector<16x256xf32>,
    } else {
    }
    %c0 = arith.constant 0 : index
    %c0_1 = arith.constant 0 : index
    %3 = vector.load %arg4[%c0, %c0_1] : memref<16x256xbf16, #tpu.memory_space<vmem>>, vector<16x256xbf16>
    %c0_2 = arith.constant 0 : index
    %c0_3 = arith.constant 0 : index
    %c0_4 = arith.constant 0 : index
    %4 = vector.load %arg3[%c0_2, %c0_3, %c0_4] : memref<1x256x16xi32, #tpu.memory_space<vmem>>, vector<1x256x16xi32>
    %5 = vector.shape_cast %4 : vector<1x256x16xi32> to vector<256x16xi32>
    %6 = tpu.iota {dimensions = array<i32: 1>} : vector<256x16xi32>
    %7 = vector.extract_strided_slice %5 {offsets = [0, 0], sizes = [256, 1], strides = [1, 1]} : vector<256x16xi32> to vector<256x1xi32>
    %8 = vector.broadcast %7 : vector<256x1xi32> to vector<256x16xi32>
    %9 = arith.cmpi eq, %8, %6 : vector<256x16xi32>
    %10 = arith.extui %9 : vector<256x16xi1> to vector<256x16xi32>
    %11 = arith.sitofp %10 : vector<256x16xi32> to vector<256x16xf32>
    %12 = arith.truncf %11 : vector<256x16xf32> to vector<256x16xbf16>
    %13 = vector.extract_strided_slice %5 {offsets = [0, 1], sizes = [256, 1], strides = [1, 1]} : vector<256x16xi32> to vector<256x1xi32>
    %14 = vector.broadcast %13 : vector<256x1xi32> to vector<256x16xi32>
    %15 = arith.cmpi eq, %14, %6 : vector<256x16xi32>
    %16 = arith.extui %15 : vector<256x16xi1> to vector<256x16xi32>
    %17 = arith.sitofp %16 : vector<256x16xi32> to vector<256x16xf32>
    %18 = arith.truncf %17 : vector<256x16xf32> to vector<256x16xbf16>
    %19 = vector.extract_strided_slice %5 {offsets = [0, 2], sizes = [256, 1], strides = [1, 1]} : vector<256x16xi32> to vector<256x1xi32>
    %20 = vector.broadcast %19 : vector<256x1xi32> to vector<256x16xi32>
    %21 = arith.cmpi eq, %20, %6 : vector<256x16xi32>
    %22 = arith.extui %21 : vector<256x16xi1> to vector<256x16xi32>
    %23 = arith.sitofp %22 : vector<256x16xi32> to vector<256x16xf32>
    %24 = arith.truncf %23 : vector<256x16xf32> to vector<256x16xbf16>
    %25 = vector.extract_strided_slice %5 {offsets = [0, 3], sizes = [256, 1], strides = [1, 1]} : vector<256x16xi32> to vector<256x1xi32>
    %26 = vector.broadcast %25 : vector<256x1xi32> to vector<256x16xi32>
    %27 = arith.cmpi eq, %26, %6 : vector<256x16xi32>
    %28 = arith.extui %27 : vector<256x16xi1> to vector<256x16xi32>
    %29 = arith.sitofp %28 : vector<256x16xi32> to vector<256x16xf32>
    %30 = arith.truncf %29 : vector<256x16xf32> to vector<256x16xbf16>
    %31 = vector.extract_strided_slice %5 {offsets = [0, 4], sizes = [256, 1], strides = [1, 1]} : vector<256x16xi32> to vector<256x1xi32>
    %32 = vector.broadcast %31 : vector<256x1xi32> to vector<256x16xi32>
    %33 = arith.cmpi eq, %32, %6 : vector<256x16xi32>
    %34 = arith.extui %33 : vector<256x16xi1> to vector<256x16xi32>
    %35 = arith.sitofp %34 : vector<256x16xi32> to vector<256x16xf32>
    %36 = arith.truncf %35 : vector<256x16xf32> to vector<256x16xbf16>
    %37 = vector.extract_strided_slice %5 {offsets = [0, 5], sizes = [256, 1], strides = [1, 1]} : vector<256x16xi32> to vector<256x1xi32>
    %38 = vector.broadcast %37 : vector<256x1xi32> to vector<256x16xi32>
    %39 = arith.cmpi eq, %38, %6 : vector<256x16xi32>
    %40 = arith.extui %39 : vector<256x16xi1> to vector<256x16xi32>
    %41 = arith.sitofp %40 : vector<256x16xi32> to vector<256x16xf32>
    %42 = arith.truncf %41 : vector<256x16xf32> to vector<256x16xbf16>
    %43 = vector.extract_strided_slice %5 {offsets = [0, 6], sizes = [256, 1], strides = [1, 1]} : vector<256x16xi32> to vector<256x1xi32>
    %44 = vector.broadcast %43 : vector<256x1xi32> to vector<256x16xi32>
    %45 = arith.cmpi eq, %44, %6 : vector<256x16xi32>
    %46 = arith.extui %45 : vector<256x16xi1> to vector<256x16xi32>
    %47 = arith.sitofp %46 : vector<256x16xi32> to vector<256x16xf32>
    %48 = arith.truncf %47 : vector<256x16xf32> to vector<256x16xbf16>
    %49 = vector.extract_strided_slice %5 {offsets = [0, 7], sizes = [256, 1], strides = [1, 1]} : vector<256x16xi32> to vector<256x1xi32>
    %50 = vector.broadcast %49 : vector<256x1xi32> to vector<256x16xi32>
    %51 = arith.cmpi eq, %50, %6 : vector<256x16xi32>
    %52 = arith.extui %51 : vector<256x16xi1> to vector<256x16xi32>
    %53 = arith.sitofp %52 : vector<256x16xi32> to vector<256x16xf32>
    %54 = arith.truncf %53 : vector<256x16xf32> to vector<256x16xbf16>
    %55 = vector.extract_strided_slice %5 {offsets = [0, 8], sizes = [256, 1], strides = [1, 1]} : vector<256x16xi32> to vector<256x1xi32>
    %56 = vector.broadcast %55 : vector<256x1xi32> to vector<256x16xi32>
    %57 = arith.cmpi eq, %56, %6 : vector<256x16xi32>
    %58 = arith.extui %57 : vector<256x16xi1> to vector<256x16xi32>
    %59 = arith.sitofp %58 : vector<256x16xi32> to vector<256x16xf32>
    %60 = arith.truncf %59 : vector<256x16xf32> to vector<256x16xbf16>
    %61 = vector.extract_strided_slice %5 {offsets = [0, 9], sizes = [256, 1], strides = [1, 1]} : vector<256x16xi32> to vector<256x1xi32>
    %62 = vector.broadcast %61 : vector<256x1xi32> to vector<256x16xi32>
    %63 = arith.cmpi eq, %62, %6 : vector<256x16xi32>
    %64 = arith.extui %63 : vector<256x16xi1> to vector<256x16xi32>
    %65 = arith.sitofp %64 : vector<256x16xi32> to vector<256x16xf32>
    %66 = arith.truncf %65 : vector<256x16xf32> to vector<256x16xbf16>
    %67 = vector.extract_strided_slice %5 {offsets = [0, 10], sizes = [256, 1], strides = [1, 1]} : vector<256x16xi32> to vector<256x1xi32>
    %68 = vector.broadcast %67 : vector<256x1xi32> to vector<256x16xi32>
    %69 = arith.cmpi eq, %68, %6 : vector<256x16xi32>
    %70 = arith.extui %69 : vector<256x16xi1> to vector<256x16xi32>
    %71 = arith.sitofp %70 : vector<256x16xi32> to vector<256x16xf32>
    %72 = arith.truncf %71 : vector<256x16xf32> to vector<256x16xbf16>
    %73 = vector.extract_strided_slice %5 {offsets = [0, 11], sizes = [256, 1], strides = [1, 1]} : vector<256x16xi32> to vector<256x1xi32>
    %74 = vector.broadcast %73 : vector<256x1xi32> to vector<256x16xi32>
    %75 = arith.cmpi eq, %74, %6 : vector<256x16xi32>
    %76 = arith.extui %75 : vector<256x16xi1> to vector<256x16xi32>
    %77 = arith.sitofp %76 : vector<256x16xi32> to vector<256x16xf32>
    %78 = arith.truncf %77 : vector<256x16xf32> to vector<256x16xbf16>
    %79 = vector.extract_strided_slice %5 {offsets = [0, 12], sizes = [256, 1], strides = [1, 1]} : vector<256x16xi32> to vector<256x1xi32>
    %80 = vector.broadcast %79 : vector<256x1xi32> to vector<256x16xi32>
    %81 = arith.cmpi eq, %80, %6 : vector<256x16xi32>
    %82 = arith.extui %81 : vector<256x16xi1> to vector<256x16xi32>
    %83 = arith.sitofp %82 : vector<256x16xi32> to vector<256x16xf32>
    %84 = arith.truncf %83 : vector<256x16xf32> to vector<256x16xbf16>
    %85 = vector.extract_strided_slice %5 {offsets = [0, 13], sizes = [256, 1], strides = [1, 1]} : vector<256x16xi32> to vector<256x1xi32>
    %86 = vector.broadcast %85 : vector<256x1xi32> to vector<256x16xi32>
    %87 = arith.cmpi eq, %86, %6 : vector<256x16xi32>
    %88 = arith.extui %87 : vector<256x16xi1> to vector<256x16xi32>
    %89 = arith.sitofp %88 : vector<256x16xi32> to vector<256x16xf32>
    %90 = arith.truncf %89 : vector<256x16xf32> to vector<256x16xbf16>
    %91 = vector.extract_strided_slice %5 {offsets = [0, 14], sizes = [256, 1], strides = [1, 1]} : vector<256x16xi32> to vector<256x1xi32>
    %92 = vector.broadcast %91 : vector<256x1xi32> to vector<256x16xi32>
    %93 = arith.cmpi eq, %92, %6 : vector<256x16xi32>
    %94 = arith.extui %93 : vector<256x16xi1> to vector<256x16xi32>
    %95 = arith.sitofp %94 : vector<256x16xi32> to vector<256x16xf32>
    %96 = arith.truncf %95 : vector<256x16xf32> to vector<256x16xbf16>
    %97 = vector.extract_strided_slice %5 {offsets = [0, 15], sizes = [256, 1], strides = [1, 1]} : vector<256x16xi32> to vector<256x1xi32>
    %98 = vector.broadcast %97 : vector<256x1xi32> to vector<256x16xi32>
    %99 = arith.cmpi eq, %98, %6 : vector<256x16xi32>
    %100 = arith.extui %99 : vector<256x16xi1> to vector<256x16xi32>
    %101 = arith.sitofp %100 : vector<256x16xi32> to vector<256x16xf32>
    %102 = arith.truncf %101 : vector<256x16xf32> to vector<256x16xbf16>
    %103 = tpu.concatenate %12, %18, %24, %30, %36, %42, %48, %54, %60, %66, %72, %78, %84, %90, %96, %102 in 1 : vector<256x16xbf16>, vector<256x16xbf16>, vector<256x16xbf16>, vector<256x16xbf16>, vector<256x16xbf16>, vector<256x16xbf16>, vector<256x16xbf16>, vector<256x16xbf16>, vector<256x16xbf16>, vector<256x16xbf16>, vector<256x16xbf16>, vector<256x16xbf16>, vector<256x16xbf16>, vector<256x16xbf16>, vector<256x16xbf16>, vector<256x16xbf16> -> vector<256x256xbf16>
    %cst = arith.constant dense<0.000000e+00> : vector<16x256xf32>
    %104 = tpu.matmul %3, %103, %cst {dimension_numbers = #tpu.dot_dimension_numbers<[1], [0], [0], [1], [0, 0, 1, 1], [], []>} : vector<16x256xbf16>, vector<256x256xbf16>, vector<16x256xf32> -> vector<16x256xf32>
    %c0_5 = arith.constant 0 : index
    %c0_6 = arith.constant 0 : index
    %105 = vector.load %arg5[%c0_5, %c0_6] : memref<16x256xf32, #tpu.memory_space<vmem>>, vector<16x256xf32>
    %106 = arith.addf %105, %104 : vector<16x256xf32>
    %c0_7 = arith.constant 0 : index
    %c0_8 = arith.constant 0 : index
    %107 = vector.load %arg5[%c0_7, %c0_8] : memref<16x256xf32, #tpu.memory_space<vmem>>, vector<16x256xf32>
    tpu.vector_store %arg5[%c0_7, %c0_8], %106 {strides = array<i32>} : memref<16x256xf32, #tpu.memory_space<vmem>>, vector<16x256xf32>,
    return
  }
  func.func @transform_0(%arg0: i32, %arg1: i32, %arg2: i32) -> (i32, i32, i32) {
    %c0_i32 = arith.constant 0 : i32
    %c0_i32_0 = arith.constant 0 : i32
    return %arg1, %arg2, %c0_i32 : i32, i32, i32
  }
  func.func @transform_1(%arg0: i32, %arg1: i32, %arg2: i32) -> (i32, i32) {
    %c0_i32 = arith.constant 0 : i32
    return %arg0, %arg2 : i32, i32
  }
  func.func @transform_2(%arg0: i32, %arg1: i32, %arg2: i32) -> (i32, i32) {
    %c0_i32 = arith.constant 0 : i32
    return %arg0, %arg1 : i32, i32
  }
}

</mosaic_0001>

<llo_original>
// kernel: tpu_custom_call.1
$region0: #{tpu_custom_call.1}
  #allocation0 [shape = 'u32[]', space=smem, size = 0x4, offset = 0x4, fixed_abs, tag = 'smem constant byte address 0x4 - core index']
  #allocation1 [shape = 'u32[72,128]{1,0:T(1,128)}', space=vmem, size = 0x9000, scoped, tag = 'internal scratch']
  %s0 = inlined_call_operand.vmem [shape: s32[1,256,16], index: 0, kind: input, shape index: {}]
  %s1 = inlined_call_operand.vmem [shape: bf16[16,256], index: 1, kind: input, shape index: {}]
  %s2 = inlined_call_operand.hbm [shape: f32[16,256], index: 2, kind: output, shape index: {}]
  %s3 = sld [smem:[#allocation0]]
  $region22: #{tpu_custom_call.1} parent=0
    _
  %s5 = ssub.s32 1, %s3
  %s6 = scalar_select 0, %s5, %s3
  $region1: #{tpu_custom_call.1} parent=0
    #allocation2 [shape = 'u8[16384]{0}', space=vmem, size = 0x4000, scoped, tag = 'output window, operand 0, single buffered']
    #allocation3 [shape = 's32[1]{0}', space=sflag, size = 0x4, scoped, tag = 'scoped memory for tpu_custom_call.1']
    %7 = vsyncpa [#allocation3], 0
    // Predicated region
    $region2: #{tpu_custom_call.1} parent=1 // pred_check
      _
    $region3: #{tpu_custom_call.1} parent=1 // pred_check_branch
      %9 = sbr.rel (0) target = $region5
    $region4: #{tpu_custom_call.1} parent=1 // pred_region
      _
    $region5: #{tpu_custom_call.1} parent=1 // pred_fallthru
      _
    // Predicated region
    $region6: #{tpu_custom_call.1} parent=1 // pred_check
      _
    $region7: #{tpu_custom_call.1} parent=1 // pred_check_branch
      %11 = sbr.rel (0) target = $region9
    $region8: #{tpu_custom_call.1} parent=1 // pred_region
      _
    $region9: #{tpu_custom_call.1} parent=1 // pred_fallthru
      _
    %p12 = scmp.eq.s32.totalorder 0, 0
    // Predicated region
    $region10: #{tpu_custom_call.1} parent=1 // pred_check
      %p13 = pneg %p12
    $region11: #{tpu_custom_call.1} parent=1 // pred_check_branch
      %15 = sbr.rel (%p13) target = $region13
    $region12: #{tpu_custom_call.1} parent=1 // pred_region
      %16 = vst [vmem:[#allocation2] sm:$0xff] 0.0
      %17 = vst [vmem:[#allocation2 + $0x8] sm:$0xff] 0.0
      %18 = vst [vmem:[#allocation2 + $0x10] sm:$0xff] 0.0
      %19 = vst [vmem:[#allocation2 + $0x18] sm:$0xff] 0.0
    $region13: #{tpu_custom_call.1} parent=1 // pred_fallthru
      _
    %v20 = vld [vmem:[%s1] sm:$0xff]
    %v21 = vld [vmem:[%s1 + $0x8] sm:$0xff]
    %v22 = vld [vmem:[%s0] sm:$0xff]
    %v23 = vld [vmem:[%s0 + $0x8] sm:$0xff]
    %v24 = vld [vmem:[%s0 + $0x10] sm:$0xff]
    %v25 = vld [vmem:[%s0 + $0x18] sm:$0xff]
    %v26 = vld [vmem:[%s0 + $0x20] sm:$0xff]
    %v27 = vld [vmem:[%s0 + $0x28] sm:$0xff]
    %v28 = vld [vmem:[%s0 + $0x30] sm:$0xff]
    %v29 = vld [vmem:[%s0 + $0x38] sm:$0xff]
    %v30 = vld [vmem:[%s0 + $0x40] sm:$0xff]
    %v31 = vld [vmem:[%s0 + $0x48] sm:$0xff]
    %v32 = vld [vmem:[%s0 + $0x50] sm:$0xff]
    %v33 = vld [vmem:[%s0 + $0x58] sm:$0xff]
    %v34 = vld [vmem:[%s0 + $0x60] sm:$0xff]
    %v35 = vld [vmem:[%s0 + $0x68] sm:$0xff]
    %v36 = vld [vmem:[%s0 + $0x70] sm:$0xff]
    %v37 = vld [vmem:[%s0 + $0x78] sm:$0xff]
    %v38 = vld [vmem:[%s0 + $0x80] sm:$0xff]
    %v39 = vld [vmem:[%s0 + $0x88] sm:$0xff]
    %v40 = vld [vmem:[%s0 + $0x90] sm:$0xff]
    %v41 = vld [vmem:[%s0 + $0x98] sm:$0xff]
    %v42 = vld [vmem:[%s0 + $0xa0] sm:$0xff]
    %v43 = vld [vmem:[%s0 + $0xa8] sm:$0xff]
    %v44 = vld [vmem:[%s0 + $0xb0] sm:$0xff]
    %v45 = vld [vmem:[%s0 + $0xb8] sm:$0xff]
    %v46 = vld [vmem:[%s0 + $0xc0] sm:$0xff]
    %v47 = vld [vmem:[%s0 + $0xc8] sm:$0xff]
    %v48 = vld [vmem:[%s0 + $0xd0] sm:$0xff]
    %v49 = vld [vmem:[%s0 + $0xd8] sm:$0xff]
    %v50 = vld [vmem:[%s0 + $0xe0] sm:$0xff]
    %v51 = vld [vmem:[%s0 + $0xe8] sm:$0xff]
    %v52 = vld [vmem:[%s0 + $0xf0] sm:$0xff]
    %v53 = vld [vmem:[%s0 + $0xf8] sm:$0xff]
    %v54 = vlaneseq
    %v55 = vand.u32 %v54, 127
    %56 = vset.pattern.permute.xlu0 0
    %57 = vperm.xlu0 %56, %v22
    %v58 = vpop.permute.xlu0 %57
    %59 = vset.pattern.permute.xlu0 0
    %60 = vperm.xlu0 %59, %v23
    %v61 = vpop.permute.xlu0 %60
    %62 = vset.pattern.permute.xlu0 0
    %63 = vperm.xlu0 %62, %v24
    %v64 = vpop.permute.xlu0 %63
    %65 = vset.pattern.permute.xlu0 0
    %66 = vperm.xlu0 %65, %v25
    %v67 = vpop.permute.xlu0 %66
    %68 = vset.pattern.permute.xlu0 0
    %69 = vperm.xlu0 %68, %v26
    %v70 = vpop.permute.xlu0 %69
    %71 = vset.pattern.permute.xlu0 0
    %72 = vperm.xlu0 %71, %v27
    %v73 = vpop.permute.xlu0 %72
    %74 = vset.pattern.permute.xlu0 0
    %75 = vperm.xlu0 %74, %v28
    %v76 = vpop.permute.xlu0 %75
    %77 = vset.pattern.permute.xlu0 0
    %78 = vperm.xlu0 %77, %v29
    %v79 = vpop.permute.xlu0 %78
    %80 = vset.pattern.permute.xlu0 0
    %81 = vperm.xlu0 %80, %v30
    %v82 = vpop.permute.xlu0 %81
    %83 = vset.pattern.permute.xlu0 0
    %84 = vperm.xlu0 %83, %v31
    %v85 = vpop.permute.xlu0 %84
    %86 = vset.pattern.permute.xlu0 0
    %87 = vperm.xlu0 %86, %v32
    %v88 = vpop.permute.xlu0 %87
    %89 = vset.pattern.permute.xlu0 0
    %90 = vperm.xlu0 %89, %v33
    %v91 = vpop.permute.xlu0 %90
    %92 = vset.pattern.permute.xlu0 0
    %93 = vperm.xlu0 %92, %v34
    %v94 = vpop.permute.xlu0 %93
    %95 = vset.pattern.permute.xlu0 0
    %96 = vperm.xlu0 %95, %v35
    %v97 = vpop.permute.xlu0 %96
    %98 = vset.pattern.permute.xlu0 0
    %99 = vperm.xlu0 %98, %v36
    %v100 = vpop.permute.xlu0 %99
    %101 = vset.pattern.permute.xlu0 0
    %102 = vperm.xlu0 %101, %v37
    %v103 = vpop.permute.xlu0 %102
    %104 = vset.pattern.permute.xlu0 0
    %105 = vperm.xlu0 %104, %v38
    %v106 = vpop.permute.xlu0 %105
    %107 = vset.pattern.permute.xlu0 0
    %108 = vperm.xlu0 %107, %v39
    %v109 = vpop.permute.xlu0 %108
    %110 = vset.pattern.permute.xlu0 0
    %111 = vperm.xlu0 %110, %v40
    %v112 = vpop.permute.xlu0 %111
    %113 = vset.pattern.permute.xlu0 0
    %114 = vperm.xlu0 %113, %v41
    %v115 = vpop.permute.xlu0 %114
    %116 = vset.pattern.permute.xlu0 0
    %117 = vperm.xlu0 %116, %v42
    %v118 = vpop.permute.xlu0 %117
    %119 = vset.pattern.permute.xlu0 0
    %120 = vperm.xlu0 %119, %v43
    %v121 = vpop.permute.xlu0 %120
    %122 = vset.pattern.permute.xlu0 0
    %123 = vperm.xlu0 %122, %v44
    %v124 = vpop.permute.xlu0 %123
    %125 = vset.pattern.permute.xlu0 0
    %126 = vperm.xlu0 %125, %v45
    %v127 = vpop.permute.xlu0 %126
    %128 = vset.pattern.permute.xlu0 0
    %129 = vperm.xlu0 %128, %v46
    %v130 = vpop.permute.xlu0 %129
    %131 = vset.pattern.permute.xlu0 0
    %132 = vperm.xlu0 %131, %v47
    %v133 = vpop.permute.xlu0 %132
    %134 = vset.pattern.permute.xlu0 0
    %135 = vperm.xlu0 %134, %v48
    %v136 = vpop.permute.xlu0 %135
    %137 = vset.pattern.permute.xlu0 0
    %138 = vperm.xlu0 %137, %v49
    %v139 = vpop.permute.xlu0 %138
    %140 = vset.pattern.permute.xlu0 0
    %141 = vperm.xlu0 %140, %v50
    %v142 = vpop.permute.xlu0 %141
    %143 = vset.pattern.permute.xlu0 0
    %144 = vperm.xlu0 %143, %v51
    %v145 = vpop.permute.xlu0 %144
    %146 = vset.pattern.permute.xlu0 0
    %147 = vperm.xlu0 %146, %v52
    %v148 = vpop.permute.xlu0 %147
    %149 = vset.pattern.permute.xlu0 0
    %150 = vperm.xlu0 %149, %v53
    %v151 = vpop.permute.xlu0 %150
    %vm152 = vcmp.eq.s32.totalorder %v58, %v55
    %vm153 = vcmp.eq.s32.totalorder %v61, %v55
    %vm154 = vcmp.eq.s32.totalorder %v64, %v55
    %vm155 = vcmp.eq.s32.totalorder %v67, %v55
    %vm156 = vcmp.eq.s32.totalorder %v70, %v55
    %vm157 = vcmp.eq.s32.totalorder %v73, %v55
    %vm158 = vcmp.eq.s32.totalorder %v76, %v55
    %vm159 = vcmp.eq.s32.totalorder %v79, %v55
    %vm160 = vcmp.eq.s32.totalorder %v82, %v55
    %vm161 = vcmp.eq.s32.totalorder %v85, %v55
    %vm162 = vcmp.eq.s32.totalorder %v88, %v55
    %vm163 = vcmp.eq.s32.totalorder %v91, %v55
    %vm164 = vcmp.eq.s32.totalorder %v94, %v55
    %vm165 = vcmp.eq.s32.totalorder %v97, %v55
    %vm166 = vcmp.eq.s32.totalorder %v100, %v55
    %vm167 = vcmp.eq.s32.totalorder %v103, %v55
    %vm168 = vcmp.eq.s32.totalorder %v106, %v55
    %vm169 = vcmp.eq.s32.totalorder %v109, %v55
    %vm170 = vcmp.eq.s32.totalorder %v112, %v55
    %vm171 = vcmp.eq.s32.totalorder %v115, %v55
    %vm172 = vcmp.eq.s32.totalorder %v118, %v55
    %vm173 = vcmp.eq.s32.totalorder %v121, %v55
    %vm174 = vcmp.eq.s32.totalorder %v124, %v55
    %vm175 = vcmp.eq.s32.totalorder %v127, %v55
    %vm176 = vcmp.eq.s32.totalorder %v130, %v55
    %vm177 = vcmp.eq.s32.totalorder %v133, %v55
    %vm178 = vcmp.eq.s32.totalorder %v136, %v55
    %vm179 = vcmp.eq.s32.totalorder %v139, %v55
    %vm180 = vcmp.eq.s32.totalorder %v142, %v55
    %vm181 = vcmp.eq.s32.totalorder %v145, %v55
    %vm182 = vcmp.eq.s32.totalorder %v148, %v55
    %vm183 = vcmp.eq.s32.totalorder %v151, %v55
    %v184 = vsel %vm152, 1, 0
    %v185 = vsel %vm153, 1, 0
    %v186 = vsel %vm154, 1, 0
    %v187 = vsel %vm155, 1, 0
    %v188 = vsel %vm156, 1, 0
    %v189 = vsel %vm157, 1, 0
    %v190 = vsel %vm158, 1, 0
    %v191 = vsel %vm159, 1, 0
    %v192 = vsel %vm160, 1, 0
    %v193 = vsel %vm161, 1, 0
    %v194 = vsel %vm162, 1, 0
    %v195 = vsel %vm163, 1, 0
    %v196 = vsel %vm164, 1, 0
    %v197 = vsel %vm165, 1, 0
    %v198 = vsel %vm166, 1, 0
    %v199 = vsel %vm167, 1, 0
    %v200 = vsel %vm168, 1, 0
    %v201 = vsel %vm169, 1, 0
    %v202 = vsel %vm170, 1, 0
    %v203 = vsel %vm171, 1, 0
    %v204 = vsel %vm172, 1, 0
    %v205 = vsel %vm173, 1, 0
    %v206 = vsel %vm174, 1, 0
    %v207 = vsel %vm175, 1, 0
    %v208 = vsel %vm176, 1, 0
    %v209 = vsel %vm177, 1, 0
    %v210 = vsel %vm178, 1, 0
    %v211 = vsel %vm179, 1, 0
    %v212 = vsel %vm180, 1, 0
    %v213 = vsel %vm181, 1, 0
    %v214 = vsel %vm182, 1, 0
    %v215 = vsel %vm183, 1, 0
    %v216 = vcvt.s32.f32 %v184
    %v217 = vcvt.s32.f32 %v185
    %v218 = vcvt.s32.f32 %v186
    %v219 = vcvt.s32.f32 %v187
    %v220 = vcvt.s32.f32 %v188
    %v221 = vcvt.s32.f32 %v189
    %v222 = vcvt.s32.f32 %v190
    %v223 = vcvt.s32.f32 %v191
    %v224 = vcvt.s32.f32 %v192
    %v225 = vcvt.s32.f32 %v193
    %v226 = vcvt.s32.f32 %v194
    %v227 = vcvt.s32.f32 %v195
    %v228 = vcvt.s32.f32 %v196
    %v229 = vcvt.s32.f32 %v197
    %v230 = vcvt.s32.f32 %v198
    %v231 = vcvt.s32.f32 %v199
    %v232 = vcvt.s32.f32 %v200
    %v233 = vcvt.s32.f32 %v201
    %v234 = vcvt.s32.f32 %v202
    %v235 = vcvt.s32.f32 %v203
    %v236 = vcvt.s32.f32 %v204
    %v237 = vcvt.s32.f32 %v205
    %v238 = vcvt.s32.f32 %v206
    %v239 = vcvt.s32.f32 %v207
    %v240 = vcvt.s32.f32 %v208
    %v241 = vcvt.s32.f32 %v209
    %v242 = vcvt.s32.f32 %v210
    %v243 = vcvt.s32.f32 %v211
    %v244 = vcvt.s32.f32 %v212
    %v245 = vcvt.s32.f32 %v213
    %v246 = vcvt.s32.f32 %v214
    %v247 = vcvt.s32.f32 %v215
    %v248 = vpack.c.bf16 %v216, %v216
    %v249 = vpack.c.bf16 %v217, %v217
    %v250 = vpack.c.bf16 %v218, %v218
    %v251 = vpack.c.bf16 %v219, %v219
    %v252 = vpack.c.bf16 %v220, %v220
    %v253 = vpack.c.bf16 %v221, %v221
    %v254 = vpack.c.bf16 %v222, %v222
    %v255 = vpack.c.bf16 %v223, %v223
    %v256 = vpack.c.bf16 %v224, %v224
    %v257 = vpack.c.bf16 %v225, %v225
    %v258 = vpack.c.bf16 %v226, %v226
    %v259 = vpack.c.bf16 %v227, %v227
    %v260 = vpack.c.bf16 %v228, %v228
    %v261 = vpack.c.bf16 %v229, %v229
    %v262 = vpack.c.bf16 %v230, %v230
    %v263 = vpack.c.bf16 %v231, %v231
    %v264 = vpack.c.bf16 %v232, %v232
    %v265 = vpack.c.bf16 %v233, %v233
    %v266 = vpack.c.bf16 %v234, %v234
    %v267 = vpack.c.bf16 %v235, %v235
    %v268 = vpack.c.bf16 %v236, %v236
    %v269 = vpack.c.bf16 %v237, %v237
    %v270 = vpack.c.bf16 %v238, %v238
    %v271 = vpack.c.bf16 %v239, %v239
    %v272 = vpack.c.bf16 %v240, %v240
    %v273 = vpack.c.bf16 %v241, %v241
    %v274 = vpack.c.bf16 %v242, %v242
    %v275 = vpack.c.bf16 %v243, %v243
    %v276 = vpack.c.bf16 %v244, %v244
    %v277 = vpack.c.bf16 %v245, %v245
    %v278 = vpack.c.bf16 %v246, %v246
    %v279 = vpack.c.bf16 %v247, %v247
    %280 = vset.pattern.permute.xlu0 1
    %281 = vperm.xlu0 %280, %v22
    %v282 = vpop.permute.xlu0 %281
    %283 = vset.pattern.permute.xlu0 1
    %284 = vperm.xlu0 %283, %v23
    %v285 = vpop.permute.xlu0 %284
    %286 = vset.pattern.permute.xlu0 1
    %287 = vperm.xlu0 %286, %v24
    %v288 = vpop.permute.xlu0 %287
    %289 = vset.pattern.permute.xlu0 1
    %290 = vperm.xlu0 %289, %v25
    %v291 = vpop.permute.xlu0 %290
    %292 = vset.pattern.permute.xlu0 1
    %293 = vperm.xlu0 %292, %v26
    %v294 = vpop.permute.xlu0 %293
    %295 = vset.pattern.permute.xlu0 1
    %296 = vperm.xlu0 %295, %v27
    %v297 = vpop.permute.xlu0 %296
    %298 = vset.pattern.permute.xlu0 1
    %299 = vperm.xlu0 %298, %v28
    %v300 = vpop.permute.xlu0 %299
    %301 = vset.pattern.permute.xlu0 1
    %302 = vperm.xlu0 %301, %v29
    %v303 = vpop.permute.xlu0 %302
    %304 = vset.pattern.permute.xlu0 1
    %305 = vperm.xlu0 %304, %v30
    %v306 = vpop.permute.xlu0 %305
    %307 = vset.pattern.permute.xlu0 1
    %308 = vperm.xlu0 %307, %v31
    %v309 = vpop.permute.xlu0 %308
    %310 = vset.pattern.permute.xlu0 1
    %311 = vperm.xlu0 %310, %v32
    %v312 = vpop.permute.xlu0 %311
    %313 = vset.pattern.permute.xlu0 1
    %314 = vperm.xlu0 %313, %v33
    %v315 = vpop.permute.xlu0 %314
    %316 = vset.pattern.permute.xlu0 1
    %317 = vperm.xlu0 %316, %v34
    %v318 = vpop.permute.xlu0 %317
    %319 = vset.pattern.permute.xlu0 1
    %320 = vperm.xlu0 %319, %v35
    %v321 = vpop.permute.xlu0 %320
    %322 = vset.pattern.permute.xlu0 1
    %323 = vperm.xlu0 %322, %v36
    %v324 = vpop.permute.xlu0 %323
    %325 = vset.pattern.permute.xlu0 1
    %326 = vperm.xlu0 %325, %v37
    %v327 = vpop.permute.xlu0 %326
    %328 = vset.pattern.permute.xlu0 1
    %329 = vperm.xlu0 %328, %v38
    %v330 = vpop.permute.xlu0 %329
    %331 = vset.pattern.permute.xlu0 1
    %332 = vperm.xlu0 %331, %v39
    %v333 = vpop.permute.xlu0 %332
    %334 = vset.pattern.permute.xlu0 1
    %335 = vperm.xlu0 %334, %v40
    %v336 = vpop.permute.xlu0 %335
    %337 = vset.pattern.permute.xlu0 1
    %338 = vperm.xlu0 %337, %v41
    %v339 = vpop.permute.xlu0 %338
    %340 = vset.pattern.permute.xlu0 1
    %341 = vperm.xlu0 %340, %v42
    %v342 = vpop.permute.xlu0 %341
    %343 = vset.pattern.permute.xlu0 1
    %344 = vperm.xlu0 %343, %v43
    %v345 = vpop.permute.xlu0 %344
    %346 = vset.pattern.permute.xlu0 1
    %347 = vperm.xlu0 %346, %v44
    %v348 = vpop.permute.xlu0 %347
    %349 = vset.pattern.permute.xlu0 1
    %350 = vperm.xlu0 %349, %v45
    %v351 = vpop.permute.xlu0 %350
    %352 = vset.pattern.permute.xlu0 1
    %353 = vperm.xlu0 %352, %v46
    %v354 = vpop.permute.xlu0 %353
    %355 = vset.pattern.permute.xlu0 1
    %356 = vperm.xlu0 %355, %v47
    %v357 = vpop.permute.xlu0 %356
    %358 = vset.pattern.permute.xlu0 1
    %359 = vperm.xlu0 %358, %v48
    %v360 = vpop.permute.xlu0 %359
    %361 = vset.pattern.permute.xlu0 1
    %362 = vperm.xlu0 %361, %v49
    %v363 = vpop.permute.xlu0 %362
    %364 = vset.pattern.permute.xlu0 1
    %365 = vperm.xlu0 %364, %v50
    %v366 = vpop.permute.xlu0 %365
    %367 = vset.pattern.permute.xlu0 1
    %368 = vperm.xlu0 %367, %v51
    %v369 = vpop.permute.xlu0 %368
    %370 = vset.pattern.permute.xlu0 1
    %371 = vperm.xlu0 %370, %v52
    %v372 = vpop.permute.xlu0 %371
    %373 = vset.pattern.permute.xlu0 1
    %374 = vperm.xlu0 %373, %v53
    %v375 = vpop.permute.xlu0 %374
    %vm376 = vcmp.eq.s32.totalorder %v282, %v55
    %vm377 = vcmp.eq.s32.totalorder %v285, %v55
    %vm378 = vcmp.eq.s32.totalorder %v288, %v55
    %vm379 = vcmp.eq.s32.totalorder %v291, %v55
    %vm380 = vcmp.eq.s32.totalorder %v294, %v55
    %vm381 = vcmp.eq.s32.totalorder %v297, %v55
    %vm382 = vcmp.eq.s32.totalorder %v300, %v55
    %vm383 = vcmp.eq.s32.totalorder %v303, %v55
    %vm384 = vcmp.eq.s32.totalorder %v306, %v55
    %vm385 = vcmp.eq.s32.totalorder %v309, %v55
    %vm386 = vcmp.eq.s32.totalorder %v312, %v55
    %vm387 = vcmp.eq.s32.totalorder %v315, %v55
    %vm388 = vcmp.eq.s32.totalorder %v318, %v55
    %vm389 = vcmp.eq.s32.totalorder %v321, %v55
    %vm390 = vcmp.eq.s32.totalorder %v324, %v55
    %vm391 = vcmp.eq.s32.totalorder %v327, %v55
    %vm392 = vcmp.eq.s32.totalorder %v330, %v55
    %vm393 = vcmp.eq.s32.totalorder %v333, %v55
    %vm394 = vcmp.eq.s32.totalorder %v336, %v55
    %vm395 = vcmp.eq.s32.totalorder %v339, %v55
    %vm396 = vcmp.eq.s32.totalorder %v342, %v55
    %vm397 = vcmp.eq.s32.totalorder %v345, %v55
    %vm398 = vcmp.eq.s32.totalorder %v348, %v55
    %vm399 = vcmp.eq.s32.totalorder %v351, %v55
    %vm400 = vcmp.eq.s32.totalorder %v354, %v55
    %vm401 = vcmp.eq.s32.totalorder %v357, %v55
    %vm402 = vcmp.eq.s32.totalorder %v360, %v55
    %vm403 = vcmp.eq.s32.totalorder %v363, %v55
    %vm404 = vcmp.eq.s32.totalorder %v366, %v55
    %vm405 = vcmp.eq.s32.totalorder %v369, %v55
    %vm406 = vcmp.eq.s32.totalorder %v372, %v55
    %vm407 = vcmp.eq.s32.totalorder %v375, %v55
    %v408 = vsel %vm376, 1, 0
    %v409 = vsel %vm377, 1, 0
    %v410 = vsel %vm378, 1, 0
    %v411 = vsel %vm379, 1, 0
    %v412 = vsel %vm380, 1, 0
    %v413 = vsel %vm381, 1, 0
    %v414 = vsel %vm382, 1, 0
    %v415 = vsel %vm383, 1, 0
    %v416 = vsel %vm384, 1, 0
    %v417 = vsel %vm385, 1, 0
    %v418 = vsel %vm386, 1, 0
    %v419 = vsel %vm387, 1, 0
    %v420 = vsel %vm388, 1, 0
    %v421 = vsel %vm389, 1, 0
    %v422 = vsel %vm390, 1, 0
    %v423 = vsel %vm391, 1, 0
    %v424 = vsel %vm392, 1, 0
    %v425 = vsel %vm393, 1, 0
    %v426 = vsel %vm394, 1, 0
    %v427 = vsel %vm395, 1, 0
    %v428 = vsel %vm396, 1, 0
    %v429 = vsel %vm397, 1, 0
    %v430 = vsel %vm398, 1, 0
    %v431 = vsel %vm399, 1, 0
    %v432 = vsel %vm400, 1, 0
    %v433 = vsel %vm401, 1, 0
    %v434 = vsel %vm402, 1, 0
    %v435 = vsel %vm403, 1, 0
    %v436 = vsel %vm404, 1, 0
    %v437 = vsel %vm405, 1, 0
    %v438 = vsel %vm406, 1, 0
    %v439 = vsel %vm407, 1, 0
    %v440 = vcvt.s32.f32 %v408
    %v441 = vcvt.s32.f32 %v409
    %v442 = vcvt.s32.f32 %v410
    %v443 = vcvt.s32.f32 %v411
    %v444 = vcvt.s32.f32 %v412
    %v445 = vcvt.s32.f32 %v413
    %v446 = vcvt.s32.f32 %v414
    %v447 = vcvt.s32.f32 %v415
    %v448 = vcvt.s32.f32 %v416
    %v449 = vcvt.s32.f32 %v417
    %v450 = vcvt.s32.f32 %v418
    %v451 = vcvt.s32.f32 %v419
    %v452 = vcvt.s32.f32 %v420
    %v453 = vcvt.s32.f32 %v421
    %v454 = vcvt.s32.f32 %v422
    %v455 = vcvt.s32.f32 %v423
    %v456 = vcvt.s32.f32 %v424
    %v457 = vcvt.s32.f32 %v425
    %v458 = vcvt.s32.f32 %v426
    %v459 = vcvt.s32.f32 %v427
    %v460 = vcvt.s32.f32 %v428
    %v461 = vcvt.s32.f32 %v429
    %v462 = vcvt.s32.f32 %v430
    %v463 = vcvt.s32.f32 %v431
    %v464 = vcvt.s32.f32 %v432
    %v465 = vcvt.s32.f32 %v433
    %v466 = vcvt.s32.f32 %v434
    %v467 = vcvt.s32.f32 %v435
    %v468 = vcvt.s32.f32 %v436
    %v469 = vcvt.s32.f32 %v437
    %v470 = vcvt.s32.f32 %v438
    %v471 = vcvt.s32.f32 %v439
    %v472 = vpack.c.bf16 %v440, %v440
    %v473 = vpack.c.bf16 %v441, %v441
    %v474 = vpack.c.bf16 %v442, %v442
    %v475 = vpack.c.bf16 %v443, %v443
    %v476 = vpack.c.bf16 %v444, %v444
    %v477 = vpack.c.bf16 %v445, %v445
    %v478 = vpack.c.bf16 %v446, %v446
    %v479 = vpack.c.bf16 %v447, %v447
    %v480 = vpack.c.bf16 %v448, %v448
    %v481 = vpack.c.bf16 %v449, %v449
    %v482 = vpack.c.bf16 %v450, %v450
    %v483 = vpack.c.bf16 %v451, %v451
    %v484 = vpack.c.bf16 %v452, %v452
    %v485 = vpack.c.bf16 %v453, %v453
    %v486 = vpack.c.bf16 %v454, %v454
    %v487 = vpack.c.bf16 %v455, %v455
    %v488 = vpack.c.bf16 %v456, %v456
    %v489 = vpack.c.bf16 %v457, %v457
    %v490 = vpack.c.bf16 %v458, %v458
    %v491 = vpack.c.bf16 %v459, %v459
    %v492 = vpack.c.bf16 %v460, %v460
    %v493 = vpack.c.bf16 %v461, %v461
    %v494 = vpack.c.bf16 %v462, %v462
    %v495 = vpack.c.bf16 %v463, %v463
    %v496 = vpack.c.bf16 %v464, %v464
    %v497 = vpack.c.bf16 %v465, %v465
    %v498 = vpack.c.bf16 %v466, %v466
    %v499 = vpack.c.bf16 %v467, %v467
    %v500 = vpack.c.bf16 %v468, %v468
    %v501 = vpack.c.bf16 %v469, %v469
    %v502 = vpack.c.bf16 %v470, %v470
    %v503 = vpack.c.bf16 %v471, %v471
    %504 = vset.pattern.permute.xlu0 2
    %505 = vperm.xlu0 %504, %v22
    %v506 = vpop.permute.xlu0 %505
    %507 = vset.pattern.permute.xlu0 2
    %508 = vperm.xlu0 %507, %v23
    %v509 = vpop.permute.xlu0 %508
    %510 = vset.pattern.permute.xlu0 2
    %511 = vperm.xlu0 %510, %v24
    %v512 = vpop.permute.xlu0 %511
    %513 = vset.pattern.permute.xlu0 2
    %514 = vperm.xlu0 %513, %v25
    %v515 = vpop.permute.xlu0 %514
    %516 = vset.pattern.permute.xlu0 2
    %517 = vperm.xlu0 %516, %v26
    %v518 = vpop.permute.xlu0 %517
    %519 = vset.pattern.permute.xlu0 2
    %520 = vperm.xlu0 %519, %v27
    %v521 = vpop.permute.xlu0 %520
    %522 = vset.pattern.permute.xlu0 2
    %523 = vperm.xlu0 %522, %v28
    %v524 = vpop.permute.xlu0 %523
    %525 = vset.pattern.permute.xlu0 2
    %526 = vperm.xlu0 %525, %v29
    %v527 = vpop.permute.xlu0 %526
    %528 = vset.pattern.permute.xlu0 2
    %529 = vperm.xlu0 %528, %v30
    %v530 = vpop.permute.xlu0 %529
    %531 = vset.pattern.permute.xlu0 2
    %532 = vperm.xlu0 %531, %v31
    %v533 = vpop.permute.xlu0 %532
    %534 = vset.pattern.permute.xlu0 2
    %535 = vperm.xlu0 %534, %v32
    %v536 = vpop.permute.xlu0 %535
    %537 = vset.pattern.permute.xlu0 2
    %538 = vperm.xlu0 %537, %v33
    %v539 = vpop.permute.xlu0 %538
    %540 = vset.pattern.permute.xlu0 2
    %541 = vperm.xlu0 %540, %v34
    %v542 = vpop.permute.xlu0 %541
    %543 = vset.pattern.permute.xlu0 2
    %544 = vperm.xlu0 %543, %v35
    %v545 = vpop.permute.xlu0 %544
    %546 = vset.pattern.permute.xlu0 2
    %547 = vperm.xlu0 %546, %v36
    %v548 = vpop.permute.xlu0 %547
    %549 = vset.pattern.permute.xlu0 2
    %550 = vperm.xlu0 %549, %v37
    %v551 = vpop.permute.xlu0 %550
    %552 = vset.pattern.permute.xlu0 2
    %553 = vperm.xlu0 %552, %v38
    %v554 = vpop.permute.xlu0 %553
    %555 = vset.pattern.permute.xlu0 2
    %556 = vperm.xlu0 %555, %v39
    %v557 = vpop.permute.xlu0 %556
    %558 = vset.pattern.permute.xlu0 2
    %559 = vperm.xlu0 %558, %v40
    %v560 = vpop.permute.xlu0 %559
    %561 = vset.pattern.permute.xlu0 2
    %562 = vperm.xlu0 %561, %v41
    %v563 = vpop.permute.xlu0 %562
    %564 = vset.pattern.permute.xlu0 2
    %565 = vperm.xlu0 %564, %v42
    %v566 = vpop.permute.xlu0 %565
    %567 = vset.pattern.permute.xlu0 2
    %568 = vperm.xlu0 %567, %v43
    %v569 = vpop.permute.xlu0 %568
    %570 = vset.pattern.permute.xlu0 2
    %571 = vperm.xlu0 %570, %v44
    %v572 = vpop.permute.xlu0 %571
    %573 = vset.pattern.permute.xlu0 2
    %574 = vperm.xlu0 %573, %v45
    %v575 = vpop.permute.xlu0 %574
    %576 = vset.pattern.permute.xlu0 2
    %577 = vperm.xlu0 %576, %v46
    %v578 = vpop.permute.xlu0 %577
    %579 = vset.pattern.permute.xlu0 2
    %580 = vperm.xlu0 %579, %v47
    %v581 = vpop.permute.xlu0 %580
    %582 = vset.pattern.permute.xlu0 2
    %583 = vperm.xlu0 %582, %v48
    %v584 = vpop.permute.xlu0 %583
    %585 = vset.pattern.permute.xlu0 2
    %586 = vperm.xlu0 %585, %v49
    %v587 = vpop.permute.xlu0 %586
    %588 = vset.pattern.permute.xlu0 2
    %589 = vperm.xlu0 %588, %v50
    %v590 = vpop.permute.xlu0 %589
    %591 = vset.pattern.permute.xlu0 2
    %592 = vperm.xlu0 %591, %v51
    %v593 = vpop.permute.xlu0 %592
    %594 = vset.pattern.permute.xlu0 2
    %595 = vperm.xlu0 %594, %v52
    %v596 = vpop.permute.xlu0 %595
    %597 = vset.pattern.permute.xlu0 2
    %598 = vperm.xlu0 %597, %v53
    %v599 = vpop.permute.xlu0 %598
    %vm600 = vcmp.eq.s32.totalorder %v506, %v55
    %vm601 = vcmp.eq.s32.totalorder %v509, %v55
    %vm602 = vcmp.eq.s32.totalorder %v512, %v55
    %vm603 = vcmp.eq.s32.totalorder %v515, %v55
    %vm604 = vcmp.eq.s32.totalorder %v518, %v55
    %vm605 = vcmp.eq.s32.totalorder %v521, %v55
    %vm606 = vcmp.eq.s32.totalorder %v524, %v55
    %vm607 = vcmp.eq.s32.totalorder %v527, %v55
    %vm608 = vcmp.eq.s32.totalorder %v530, %v55
    %vm609 = vcmp.eq.s32.totalorder %v533, %v55
    %vm610 = vcmp.eq.s32.totalorder %v536, %v55
    %vm611 = vcmp.eq.s32.totalorder %v539, %v55
    %vm612 = vcmp.eq.s32.totalorder %v542, %v55
    %vm613 = vcmp.eq.s32.totalorder %v545, %v55
    %vm614 = vcmp.eq.s32.totalorder %v548, %v55
    %vm615 = vcmp.eq.s32.totalorder %v551, %v55
    %vm616 = vcmp.eq.s32.totalorder %v554, %v55
    %vm617 = vcmp.eq.s32.totalorder %v557, %v55
    %vm618 = vcmp.eq.s32.totalorder %v560, %v55
    %vm619 = vcmp.eq.s32.totalorder %v563, %v55
    %vm620 = vcmp.eq.s32.totalorder %v566, %v55
    %vm621 = vcmp.eq.s32.totalorder %v569, %v55
    %vm622 = vcmp.eq.s32.totalorder %v572, %v55
    %vm623 = vcmp.eq.s32.totalorder %v575, %v55
    %vm624 = vcmp.eq.s32.totalorder %v578, %v55
    %vm625 = vcmp.eq.s32.totalorder %v581, %v55
    %vm626 = vcmp.eq.s32.totalorder %v584, %v55
    %vm627 = vcmp.eq.s32.totalorder %v587, %v55
    %vm628 = vcmp.eq.s32.totalorder %v590, %v55
    %vm629 = vcmp.eq.s32.totalorder %v593, %v55
    %vm630 = vcmp.eq.s32.totalorder %v596, %v55
    %vm631 = vcmp.eq.s32.totalorder %v599, %v55
    %v632 = vsel %vm600, 1, 0
    %v633 = vsel %vm601, 1, 0
    %v634 = vsel %vm602, 1, 0
    %v635 = vsel %vm603, 1, 0
    %v636 = vsel %vm604, 1, 0
    %v637 = vsel %vm605, 1, 0
    %v638 = vsel %vm606, 1, 0
    %v639 = vsel %vm607, 1, 0
    %v640 = vsel %vm608, 1, 0
    %v641 = vsel %vm609, 1, 0
    %v642 = vsel %vm610, 1, 0
    %v643 = vsel %vm611, 1, 0
    %v644 = vsel %vm612, 1, 0
    %v645 = vsel %vm613, 1, 0
    %v646 = vsel %vm614, 1, 0
    %v647 = vsel %vm615, 1, 0
    %v648 = vsel %vm616, 1, 0
    %v649 = vsel %vm617, 1, 0
    %v650 = vsel %vm618, 1, 0
    %v651 = vsel %vm619, 1, 0
    %v652 = vsel %vm620, 1, 0
    %v653 = vsel %vm621, 1, 0
    %v654 = vsel %vm622, 1, 0
    %v655 = vsel %vm623, 1, 0
    %v656 = vsel %vm624, 1, 0
    %v657 = vsel %vm625, 1, 0
    %v658 = vsel %vm626, 1, 0
    %v659 = vsel %vm627, 1, 0
    %v660 = vsel %vm628, 1, 0
    %v661 = vsel %vm629, 1, 0
    %v662 = vsel %vm630, 1, 0
    %v663 = vsel %vm631, 1, 0
    %v664 = vcvt.s32.f32 %v632
    %v665 = vcvt.s32.f32 %v633
    %v666 = vcvt.s32.f32 %v634
    %v667 = vcvt.s32.f32 %v635
    %v668 = vcvt.s32.f32 %v636
    %v669 = vcvt.s32.f32 %v637
    %v670 = vcvt.s32.f32 %v638
    %v671 = vcvt.s32.f32 %v639
    %v672 = vcvt.s32.f32 %v640
    %v673 = vcvt.s32.f32 %v641
    %v674 = vcvt.s32.f32 %v642
    %v675 = vcvt.s32.f32 %v643
    %v676 = vcvt.s32.f32 %v644
    %v677 = vcvt.s32.f32 %v645
    %v678 = vcvt.s32.f32 %v646
    %v679 = vcvt.s32.f32 %v647
    %v680 = vcvt.s32.f32 %v648
    %v681 = vcvt.s32.f32 %v649
    %v682 = vcvt.s32.f32 %v650
    %v683 = vcvt.s32.f32 %v651
    %v684 = vcvt.s32.f32 %v652
    %v685 = vcvt.s32.f32 %v653
    %v686 = vcvt.s32.f32 %v654
    %v687 = vcvt.s32.f32 %v655
    %v688 = vcvt.s32.f32 %v656
    %v689 = vcvt.s32.f32 %v657
    %v690 = vcvt.s32.f32 %v658
    %v691 = vcvt.s32.f32 %v659
    %v692 = vcvt.s32.f32 %v660
    %v693 = vcvt.s32.f32 %v661
    %v694 = vcvt.s32.f32 %v662
    %v695 = vcvt.s32.f32 %v663
    %v696 = vpack.c.bf16 %v664, %v664
    %v697 = vpack.c.bf16 %v665, %v665
    %v698 = vpack.c.bf16 %v666, %v666
    %v699 = vpack.c.bf16 %v667, %v667
    %v700 = vpack.c.bf16 %v668, %v668
    %v701 = vpack.c.bf16 %v669, %v669
    %v702 = vpack.c.bf16 %v670, %v670
    %v703 = vpack.c.bf16 %v671, %v671
    %v704 = vpack.c.bf16 %v672, %v672
    %v705 = vpack.c.bf16 %v673, %v673
    %v706 = vpack.c.bf16 %v674, %v674
    %v707 = vpack.c.bf16 %v675, %v675
    %v708 = vpack.c.bf16 %v676, %v676
    %v709 = vpack.c.bf16 %v677, %v677
    %v710 = vpack.c.bf16 %v678, %v678
    %v711 = vpack.c.bf16 %v679, %v679
    %v712 = vpack.c.bf16 %v680, %v680
    %v713 = vpack.c.bf16 %v681, %v681
    %v714 = vpack.c.bf16 %v682, %v682
    %v715 = vpack.c.bf16 %v683, %v683
    %v716 = vpack.c.bf16 %v684, %v684
    %v717 = vpack.c.bf16 %v685, %v685
    %v718 = vpack.c.bf16 %v686, %v686
    %v719 = vpack.c.bf16 %v687, %v687
    %v720 = vpack.c.bf16 %v688, %v688
    %v721 = vpack.c.bf16 %v689, %v689
    %v722 = vpack.c.bf16 %v690, %v690
    %v723 = vpack.c.bf16 %v691, %v691
    %v724 = vpack.c.bf16 %v692, %v692
    %v725 = vpack.c.bf16 %v693, %v693
    %v726 = vpack.c.bf16 %v694, %v694
    %v727 = vpack.c.bf16 %v695, %v695
    %728 = vset.pattern.permute.xlu0 3
    %729 = vperm.xlu0 %728, %v22
    %v730 = vpop.permute.xlu0 %729
    %731 = vset.pattern.permute.xlu0 3
    %732 = vperm.xlu0 %731, %v23
    %v733 = vpop.permute.xlu0 %732
    %734 = vset.pattern.permute.xlu0 3
    %735 = vperm.xlu0 %734, %v24
    %v736 = vpop.permute.xlu0 %735
    %737 = vset.pattern.permute.xlu0 3
    %738 = vperm.xlu0 %737, %v25
    %v739 = vpop.permute.xlu0 %738
    %740 = vset.pattern.permute.xlu0 3
    %741 = vperm.xlu0 %740, %v26
    %v742 = vpop.permute.xlu0 %741
    %743 = vset.pattern.permute.xlu0 3
    %744 = vperm.xlu0 %743, %v27
    %v745 = vpop.permute.xlu0 %744
    %746 = vset.pattern.permute.xlu0 3
    %747 = vperm.xlu0 %746, %v28
    %v748 = vpop.permute.xlu0 %747
    %749 = vset.pattern.permute.xlu0 3
    %750 = vperm.xlu0 %749, %v29
    %v751 = vpop.permute.xlu0 %750
    %752 = vset.pattern.permute.xlu0 3
    %753 = vperm.xlu0 %752, %v30
    %v754 = vpop.permute.xlu0 %753
    %755 = vset.pattern.permute.xlu0 3
    %756 = vperm.xlu0 %755, %v31
    %v757 = vpop.permute.xlu0 %756
    %758 = vset.pattern.permute.xlu0 3
    %759 = vperm.xlu0 %758, %v32
    %v760 = vpop.permute.xlu0 %759
    %761 = vset.pattern.permute.xlu0 3
    %762 = vperm.xlu0 %761, %v33
    %v763 = vpop.permute.xlu0 %762
    %764 = vset.pattern.permute.xlu0 3
    %765 = vperm.xlu0 %764, %v34
    %v766 = vpop.permute.xlu0 %765
    %767 = vset.pattern.permute.xlu0 3
    %768 = vperm.xlu0 %767, %v35
    %v769 = vpop.permute.xlu0 %768
    %770 = vset.pattern.permute.xlu0 3
    %771 = vperm.xlu0 %770, %v36
    %v772 = vpop.permute.xlu0 %771
    %773 = vset.pattern.permute.xlu0 3
    %774 = vperm.xlu0 %773, %v37
    %v775 = vpop.permute.xlu0 %774
    %776 = vset.pattern.permute.xlu0 3
    %777 = vperm.xlu0 %776, %v38
    %v778 = vpop.permute.xlu0 %777
    %779 = vset.pattern.permute.xlu0 3
    %780 = vperm.xlu0 %779, %v39
    %v781 = vpop.permute.xlu0 %780
    %782 = vset.pattern.permute.xlu0 3
    %783 = vperm.xlu0 %782, %v40
    %v784 = vpop.permute.xlu0 %783
    %785 = vset.pattern.permute.xlu0 3
    %786 = vperm.xlu0 %785, %v41
    %v787 = vpop.permute.xlu0 %786
    %788 = vset.pattern.permute.xlu0 3
    %789 = vperm.xlu0 %788, %v42
    %v790 = vpop.permute.xlu0 %789
    %791 = vset.pattern.permute.xlu0 3
    %792 = vperm.xlu0 %791, %v43
    %v793 = vpop.permute.xlu0 %792
    %794 = vset.pattern.permute.xlu0 3
    %795 = vperm.xlu0 %794, %v44
    %v796 = vpop.permute.xlu0 %795
    %797 = vset.pattern.permute.xlu0 3
    %798 = vperm.xlu0 %797, %v45
    %v799 = vpop.permute.xlu0 %798
    %800 = vset.pattern.permute.xlu0 3
    %801 = vperm.xlu0 %800, %v46
    %v802 = vpop.permute.xlu0 %801
    %803 = vset.pattern.permute.xlu0 3
    %804 = vperm.xlu0 %803, %v47
    %v805 = vpop.permute.xlu0 %804
    %806 = vset.pattern.permute.xlu0 3
    %807 = vperm.xlu0 %806, %v48
    %v808 = vpop.permute.xlu0 %807
    %809 = vset.pattern.permute.xlu0 3
    %810 = vperm.xlu0 %809, %v49
    %v811 = vpop.permute.xlu0 %810
    %812 = vset.pattern.permute.xlu0 3
    %813 = vperm.xlu0 %812, %v50
    %v814 = vpop.permute.xlu0 %813
    %815 = vset.pattern.permute.xlu0 3
    %816 = vperm.xlu0 %815, %v51
    %v817 = vpop.permute.xlu0 %816
    %818 = vset.pattern.permute.xlu0 3
    %819 = vperm.xlu0 %818, %v52
    %v820 = vpop.permute.xlu0 %819
    %821 = vset.pattern.permute.xlu0 3
    %822 = vperm.xlu0 %821, %v53
    %v823 = vpop.permute.xlu0 %822
    %vm824 = vcmp.eq.s32.totalorder %v730, %v55
    %vm825 = vcmp.eq.s32.totalorder %v733, %v55
    %vm826 = vcmp.eq.s32.totalorder %v736, %v55
    %vm827 = vcmp.eq.s32.totalorder %v739, %v55
    %vm828 = vcmp.eq.s32.totalorder %v742, %v55
    %vm829 = vcmp.eq.s32.totalorder %v745, %v55
    %vm830 = vcmp.eq.s32.totalorder %v748, %v55
    %vm831 = vcmp.eq.s32.totalorder %v751, %v55
    %vm832 = vcmp.eq.s32.totalorder %v754, %v55
    %vm833 = vcmp.eq.s32.totalorder %v757, %v55
    %vm834 = vcmp.eq.s32.totalorder %v760, %v55
    %vm835 = vcmp.eq.s32.totalorder %v763, %v55
    %vm836 = vcmp.eq.s32.totalorder %v766, %v55
    %vm837 = vcmp.eq.s32.totalorder %v769, %v55
    %vm838 = vcmp.eq.s32.totalorder %v772, %v55
    %vm839 = vcmp.eq.s32.totalorder %v775, %v55
    %vm840 = vcmp.eq.s32.totalorder %v778, %v55
    %vm841 = vcmp.eq.s32.totalorder %v781, %v55
    %vm842 = vcmp.eq.s32.totalorder %v784, %v55
    %vm843 = vcmp.eq.s32.totalorder %v787, %v55
    %vm844 = vcmp.eq.s32.totalorder %v790, %v55
    %vm845 = vcmp.eq.s32.totalorder %v793, %v55
    %vm846 = vcmp.eq.s32.totalorder %v796, %v55
    %vm847 = vcmp.eq.s32.totalorder %v799, %v55
    %vm848 = vcmp.eq.s32.totalorder %v802, %v55
    %vm849 = vcmp.eq.s32.totalorder %v805, %v55
    %vm850 = vcmp.eq.s32.totalorder %v808, %v55
    %vm851 = vcmp.eq.s32.totalorder %v811, %v55
    %vm852 = vcmp.eq.s32.totalorder %v814, %v55
    %vm853 = vcmp.eq.s32.totalorder %v817, %v55
    %vm854 = vcmp.eq.s32.totalorder %v820, %v55
    %vm855 = vcmp.eq.s32.totalorder %v823, %v55
    %v856 = vsel %vm824, 1, 0
    %v857 = vsel %vm825, 1, 0
    %v858 = vsel %vm826, 1, 0
    %v859 = vsel %vm827, 1, 0
    %v860 = vsel %vm828, 1, 0
    %v861 = vsel %vm829, 1, 0
    %v862 = vsel %vm830, 1, 0
    %v863 = vsel %vm831, 1, 0
    %v864 = vsel %vm832, 1, 0
    %v865 = vsel %vm833, 1, 0
    %v866 = vsel %vm834, 1, 0
    %v867 = vsel %vm835, 1, 0
    %v868 = vsel %vm836, 1, 0
    %v869 = vsel %vm837, 1, 0
    %v870 = vsel %vm838, 1, 0
    %v871 = vsel %vm839, 1, 0
    %v872 = vsel %vm840, 1, 0
    %v873 = vsel %vm841, 1, 0
    %v874 = vsel %vm842, 1, 0
    %v875 = vsel %vm843, 1, 0
    %v876 = vsel %vm844, 1, 0
    %v877 = vsel %vm845, 1, 0
    %v878 = vsel %vm846, 1, 0
    %v879 = vsel %vm847, 1, 0
    %v880 = vsel %vm848, 1, 0
    %v881 = vsel %vm849, 1, 0
    %v882 = vsel %vm850, 1, 0
    %v883 = vsel %vm851, 1, 0
    %v884 = vsel %vm852, 1, 0
    %v885 = vsel %vm853, 1, 0
    %v886 = vsel %vm854, 1, 0
    %v887 = vsel %vm855, 1, 0
    %v888 = vcvt.s32.f32 %v856
    %v889 = vcvt.s32.f32 %v857
    %v890 = vcvt.s32.f32 %v858
    %v891 = vcvt.s32.f32 %v859
    %v892 = vcvt.s32.f32 %v860
    %v893 = vcvt.s32.f32 %v861
    %v894 = vcvt.s32.f32 %v862
    %v895 = vcvt.s32.f32 %v863
    %v896 = vcvt.s32.f32 %v864
    %v897 = vcvt.s32.f32 %v865
    %v898 = vcvt.s32.f32 %v866
    %v899 = vcvt.s32.f32 %v867
    %v900 = vcvt.s32.f32 %v868
    %v901 = vcvt.s32.f32 %v869
    %v902 = vcvt.s32.f32 %v870
    %v903 = vcvt.s32.f32 %v871
    %v904 = vcvt.s32.f32 %v872
    %v905 = vcvt.s32.f32 %v873
    %v906 = vcvt.s32.f32 %v874
    %v907 = vcvt.s32.f32 %v875
    %v908 = vcvt.s32.f32 %v876
    %v909 = vcvt.s32.f32 %v877
    %v910 = vcvt.s32.f32 %v878
    %v911 = vcvt.s32.f32 %v879
    %v912 = vcvt.s32.f32 %v880
    %v913 = vcvt.s32.f32 %v881
    %v914 = vcvt.s32.f32 %v882
    %v915 = vcvt.s32.f32 %v883
    %v916 = vcvt.s32.f32 %v884
    %v917 = vcvt.s32.f32 %v885
    %v918 = vcvt.s32.f32 %v886
    %v919 = vcvt.s32.f32 %v887
    %v920 = vpack.c.bf16 %v888, %v888
    %v921 = vpack.c.bf16 %v889, %v889
    %v922 = vpack.c.bf16 %v890, %v890
    %v923 = vpack.c.bf16 %v891, %v891
    %v924 = vpack.c.bf16 %v892, %v892
    %v925 = vpack.c.bf16 %v893, %v893
    %v926 = vpack.c.bf16 %v894, %v894
    %v927 = vpack.c.bf16 %v895, %v895
    %v928 = vpack.c.bf16 %v896, %v896
    %v929 = vpack.c.bf16 %v897, %v897
    %v930 = vpack.c.bf16 %v898, %v898
    %v931 = vpack.c.bf16 %v899, %v899
    %v932 = vpack.c.bf16 %v900, %v900
    %v933 = vpack.c.bf16 %v901, %v901
    %v934 = vpack.c.bf16 %v902, %v902
    %v935 = vpack.c.bf16 %v903, %v903
    %v936 = vpack.c.bf16 %v904, %v904
    %v937 = vpack.c.bf16 %v905, %v905
    %v938 = vpack.c.bf16 %v906, %v906
    %v939 = vpack.c.bf16 %v907, %v907
    %v940 = vpack.c.bf16 %v908, %v908
    %v941 = vpack.c.bf16 %v909, %v909
    %v942 = vpack.c.bf16 %v910, %v910
    %v943 = vpack.c.bf16 %v911, %v911
    %v944 = vpack.c.bf16 %v912, %v912
    %v945 = vpack.c.bf16 %v913, %v913
    %v946 = vpack.c.bf16 %v914, %v914
    %v947 = vpack.c.bf16 %v915, %v915
    %v948 = vpack.c.bf16 %v916, %v916
    %v949 = vpack.c.bf16 %v917, %v917
    %v950 = vpack.c.bf16 %v918, %v918
    %v951 = vpack.c.bf16 %v919, %v919
    %952 = vset.pattern.permute.xlu0 4
    %953 = vperm.xlu0 %952, %v22
    %v954 = vpop.permute.xlu0 %953
    %955 = vset.pattern.permute.xlu0 4
    %956 = vperm.xlu0 %955, %v23
    %v957 = vpop.permute.xlu0 %956
    %958 = vset.pattern.permute.xlu0 4
    %959 = vperm.xlu0 %958, %v24
    %v960 = vpop.permute.xlu0 %959
    %961 = vset.pattern.permute.xlu0 4
    %962 = vperm.xlu0 %961, %v25
    %v963 = vpop.permute.xlu0 %962
    %964 = vset.pattern.permute.xlu0 4
    %965 = vperm.xlu0 %964, %v26
    %v966 = vpop.permute.xlu0 %965
    %967 = vset.pattern.permute.xlu0 4
    %968 = vperm.xlu0 %967, %v27
    %v969 = vpop.permute.xlu0 %968
    %970 = vset.pattern.permute.xlu0 4
    %971 = vperm.xlu0 %970, %v28
    %v972 = vpop.permute.xlu0 %971
    %973 = vset.pattern.permute.xlu0 4
    %974 = vperm.xlu0 %973, %v29
    %v975 = vpop.permute.xlu0 %974
    %976 = vset.pattern.permute.xlu0 4
    %977 = vperm.xlu0 %976, %v30
    %v978 = vpop.permute.xlu0 %977
    %979 = vset.pattern.permute.xlu0 4
    %980 = vperm.xlu0 %979, %v31
    %v981 = vpop.permute.xlu0 %980
    %982 = vset.pattern.permute.xlu0 4
    %983 = vperm.xlu0 %982, %v32
    %v984 = vpop.permute.xlu0 %983
    %985 = vset.pattern.permute.xlu0 4
    %986 = vperm.xlu0 %985, %v33
    %v987 = vpop.permute.xlu0 %986
    %988 = vset.pattern.permute.xlu0 4
    %989 = vperm.xlu0 %988, %v34
    %v990 = vpop.permute.xlu0 %989
    %991 = vset.pattern.permute.xlu0 4
    %992 = vperm.xlu0 %991, %v35
    %v993 = vpop.permute.xlu0 %992
    %994 = vset.pattern.permute.xlu0 4
    %995 = vperm.xlu0 %994, %v36
    %v996 = vpop.permute.xlu0 %995
    %997 = vset.pattern.permute.xlu0 4
    %998 = vperm.xlu0 %997, %v37
    %v999 = vpop.permute.xlu0 %998
    %1000 = vset.pattern.permute.xlu0 4
    %1001 = vperm.xlu0 %1000, %v38
    %v1002 = vpop.permute.xlu0 %1001
    %1003 = vset.pattern.permute.xlu0 4
    %1004 = vperm.xlu0 %1003, %v39
    %v1005 = vpop.permute.xlu0 %1004
    %1006 = vset.pattern.permute.xlu0 4
    %1007 = vperm.xlu0 %1006, %v40
    %v1008 = vpop.permute.xlu0 %1007
    %1009 = vset.pattern.permute.xlu0 4
    %1010 = vperm.xlu0 %1009, %v41
    %v1011 = vpop.permute.xlu0 %1010
    %1012 = vset.pattern.permute.xlu0 4
    %1013 = vperm.xlu0 %1012, %v42
    %v1014 = vpop.permute.xlu0 %1013
    %1015 = vset.pattern.permute.xlu0 4
    %1016 = vperm.xlu0 %1015, %v43
    %v1017 = vpop.permute.xlu0 %1016
    %1018 = vset.pattern.permute.xlu0 4
    %1019 = vperm.xlu0 %1018, %v44
    %v1020 = vpop.permute.xlu0 %1019
    %1021 = vset.pattern.permute.xlu0 4
    %1022 = vperm.xlu0 %1021, %v45
    %v1023 = vpop.permute.xlu0 %1022
    %1024 = vset.pattern.permute.xlu0 4
    %1025 = vperm.xlu0 %1024, %v46
    %v1026 = vpop.permute.xlu0 %1025
    %1027 = vset.pattern.permute.xlu0 4
    %1028 = vperm.xlu0 %1027, %v47
    %v1029 = vpop.permute.xlu0 %1028
    %1030 = vset.pattern.permute.xlu0 4
    %1031 = vperm.xlu0 %1030, %v48
    %v1032 = vpop.permute.xlu0 %1031
    %1033 = vset.pattern.permute.xlu0 4
    %1034 = vperm.xlu0 %1033, %v49
    %v1035 = vpop.permute.xlu0 %1034
    %1036 = vset.pattern.permute.xlu0 4
    %1037 = vperm.xlu0 %1036, %v50
    %v1038 = vpop.permute.xlu0 %1037
    %1039 = vset.pattern.permute.xlu0 4
    %1040 = vperm.xlu0 %1039, %v51
    %v1041 = vpop.permute.xlu0 %1040
    %1042 = vset.pattern.permute.xlu0 4
    %1043 = vperm.xlu0 %1042, %v52
    %v1044 = vpop.permute.xlu0 %1043
    %1045 = vset.pattern.permute.xlu0 4
    %1046 = vperm.xlu0 %1045, %v53
    %v1047 = vpop.permute.xlu0 %1046
    %vm1048 = vcmp.eq.s32.totalorder %v954, %v55
    %vm1049 = vcmp.eq.s32.totalorder %v957, %v55
    %vm1050 = vcmp.eq.s32.totalorder %v960, %v55
    %vm1051 = vcmp.eq.s32.totalorder %v963, %v55
    %vm1052 = vcmp.eq.s32.totalorder %v966, %v55
    %vm1053 = vcmp.eq.s32.totalorder %v969, %v55
    %vm1054 = vcmp.eq.s32.totalorder %v972, %v55
    %vm1055 = vcmp.eq.s32.totalorder %v975, %v55
    %vm1056 = vcmp.eq.s32.totalorder %v978, %v55
    %vm1057 = vcmp.eq.s32.totalorder %v981, %v55
    %vm1058 = vcmp.eq.s32.totalorder %v984, %v55
    %vm1059 = vcmp.eq.s32.totalorder %v987, %v55
    %vm1060 = vcmp.eq.s32.totalorder %v990, %v55
    %vm1061 = vcmp.eq.s32.totalorder %v993, %v55
    %vm1062 = vcmp.eq.s32.totalorder %v996, %v55
    %vm1063 = vcmp.eq.s32.totalorder %v999, %v55
    %vm1064 = vcmp.eq.s32.totalorder %v1002, %v55
    %vm1065 = vcmp.eq.s32.totalorder %v1005, %v55
    %vm1066 = vcmp.eq.s32.totalorder %v1008, %v55
    %vm1067 = vcmp.eq.s32.totalorder %v1011, %v55
    %vm1068 = vcmp.eq.s32.totalorder %v1014, %v55
    %vm1069 = vcmp.eq.s32.totalorder %v1017, %v55
    %vm1070 = vcmp.eq.s32.totalorder %v1020, %v55
    %vm1071 = vcmp.eq.s32.totalorder %v1023, %v55
    %vm1072 = vcmp.eq.s32.totalorder %v1026, %v55
    %vm1073 = vcmp.eq.s32.totalorder %v1029, %v55
    %vm1074 = vcmp.eq.s32.totalorder %v1032, %v55
    %vm1075 = vcmp.eq.s32.totalorder %v1035, %v55
    %vm1076 = vcmp.eq.s32.totalorder %v1038, %v55
    %vm1077 = vcmp.eq.s32.totalorder %v1041, %v55
    %vm1078 = vcmp.eq.s32.totalorder %v1044, %v55
    %vm1079 = vcmp.eq.s32.totalorder %v1047, %v55
    %v1080 = vsel %vm1048, 1, 0
    %v1081 = vsel %vm1049, 1, 0
    %v1082 = vsel %vm1050, 1, 0
    %v1083 = vsel %vm1051, 1, 0
    %v1084 = vsel %vm1052, 1, 0
    %v1085 = vsel %vm1053, 1, 0
    %v1086 = vsel %vm1054, 1, 0
    %v1087 = vsel %vm1055, 1, 0
    %v1088 = vsel %vm1056, 1, 0
    %v1089 = vsel %vm1057, 1, 0
    %v1090 = vsel %vm1058, 1, 0
    %v1091 = vsel %vm1059, 1, 0
    %v1092 = vsel %vm1060, 1, 0
    %v1093 = vsel %vm1061, 1, 0
    %v1094 = vsel %vm1062, 1, 0
    %v1095 = vsel %vm1063, 1, 0
    %v1096 = vsel %vm1064, 1, 0
    %v1097 = vsel %vm1065, 1, 0
    %v1098 = vsel %vm1066, 1, 0
    %v1099 = vsel %vm1067, 1, 0
    %v1100 = vsel %vm1068, 1, 0
    %v1101 = vsel %vm1069, 1, 0
    %v1102 = vsel %vm1070, 1, 0
    %v1103 = vsel %vm1071, 1, 0
    %v1104 = vsel %vm1072, 1, 0
    %v1105 = vsel %vm1073, 1, 0
    %v1106 = vsel %vm1074, 1, 0
    %v1107 = vsel %vm1075, 1, 0
    %v1108 = vsel %vm1076, 1, 0
    %v1109 = vsel %vm1077, 1, 0
    %v1110 = vsel %vm1078, 1, 0
    %v1111 = vsel %vm1079, 1, 0
    %v1112 = vcvt.s32.f32 %v1080
    %v1113 = vcvt.s32.f32 %v1081
    %v1114 = vcvt.s32.f32 %v1082
    %v1115 = vcvt.s32.f32 %v1083
    %v1116 = vcvt.s32.f32 %v1084
    %v1117 = vcvt.s32.f32 %v1085
    %v1118 = vcvt.s32.f32 %v1086
    %v1119 = vcvt.s32.f32 %v1087
    %v1120 = vcvt.s32.f32 %v1088
    %v1121 = vcvt.s32.f32 %v1089
    %v1122 = vcvt.s32.f32 %v1090
    %v1123 = vcvt.s32.f32 %v1091
    %v1124 = vcvt.s32.f32 %v1092
    %v1125 = vcvt.s32.f32 %v1093
    %v1126 = vcvt.s32.f32 %v1094
    %v1127 = vcvt.s32.f32 %v1095
    %v1128 = vcvt.s32.f32 %v1096
    %v1129 = vcvt.s32.f32 %v1097
    %v1130 = vcvt.s32.f32 %v1098
    %v1131 = vcvt.s32.f32 %v1099
    %v1132 = vcvt.s32.f32 %v1100
    %v1133 = vcvt.s32.f32 %v1101
    %v1134 = vcvt.s32.f32 %v1102
    %v1135 = vcvt.s32.f32 %v1103
    %v1136 = vcvt.s32.f32 %v1104
    %v1137 = vcvt.s32.f32 %v1105
    %v1138 = vcvt.s32.f32 %v1106
    %v1139 = vcvt.s32.f32 %v1107
    %v1140 = vcvt.s32.f32 %v1108
    %v1141 = vcvt.s32.f32 %v1109
    %v1142 = vcvt.s32.f32 %v1110
    %v1143 = vcvt.s32.f32 %v1111
    %v1144 = vpack.c.bf16 %v1112, %v1112
    %v1145 = vpack.c.bf16 %v1113, %v1113
    %v1146 = vpack.c.bf16 %v1114, %v1114
    %v1147 = vpack.c.bf16 %v1115, %v1115
    %v1148 = vpack.c.bf16 %v1116, %v1116
    %v1149 = vpack.c.bf16 %v1117, %v1117
    %v1150 = vpack.c.bf16 %v1118, %v1118
    %v1151 = vpack.c.bf16 %v1119, %v1119
    %v1152 = vpack.c.bf16 %v1120, %v1120
    %v1153 = vpack.c.bf16 %v1121, %v1121
    %v1154 = vpack.c.bf16 %v1122, %v1122
    %v1155 = vpack.c.bf16 %v1123, %v1123
    %v1156 = vpack.c.bf16 %v1124, %v1124
    %v1157 = vpack.c.bf16 %v1125, %v1125
    %v1158 = vpack.c.bf16 %v1126, %v1126
    %v1159 = vpack.c.bf16 %v1127, %v1127
    %v1160 = vpack.c.bf16 %v1128, %v1128
    %v1161 = vpack.c.bf16 %v1129, %v1129
    %v1162 = vpack.c.bf16 %v1130, %v1130
    %v1163 = vpack.c.bf16 %v1131, %v1131
    %v1164 = vpack.c.bf16 %v1132, %v1132
    %v1165 = vpack.c.bf16 %v1133, %v1133
    %v1166 = vpack.c.bf16 %v1134, %v1134
    %v1167 = vpack.c.bf16 %v1135, %v1135
    %v1168 = vpack.c.bf16 %v1136, %v1136
    %v1169 = vpack.c.bf16 %v1137, %v1137
    %v1170 = vpack.c.bf16 %v1138, %v1138
    %v1171 = vpack.c.bf16 %v1139, %v1139
    %v1172 = vpack.c.bf16 %v1140, %v1140
    %v1173 = vpack.c.bf16 %v1141, %v1141
    %v1174 = vpack.c.bf16 %v1142, %v1142
    %v1175 = vpack.c.bf16 %v1143, %v1143
    %1176 = vset.pattern.permute.xlu0 5
    %1177 = vperm.xlu0 %1176, %v22
    %v1178 = vpop.permute.xlu0 %1177
    %1179 = vset.pattern.permute.xlu0 5
    %1180 = vperm.xlu0 %1179, %v23
    %v1181 = vpop.permute.xlu0 %1180
    %1182 = vset.pattern.permute.xlu0 5
    %1183 = vperm.xlu0 %1182, %v24
    %v1184 = vpop.permute.xlu0 %1183
    %1185 = vset.pattern.permute.xlu0 5
    %1186 = vperm.xlu0 %1185, %v25
    %v1187 = vpop.permute.xlu0 %1186
    %1188 = vset.pattern.permute.xlu0 5
    %1189 = vperm.xlu0 %1188, %v26
    %v1190 = vpop.permute.xlu0 %1189
    %1191 = vset.pattern.permute.xlu0 5
    %1192 = vperm.xlu0 %1191, %v27
    %v1193 = vpop.permute.xlu0 %1192
    %1194 = vset.pattern.permute.xlu0 5
    %1195 = vperm.xlu0 %1194, %v28
    %v1196 = vpop.permute.xlu0 %1195
    %1197 = vset.pattern.permute.xlu0 5
    %1198 = vperm.xlu0 %1197, %v29
    %v1199 = vpop.permute.xlu0 %1198
    %1200 = vset.pattern.permute.xlu0 5
    %1201 = vperm.xlu0 %1200, %v30
    %v1202 = vpop.permute.xlu0 %1201
    %1203 = vset.pattern.permute.xlu0 5
    %1204 = vperm.xlu0 %1203, %v31
    %v1205 = vpop.permute.xlu0 %1204
    %1206 = vset.pattern.permute.xlu0 5
    %1207 = vperm.xlu0 %1206, %v32
    %v1208 = vpop.permute.xlu0 %1207
    %1209 = vset.pattern.permute.xlu0 5
    %1210 = vperm.xlu0 %1209, %v33
    %v1211 = vpop.permute.xlu0 %1210
    %1212 = vset.pattern.permute.xlu0 5
    %1213 = vperm.xlu0 %1212, %v34
    %v1214 = vpop.permute.xlu0 %1213
    %1215 = vset.pattern.permute.xlu0 5
    %1216 = vperm.xlu0 %1215, %v35
    %v1217 = vpop.permute.xlu0 %1216
    %1218 = vset.pattern.permute.xlu0 5
    %1219 = vperm.xlu0 %1218, %v36
    %v1220 = vpop.permute.xlu0 %1219
    %1221 = vset.pattern.permute.xlu0 5
    %1222 = vperm.xlu0 %1221, %v37
    %v1223 = vpop.permute.xlu0 %1222
    %1224 = vset.pattern.permute.xlu0 5
    %1225 = vperm.xlu0 %1224, %v38
    %v1226 = vpop.permute.xlu0 %1225
    %1227 = vset.pattern.permute.xlu0 5
    %1228 = vperm.xlu0 %1227, %v39
    %v1229 = vpop.permute.xlu0 %1228
    %1230 = vset.pattern.permute.xlu0 5
    %1231 = vperm.xlu0 %1230, %v40
    %v1232 = vpop.permute.xlu0 %1231
    %1233 = vset.pattern.permute.xlu0 5
    %1234 = vperm.xlu0 %1233, %v41
    %v1235 = vpop.permute.xlu0 %1234
    %1236 = vset.pattern.permute.xlu0 5
    %1237 = vperm.xlu0 %1236, %v42
    %v1238 = vpop.permute.xlu0 %1237
    %1239 = vset.pattern.permute.xlu0 5
    %1240 = vperm.xlu0 %1239, %v43
    %v1241 = vpop.permute.xlu0 %1240
    %1242 = vset.pattern.permute.xlu0 5
    %1243 = vperm.xlu0 %1242, %v44
    %v1244 = vpop.permute.xlu0 %1243
    %1245 = vset.pattern.permute.xlu0 5
    %1246 = vperm.xlu0 %1245, %v45
    %v1247 = vpop.permute.xlu0 %1246
    %1248 = vset.pattern.permute.xlu0 5
    %1249 = vperm.xlu0 %1248, %v46
    %v1250 = vpop.permute.xlu0 %1249
    %1251 = vset.pattern.permute.xlu0 5
    %1252 = vperm.xlu0 %1251, %v47
    %v1253 = vpop.permute.xlu0 %1252
    %1254 = vset.pattern.permute.xlu0 5
    %1255 = vperm.xlu0 %1254, %v48
    %v1256 = vpop.permute.xlu0 %1255
    %1257 = vset.pattern.permute.xlu0 5
    %1258 = vperm.xlu0 %1257, %v49
    %v1259 = vpop.permute.xlu0 %1258
    %1260 = vset.pattern.permute.xlu0 5
    %1261 = vperm.xlu0 %1260, %v50
    %v1262 = vpop.permute.xlu0 %1261
    %1263 = vset.pattern.permute.xlu0 5
    %1264 = vperm.xlu0 %1263, %v51
    %v1265 = vpop.permute.xlu0 %1264
    %1266 = vset.pattern.permute.xlu0 5
    %1267 = vperm.xlu0 %1266, %v52
    %v1268 = vpop.permute.xlu0 %1267
    %1269 = vset.pattern.permute.xlu0 5
    %1270 = vperm.xlu0 %1269, %v53
    %v1271 = vpop.permute.xlu0 %1270
    %vm1272 = vcmp.eq.s32.totalorder %v1178, %v55
    %vm1273 = vcmp.eq.s32.totalorder %v1181, %v55
    %vm1274 = vcmp.eq.s32.totalorder %v1184, %v55
    %vm1275 = vcmp.eq.s32.totalorder %v1187, %v55
    %vm1276 = vcmp.eq.s32.totalorder %v1190, %v55
    %vm1277 = vcmp.eq.s32.totalorder %v1193, %v55
    %vm1278 = vcmp.eq.s32.totalorder %v1196, %v55
    %vm1279 = vcmp.eq.s32.totalorder %v1199, %v55
    %vm1280 = vcmp.eq.s32.totalorder %v1202, %v55
    %vm1281 = vcmp.eq.s32.totalorder %v1205, %v55
    %vm1282 = vcmp.eq.s32.totalorder %v1208, %v55
    %vm1283 = vcmp.eq.s32.totalorder %v1211, %v55
    %vm1284 = vcmp.eq.s32.totalorder %v1214, %v55
    %vm1285 = vcmp.eq.s32.totalorder %v1217, %v55
    %vm1286 = vcmp.eq.s32.totalorder %v1220, %v55
    %vm1287 = vcmp.eq.s32.totalorder %v1223, %v55
    %vm1288 = vcmp.eq.s32.totalorder %v1226, %v55
    %vm1289 = vcmp.eq.s32.totalorder %v1229, %v55
    %vm1290 = vcmp.eq.s32.totalorder %v1232, %v55
    %vm1291 = vcmp.eq.s32.totalorder %v1235, %v55
    %vm1292 = vcmp.eq.s32.totalorder %v1238, %v55
    %vm1293 = vcmp.eq.s32.totalorder %v1241, %v55
    %vm1294 = vcmp.eq.s32.totalorder %v1244, %v55
    %vm1295 = vcmp.eq.s32.totalorder %v1247, %v55
    %vm1296 = vcmp.eq.s32.totalorder %v1250, %v55
    %vm1297 = vcmp.eq.s32.totalorder %v1253, %v55
    %vm1298 = vcmp.eq.s32.totalorder %v1256, %v55
    %vm1299 = vcmp.eq.s32.totalorder %v1259, %v55
    %vm1300 = vcmp.eq.s32.totalorder %v1262, %v55
    %vm1301 = vcmp.eq.s32.totalorder %v1265, %v55
    %vm1302 = vcmp.eq.s32.totalorder %v1268, %v55
    %vm1303 = vcmp.eq.s32.totalorder %v1271, %v55
    %v1304 = vsel %vm1272, 1, 0
    %v1305 = vsel %vm1273, 1, 0
    %v1306 = vsel %vm1274, 1, 0
    %v1307 = vsel %vm1275, 1, 0
    %v1308 = vsel %vm1276, 1, 0
    %v1309 = vsel %vm1277, 1, 0
    %v1310 = vsel %vm1278, 1, 0
    %v1311 = vsel %vm1279, 1, 0
    %v1312 = vsel %vm1280, 1, 0
    %v1313 = vsel %vm1281, 1, 0
    %v1314 = vsel %vm1282, 1, 0
    %v1315 = vsel %vm1283, 1, 0
    %v1316 = vsel %vm1284, 1, 0
    %v1317 = vsel %vm1285, 1, 0
    %v1318 = vsel %vm1286, 1, 0
    %v1319 = vsel %vm1287, 1, 0
    %v1320 = vsel %vm1288, 1, 0
    %v1321 = vsel %vm1289, 1, 0
    %v1322 = vsel %vm1290, 1, 0
    %v1323 = vsel %vm1291, 1, 0
    %v1324 = vsel %vm1292, 1, 0
    %v1325 = vsel %vm1293, 1, 0
    %v1326 = vsel %vm1294, 1, 0
    %v1327 = vsel %vm1295, 1, 0
    %v1328 = vsel %vm1296, 1, 0
    %v1329 = vsel %vm1297, 1, 0
    %v1330 = vsel %vm1298, 1, 0
    %v1331 = vsel %vm1299, 1, 0
    %v1332 = vsel %vm1300, 1, 0
    %v1333 = vsel %vm1301, 1, 0
    %v1334 = vsel %vm1302, 1, 0
    %v1335 = vsel %vm1303, 1, 0
    %v1336 = vcvt.s32.f32 %v1304
    %v1337 = vcvt.s32.f32 %v1305
    %v1338 = vcvt.s32.f32 %v1306
    %v1339 = vcvt.s32.f32 %v1307
    %v1340 = vcvt.s32.f32 %v1308
    %v1341 = vcvt.s32.f32 %v1309
    %v1342 = vcvt.s32.f32 %v1310
    %v1343 = vcvt.s32.f32 %v1311
    %v1344 = vcvt.s32.f32 %v1312
    %v1345 = vcvt.s32.f32 %v1313
    %v1346 = vcvt.s32.f32 %v1314
    %v1347 = vcvt.s32.f32 %v1315
    %v1348 = vcvt.s32.f32 %v1316
    %v1349 = vcvt.s32.f32 %v1317
    %v1350 = vcvt.s32.f32 %v1318
    %v1351 = vcvt.s32.f32 %v1319
    %v1352 = vcvt.s32.f32 %v1320
    %v1353 = vcvt.s32.f32 %v1321
    %v1354 = vcvt.s32.f32 %v1322
    %v1355 = vcvt.s32.f32 %v1323
    %v1356 = vcvt.s32.f32 %v1324
    %v1357 = vcvt.s32.f32 %v1325
    %v1358 = vcvt.s32.f32 %v1326
    %v1359 = vcvt.s32.f32 %v1327
    %v1360 = vcvt.s32.f32 %v1328
    %v1361 = vcvt.s32.f32 %v1329
    %v1362 = vcvt.s32.f32 %v1330
    %v1363 = vcvt.s32.f32 %v1331
    %v1364 = vcvt.s32.f32 %v1332
    %v1365 = vcvt.s32.f32 %v1333
    %v1366 = vcvt.s32.f32 %v1334
    %v1367 = vcvt.s32.f32 %v1335
    %v1368 = vpack.c.bf16 %v1336, %v1336
    %v1369 = vpack.c.bf16 %v1337, %v1337
    %v1370 = vpack.c.bf16 %v1338, %v1338
    %v1371 = vpack.c.bf16 %v1339, %v1339
    %v1372 = vpack.c.bf16 %v1340, %v1340
    %v1373 = vpack.c.bf16 %v1341, %v1341
    %v1374 = vpack.c.bf16 %v1342, %v1342
    %v1375 = vpack.c.bf16 %v1343, %v1343
    %v1376 = vpack.c.bf16 %v1344, %v1344
    %v1377 = vpack.c.bf16 %v1345, %v1345
    %v1378 = vpack.c.bf16 %v1346, %v1346
    %v1379 = vpack.c.bf16 %v1347, %v1347
    %v1380 = vpack.c.bf16 %v1348, %v1348
    %v1381 = vpack.c.bf16 %v1349, %v1349
    %v1382 = vpack.c.bf16 %v1350, %v1350
    %v1383 = vpack.c.bf16 %v1351, %v1351
    %v1384 = vpack.c.bf16 %v1352, %v1352
    %v1385 = vpack.c.bf16 %v1353, %v1353
    %v1386 = vpack.c.bf16 %v1354, %v1354
    %v1387 = vpack.c.bf16 %v1355, %v1355
    %v1388 = vpack.c.bf16 %v1356, %v1356
    %v1389 = vpack.c.bf16 %v1357, %v1357
    %v1390 = vpack.c.bf16 %v1358, %v1358
    %v1391 = vpack.c.bf16 %v1359, %v1359
    %v1392 = vpack.c.bf16 %v1360, %v1360
    %v1393 = vpack.c.bf16 %v1361, %v1361
    %v1394 = vpack.c.bf16 %v1362, %v1362
    %v1395 = vpack.c.bf16 %v1363, %v1363
    %v1396 = vpack.c.bf16 %v1364, %v1364
    %v1397 = vpack.c.bf16 %v1365, %v1365
    %v1398 = vpack.c.bf16 %v1366, %v1366
    %v1399 = vpack.c.bf16 %v1367, %v1367
    %1400 = vset.pattern.permute.xlu0 6
    %1401 = vperm.xlu0 %1400, %v22
    %v1402 = vpop.permute.xlu0 %1401
    %1403 = vset.pattern.permute.xlu0 6
    %1404 = vperm.xlu0 %1403, %v23
    %v1405 = vpop.permute.xlu0 %1404
    %1406 = vset.pattern.permute.xlu0 6
    %1407 = vperm.xlu0 %1406, %v24
    %v1408 = vpop.permute.xlu0 %1407
    %1409 = vset.pattern.permute.xlu0 6
    %1410 = vperm.xlu0 %1409, %v25
    %v1411 = vpop.permute.xlu0 %1410
    %1412 = vset.pattern.permute.xlu0 6
    %1413 = vperm.xlu0 %1412, %v26
    %v1414 = vpop.permute.xlu0 %1413
    %1415 = vset.pattern.permute.xlu0 6
    %1416 = vperm.xlu0 %1415, %v27
    %v1417 = vpop.permute.xlu0 %1416
    %1418 = vset.pattern.permute.xlu0 6
    %1419 = vperm.xlu0 %1418, %v28
    %v1420 = vpop.permute.xlu0 %1419
    %1421 = vset.pattern.permute.xlu0 6
    %1422 = vperm.xlu0 %1421, %v29
    %v1423 = vpop.permute.xlu0 %1422
    %1424 = vset.pattern.permute.xlu0 6
    %1425 = vperm.xlu0 %1424, %v30
    %v1426 = vpop.permute.xlu0 %1425
    %1427 = vset.pattern.permute.xlu0 6
    %1428 = vperm.xlu0 %1427, %v31
    %v1429 = vpop.permute.xlu0 %1428
    %1430 = vset.pattern.permute.xlu0 6
    %1431 = vperm.xlu0 %1430, %v32
    %v1432 = vpop.permute.xlu0 %1431
    %1433 = vset.pattern.permute.xlu0 6
    %1434 = vperm.xlu0 %1433, %v33
    %v1435 = vpop.permute.xlu0 %1434
    %1436 = vset.pattern.permute.xlu0 6
    %1437 = vperm.xlu0 %1436, %v34
    %v1438 = vpop.permute.xlu0 %1437
    %1439 = vset.pattern.permute.xlu0 6
    %1440 = vperm.xlu0 %1439, %v35
    %v1441 = vpop.permute.xlu0 %1440
    %1442 = vset.pattern.permute.xlu0 6
    %1443 = vperm.xlu0 %1442, %v36
    %v1444 = vpop.permute.xlu0 %1443
    %1445 = vset.pattern.permute.xlu0 6
    %1446 = vperm.xlu0 %1445, %v37
    %v1447 = vpop.permute.xlu0 %1446
    %1448 = vset.pattern.permute.xlu0 6
    %1449 = vperm.xlu0 %1448, %v38
    %v1450 = vpop.permute.xlu0 %1449
    %1451 = vset.pattern.permute.xlu0 6
    %1452 = vperm.xlu0 %1451, %v39
    %v1453 = vpop.permute.xlu0 %1452
    %1454 = vset.pattern.permute.xlu0 6
    %1455 = vperm.xlu0 %1454, %v40
    %v1456 = vpop.permute.xlu0 %1455
    %1457 = vset.pattern.permute.xlu0 6
    %1458 = vperm.xlu0 %1457, %v41
    %v1459 = vpop.permute.xlu0 %1458
    %1460 = vset.pattern.permute.xlu0 6
    %1461 = vperm.xlu0 %1460, %v42
    %v1462 = vpop.permute.xlu0 %1461
    %1463 = vset.pattern.permute.xlu0 6
    %1464 = vperm.xlu0 %1463, %v43
    %v1465 = vpop.permute.xlu0 %1464
    %1466 = vset.pattern.permute.xlu0 6
    %1467 = vperm.xlu0 %1466, %v44
    %v1468 = vpop.permute.xlu0 %1467
    %1469 = vset.pattern.permute.xlu0 6
    %1470 = vperm.xlu0 %1469, %v45
    %v1471 = vpop.permute.xlu0 %1470
    %1472 = vset.pattern.permute.xlu0 6
    %1473 = vperm.xlu0 %1472, %v46
    %v1474 = vpop.permute.xlu0 %1473
    %1475 = vset.pattern.permute.xlu0 6
    %1476 = vperm.xlu0 %1475, %v47
    %v1477 = vpop.permute.xlu0 %1476
    %1478 = vset.pattern.permute.xlu0 6
    %1479 = vperm.xlu0 %1478, %v48
    %v1480 = vpop.permute.xlu0 %1479
    %1481 = vset.pattern.permute.xlu0 6
    %1482 = vperm.xlu0 %1481, %v49
    %v1483 = vpop.permute.xlu0 %1482
    %1484 = vset.pattern.permute.xlu0 6
    %1485 = vperm.xlu0 %1484, %v50
    %v1486 = vpop.permute.xlu0 %1485
    %1487 = vset.pattern.permute.xlu0 6
    %1488 = vperm.xlu0 %1487, %v51
    %v1489 = vpop.permute.xlu0 %1488
    %1490 = vset.pattern.permute.xlu0 6
    %1491 = vperm.xlu0 %1490, %v52
    %v1492 = vpop.permute.xlu0 %1491
    %1493 = vset.pattern.permute.xlu0 6
    %1494 = vperm.xlu0 %1493, %v53
    %v1495 = vpop.permute.xlu0 %1494
    %vm1496 = vcmp.eq.s32.totalorder %v1402, %v55
    %vm1497 = vcmp.eq.s32.totalorder %v1405, %v55
    %vm1498 = vcmp.eq.s32.totalorder %v1408, %v55
    %vm1499 = vcmp.eq.s32.totalorder %v1411, %v55
    %vm1500 = vcmp.eq.s32.totalorder %v1414, %v55
    %vm1501 = vcmp.eq.s32.totalorder %v1417, %v55
    %vm1502 = vcmp.eq.s32.totalorder %v1420, %v55
    %vm1503 = vcmp.eq.s32.totalorder %v1423, %v55
    %vm1504 = vcmp.eq.s32.totalorder %v1426, %v55
    %vm1505 = vcmp.eq.s32.totalorder %v1429, %v55
    %vm1506 = vcmp.eq.s32.totalorder %v1432, %v55
    %vm1507 = vcmp.eq.s32.totalorder %v1435, %v55
    %vm1508 = vcmp.eq.s32.totalorder %v1438, %v55
    %vm1509 = vcmp.eq.s32.totalorder %v1441, %v55
    %vm1510 = vcmp.eq.s32.totalorder %v1444, %v55
    %vm1511 = vcmp.eq.s32.totalorder %v1447, %v55
    %vm1512 = vcmp.eq.s32.totalorder %v1450, %v55
    %vm1513 = vcmp.eq.s32.totalorder %v1453, %v55
    %vm1514 = vcmp.eq.s32.totalorder %v1456, %v55
    %vm1515 = vcmp.eq.s32.totalorder %v1459, %v55
    %vm1516 = vcmp.eq.s32.totalorder %v1462, %v55
    %vm1517 = vcmp.eq.s32.totalorder %v1465, %v55
    %vm1518 = vcmp.eq.s32.totalorder %v1468, %v55
    %vm1519 = vcmp.eq.s32.totalorder %v1471, %v55
    %vm1520 = vcmp.eq.s32.totalorder %v1474, %v55
    %vm1521 = vcmp.eq.s32.totalorder %v1477, %v55
    %vm1522 = vcmp.eq.s32.totalorder %v1480, %v55
    %vm1523 = vcmp.eq.s32.totalorder %v1483, %v55
    %vm1524 = vcmp.eq.s32.totalorder %v1486, %v55
    %vm1525 = vcmp.eq.s32.totalorder %v1489, %v55
    %vm1526 = vcmp.eq.s32.totalorder %v1492, %v55
    %vm1527 = vcmp.eq.s32.totalorder %v1495, %v55
    %v1528 = vsel %vm1496, 1, 0
    %v1529 = vsel %vm1497, 1, 0
    %v1530 = vsel %vm1498, 1, 0
    %v1531 = vsel %vm1499, 1, 0
    %v1532 = vsel %vm1500, 1, 0
    %v1533 = vsel %vm1501, 1, 0
    %v1534 = vsel %vm1502, 1, 0
    %v1535 = vsel %vm1503, 1, 0
    %v1536 = vsel %vm1504, 1, 0
    %v1537 = vsel %vm1505, 1, 0
    %v1538 = vsel %vm1506, 1, 0
    %v1539 = vsel %vm1507, 1, 0
    %v1540 = vsel %vm1508, 1, 0
    %v1541 = vsel %vm1509, 1, 0
    %v1542 = vsel %vm1510, 1, 0
    %v1543 = vsel %vm1511, 1, 0
    %v1544 = vsel %vm1512, 1, 0
    %v1545 = vsel %vm1513, 1, 0
    %v1546 = vsel %vm1514, 1, 0
    %v1547 = vsel %vm1515, 1, 0
    %v1548 = vsel %vm1516, 1, 0
    %v1549 = vsel %vm1517, 1, 0
    %v1550 = vsel %vm1518, 1, 0
    %v1551 = vsel %vm1519, 1, 0
    %v1552 = vsel %vm1520, 1, 0
    %v1553 = vsel %vm1521, 1, 0
    %v1554 = vsel %vm1522, 1, 0
    %v1555 = vsel %vm1523, 1, 0
    %v1556 = vsel %vm1524, 1, 0
    %v1557 = vsel %vm1525, 1, 0
    %v1558 = vsel %vm1526, 1, 0
    %v1559 = vsel %vm1527, 1, 0
    %v1560 = vcvt.s32.f32 %v1528
    %v1561 = vcvt.s32.f32 %v1529
    %v1562 = vcvt.s32.f32 %v1530
    %v1563 = vcvt.s32.f32 %v1531
    %v1564 = vcvt.s32.f32 %v1532
    %v1565 = vcvt.s32.f32 %v1533
    %v1566 = vcvt.s32.f32 %v1534
    %v1567 = vcvt.s32.f32 %v1535
    %v1568 = vcvt.s32.f32 %v1536
    %v1569 = vcvt.s32.f32 %v1537
    %v1570 = vcvt.s32.f32 %v1538
    %v1571 = vcvt.s32.f32 %v1539
    %v1572 = vcvt.s32.f32 %v1540
    %v1573 = vcvt.s32.f32 %v1541
    %v1574 = vcvt.s32.f32 %v1542
    %v1575 = vcvt.s32.f32 %v1543
    %v1576 = vcvt.s32.f32 %v1544
    %v1577 = vcvt.s32.f32 %v1545
    %v1578 = vcvt.s32.f32 %v1546
    %v1579 = vcvt.s32.f32 %v1547
    %v1580 = vcvt.s32.f32 %v1548
    %v1581 = vcvt.s32.f32 %v1549
    %v1582 = vcvt.s32.f32 %v1550
    %v1583 = vcvt.s32.f32 %v1551
    %v1584 = vcvt.s32.f32 %v1552
    %v1585 = vcvt.s32.f32 %v1553
    %v1586 = vcvt.s32.f32 %v1554
    %v1587 = vcvt.s32.f32 %v1555
    %v1588 = vcvt.s32.f32 %v1556
    %v1589 = vcvt.s32.f32 %v1557
    %v1590 = vcvt.s32.f32 %v1558
    %v1591 = vcvt.s32.f32 %v1559
    %v1592 = vpack.c.bf16 %v1560, %v1560
    %v1593 = vpack.c.bf16 %v1561, %v1561
    %v1594 = vpack.c.bf16 %v1562, %v1562
    %v1595 = vpack.c.bf16 %v1563, %v1563
    %v1596 = vpack.c.bf16 %v1564, %v1564
    %v1597 = vpack.c.bf16 %v1565, %v1565
    %v1598 = vpack.c.bf16 %v1566, %v1566
    %v1599 = vpack.c.bf16 %v1567, %v1567
    %v1600 = vpack.c.bf16 %v1568, %v1568
    %v1601 = vpack.c.bf16 %v1569, %v1569
    %v1602 = vpack.c.bf16 %v1570, %v1570
    %v1603 = vpack.c.bf16 %v1571, %v1571
    %v1604 = vpack.c.bf16 %v1572, %v1572
    %v1605 = vpack.c.bf16 %v1573, %v1573
    %v1606 = vpack.c.bf16 %v1574, %v1574
    %v1607 = vpack.c.bf16 %v1575, %v1575
    %v1608 = vpack.c.bf16 %v1576, %v1576
    %v1609 = vpack.c.bf16 %v1577, %v1577
    %v1610 = vpack.c.bf16 %v1578, %v1578
    %v1611 = vpack.c.bf16 %v1579, %v1579
    %v1612 = vpack.c.bf16 %v1580, %v1580
    %v1613 = vpack.c.bf16 %v1581, %v1581
    %v1614 = vpack.c.bf16 %v1582, %v1582
    %v1615 = vpack.c.bf16 %v1583, %v1583
    %v1616 = vpack.c.bf16 %v1584, %v1584
    %v1617 = vpack.c.bf16 %v1585, %v1585
    %v1618 = vpack.c.bf16 %v1586, %v1586
    %v1619 = vpack.c.bf16 %v1587, %v1587
    %v1620 = vpack.c.bf16 %v1588, %v1588
    %v1621 = vpack.c.bf16 %v1589, %v1589
    %v1622 = vpack.c.bf16 %v1590, %v1590
    %v1623 = vpack.c.bf16 %v1591, %v1591
    %1624 = vset.pattern.permute.xlu0 7
    %1625 = vperm.xlu0 %1624, %v22
    %v1626 = vpop.permute.xlu0 %1625
    %1627 = vset.pattern.permute.xlu0 7
    %1628 = vperm.xlu0 %1627, %v23
    %v1629 = vpop.permute.xlu0 %1628
    %1630 = vset.pattern.permute.xlu0 7
    %1631 = vperm.xlu0 %1630, %v24
    %v1632 = vpop.permute.xlu0 %1631
    %1633 = vset.pattern.permute.xlu0 7
    %1634 = vperm.xlu0 %1633, %v25
    %v1635 = vpop.permute.xlu0 %1634
    %1636 = vset.pattern.permute.xlu0 7
    %1637 = vperm.xlu0 %1636, %v26
    %v1638 = vpop.permute.xlu0 %1637
    %1639 = vset.pattern.permute.xlu0 7
    %1640 = vperm.xlu0 %1639, %v27
    %v1641 = vpop.permute.xlu0 %1640
    %1642 = vset.pattern.permute.xlu0 7
    %1643 = vperm.xlu0 %1642, %v28
    %v1644 = vpop.permute.xlu0 %1643
    %1645 = vset.pattern.permute.xlu0 7
    %1646 = vperm.xlu0 %1645, %v29
    %v1647 = vpop.permute.xlu0 %1646
    %1648 = vset.pattern.permute.xlu0 7
    %1649 = vperm.xlu0 %1648, %v30
    %v1650 = vpop.permute.xlu0 %1649
    %1651 = vset.pattern.permute.xlu0 7
    %1652 = vperm.xlu0 %1651, %v31
    %v1653 = vpop.permute.xlu0 %1652
    %1654 = vset.pattern.permute.xlu0 7
    %1655 = vperm.xlu0 %1654, %v32
    %v1656 = vpop.permute.xlu0 %1655
    %1657 = vset.pattern.permute.xlu0 7
    %1658 = vperm.xlu0 %1657, %v33
    %v1659 = vpop.permute.xlu0 %1658
    %1660 = vset.pattern.permute.xlu0 7
    %1661 = vperm.xlu0 %1660, %v34
    %v1662 = vpop.permute.xlu0 %1661
    %1663 = vset.pattern.permute.xlu0 7
    %1664 = vperm.xlu0 %1663, %v35
    %v1665 = vpop.permute.xlu0 %1664
    %1666 = vset.pattern.permute.xlu0 7
    %1667 = vperm.xlu0 %1666, %v36
    %v1668 = vpop.permute.xlu0 %1667
    %1669 = vset.pattern.permute.xlu0 7
    %1670 = vperm.xlu0 %1669, %v37
    %v1671 = vpop.permute.xlu0 %1670
    %1672 = vset.pattern.permute.xlu0 7
    %1673 = vperm.xlu0 %1672, %v38
    %v1674 = vpop.permute.xlu0 %1673
    %1675 = vset.pattern.permute.xlu0 7
    %1676 = vperm.xlu0 %1675, %v39
    %v1677 = vpop.permute.xlu0 %1676
    %1678 = vset.pattern.permute.xlu0 7
    %1679 = vperm.xlu0 %1678, %v40
    %v1680 = vpop.permute.xlu0 %1679
    %1681 = vset.pattern.permute.xlu0 7
    %1682 = vperm.xlu0 %1681, %v41
    %v1683 = vpop.permute.xlu0 %1682
    %1684 = vset.pattern.permute.xlu0 7
    %1685 = vperm.xlu0 %1684, %v42
    %v1686 = vpop.permute.xlu0 %1685
    %1687 = vset.pattern.permute.xlu0 7
    %1688 = vperm.xlu0 %1687, %v43
    %v1689 = vpop.permute.xlu0 %1688
    %1690 = vset.pattern.permute.xlu0 7
    %1691 = vperm.xlu0 %1690, %v44
    %v1692 = vpop.permute.xlu0 %1691
    %1693 = vset.pattern.permute.xlu0 7
    %1694 = vperm.xlu0 %1693, %v45
    %v1695 = vpop.permute.xlu0 %1694
    %1696 = vset.pattern.permute.xlu0 7
    %1697 = vperm.xlu0 %1696, %v46
    %v1698 = vpop.permute.xlu0 %1697
    %1699 = vset.pattern.permute.xlu0 7
    %1700 = vperm.xlu0 %1699, %v47
    %v1701 = vpop.permute.xlu0 %1700
    %1702 = vset.pattern.permute.xlu0 7
    %1703 = vperm.xlu0 %1702, %v48
    %v1704 = vpop.permute.xlu0 %1703
    %1705 = vset.pattern.permute.xlu0 7
    %1706 = vperm.xlu0 %1705, %v49
    %v1707 = vpop.permute.xlu0 %1706
    %1708 = vset.pattern.permute.xlu0 7
    %1709 = vperm.xlu0 %1708, %v50
    %v1710 = vpop.permute.xlu0 %1709
    %1711 = vset.pattern.permute.xlu0 7
    %1712 = vperm.xlu0 %1711, %v51
    %v1713 = vpop.permute.xlu0 %1712
    %1714 = vset.pattern.permute.xlu0 7
    %1715 = vperm.xlu0 %1714, %v52
    %v1716 = vpop.permute.xlu0 %1715
    %1717 = vset.pattern.permute.xlu0 7
    %1718 = vperm.xlu0 %1717, %v53
    %v1719 = vpop.permute.xlu0 %1718
    %vm1720 = vcmp.eq.s32.totalorder %v1626, %v55
    %vm1721 = vcmp.eq.s32.totalorder %v1629, %v55
    %vm1722 = vcmp.eq.s32.totalorder %v1632, %v55
    %vm1723 = vcmp.eq.s32.totalorder %v1635, %v55
    %vm1724 = vcmp.eq.s32.totalorder %v1638, %v55
    %vm1725 = vcmp.eq.s32.totalorder %v1641, %v55
    %vm1726 = vcmp.eq.s32.totalorder %v1644, %v55
    %vm1727 = vcmp.eq.s32.totalorder %v1647, %v55
    %vm1728 = vcmp.eq.s32.totalorder %v1650, %v55
    %vm1729 = vcmp.eq.s32.totalorder %v1653, %v55
    %vm1730 = vcmp.eq.s32.totalorder %v1656, %v55
    %vm1731 = vcmp.eq.s32.totalorder %v1659, %v55
    %vm1732 = vcmp.eq.s32.totalorder %v1662, %v55
    %vm1733 = vcmp.eq.s32.totalorder %v1665, %v55
    %vm1734 = vcmp.eq.s32.totalorder %v1668, %v55
    %vm1735 = vcmp.eq.s32.totalorder %v1671, %v55
    %vm1736 = vcmp.eq.s32.totalorder %v1674, %v55
    %vm1737 = vcmp.eq.s32.totalorder %v1677, %v55
    %vm1738 = vcmp.eq.s32.totalorder %v1680, %v55
    %vm1739 = vcmp.eq.s32.totalorder %v1683, %v55
    %vm1740 = vcmp.eq.s32.totalorder %v1686, %v55
    %vm1741 = vcmp.eq.s32.totalorder %v1689, %v55
    %vm1742 = vcmp.eq.s32.totalorder %v1692, %v55
    %vm1743 = vcmp.eq.s32.totalorder %v1695, %v55
    %vm1744 = vcmp.eq.s32.totalorder %v1698, %v55
    %vm1745 = vcmp.eq.s32.totalorder %v1701, %v55
    %vm1746 = vcmp.eq.s32.totalorder %v1704, %v55
    %vm1747 = vcmp.eq.s32.totalorder %v1707, %v55
    %vm1748 = vcmp.eq.s32.totalorder %v1710, %v55
    %vm1749 = vcmp.eq.s32.totalorder %v1713, %v55
    %vm1750 = vcmp.eq.s32.totalorder %v1716, %v55
    %vm1751 = vcmp.eq.s32.totalorder %v1719, %v55
    %v1752 = vsel %vm1720, 1, 0
    %v1753 = vsel %vm1721, 1, 0
    %v1754 = vsel %vm1722, 1, 0
    %v1755 = vsel %vm1723, 1, 0
    %v1756 = vsel %vm1724, 1, 0
    %v1757 = vsel %vm1725, 1, 0
    %v1758 = vsel %vm1726, 1, 0
    %v1759 = vsel %vm1727, 1, 0
    %v1760 = vsel %vm1728, 1, 0
    %v1761 = vsel %vm1729, 1, 0
    %v1762 = vsel %vm1730, 1, 0
    %v1763 = vsel %vm1731, 1, 0
    %v1764 = vsel %vm1732, 1, 0
    %v1765 = vsel %vm1733, 1, 0
    %v1766 = vsel %vm1734, 1, 0
    %v1767 = vsel %vm1735, 1, 0
    %v1768 = vsel %vm1736, 1, 0
    %v1769 = vsel %vm1737, 1, 0
    %v1770 = vsel %vm1738, 1, 0
    %v1771 = vsel %vm1739, 1, 0
    %v1772 = vsel %vm1740, 1, 0
    %v1773 = vsel %vm1741, 1, 0
    %v1774 = vsel %vm1742, 1, 0
    %v1775 = vsel %vm1743, 1, 0
    %v1776 = vsel %vm1744, 1, 0
    %v1777 = vsel %vm1745, 1, 0
    %v1778 = vsel %vm1746, 1, 0
    %v1779 = vsel %vm1747, 1, 0
    %v1780 = vsel %vm1748, 1, 0
    %v1781 = vsel %vm1749, 1, 0
    %v1782 = vsel %vm1750, 1, 0
    %v1783 = vsel %vm1751, 1, 0
    %v1784 = vcvt.s32.f32 %v1752
    %v1785 = vcvt.s32.f32 %v1753
    %v1786 = vcvt.s32.f32 %v1754
    %v1787 = vcvt.s32.f32 %v1755
    %v1788 = vcvt.s32.f32 %v1756
    %v1789 = vcvt.s32.f32 %v1757
    %v1790 = vcvt.s32.f32 %v1758
    %v1791 = vcvt.s32.f32 %v1759
    %v1792 = vcvt.s32.f32 %v1760
    %v1793 = vcvt.s32.f32 %v1761
    %v1794 = vcvt.s32.f32 %v1762
    %v1795 = vcvt.s32.f32 %v1763
    %v1796 = vcvt.s32.f32 %v1764
    %v1797 = vcvt.s32.f32 %v1765
    %v1798 = vcvt.s32.f32 %v1766
    %v1799 = vcvt.s32.f32 %v1767
    %v1800 = vcvt.s32.f32 %v1768
    %v1801 = vcvt.s32.f32 %v1769
    %v1802 = vcvt.s32.f32 %v1770
    %v1803 = vcvt.s32.f32 %v1771
    %v1804 = vcvt.s32.f32 %v1772
    %v1805 = vcvt.s32.f32 %v1773
    %v1806 = vcvt.s32.f32 %v1774
    %v1807 = vcvt.s32.f32 %v1775
    %v1808 = vcvt.s32.f32 %v1776
    %v1809 = vcvt.s32.f32 %v1777
    %v1810 = vcvt.s32.f32 %v1778
    %v1811 = vcvt.s32.f32 %v1779
    %v1812 = vcvt.s32.f32 %v1780
    %v1813 = vcvt.s32.f32 %v1781
    %v1814 = vcvt.s32.f32 %v1782
    %v1815 = vcvt.s32.f32 %v1783
    %v1816 = vpack.c.bf16 %v1784, %v1784
    %v1817 = vpack.c.bf16 %v1785, %v1785
    %v1818 = vpack.c.bf16 %v1786, %v1786
    %v1819 = vpack.c.bf16 %v1787, %v1787
    %v1820 = vpack.c.bf16 %v1788, %v1788
    %v1821 = vpack.c.bf16 %v1789, %v1789
    %v1822 = vpack.c.bf16 %v1790, %v1790
    %v1823 = vpack.c.bf16 %v1791, %v1791
    %v1824 = vpack.c.bf16 %v1792, %v1792
    %v1825 = vpack.c.bf16 %v1793, %v1793
    %v1826 = vpack.c.bf16 %v1794, %v1794
    %v1827 = vpack.c.bf16 %v1795, %v1795
    %v1828 = vpack.c.bf16 %v1796, %v1796
    %v1829 = vpack.c.bf16 %v1797, %v1797
    %v1830 = vpack.c.bf16 %v1798, %v1798
    %v1831 = vpack.c.bf16 %v1799, %v1799
    %v1832 = vpack.c.bf16 %v1800, %v1800
    %v1833 = vpack.c.bf16 %v1801, %v1801
    %v1834 = vpack.c.bf16 %v1802, %v1802
    %v1835 = vpack.c.bf16 %v1803, %v1803
    %v1836 = vpack.c.bf16 %v1804, %v1804
    %v1837 = vpack.c.bf16 %v1805, %v1805
    %v1838 = vpack.c.bf16 %v1806, %v1806
    %v1839 = vpack.c.bf16 %v1807, %v1807
    %v1840 = vpack.c.bf16 %v1808, %v1808
    %v1841 = vpack.c.bf16 %v1809, %v1809
    %v1842 = vpack.c.bf16 %v1810, %v1810
    %v1843 = vpack.c.bf16 %v1811, %v1811
    %v1844 = vpack.c.bf16 %v1812, %v1812
    %v1845 = vpack.c.bf16 %v1813, %v1813
    %v1846 = vpack.c.bf16 %v1814, %v1814
    %v1847 = vpack.c.bf16 %v1815, %v1815
    %1848 = vset.pattern.permute.xlu0 8
    %1849 = vperm.xlu0 %1848, %v22
    %v1850 = vpop.permute.xlu0 %1849
    %1851 = vset.pattern.permute.xlu0 8
    %1852 = vperm.xlu0 %1851, %v23
    %v1853 = vpop.permute.xlu0 %1852
    %1854 = vset.pattern.permute.xlu0 8
    %1855 = vperm.xlu0 %1854, %v24
    %v1856 = vpop.permute.xlu0 %1855
    %1857 = vset.pattern.permute.xlu0 8
    %1858 = vperm.xlu0 %1857, %v25
    %v1859 = vpop.permute.xlu0 %1858
    %1860 = vset.pattern.permute.xlu0 8
    %1861 = vperm.xlu0 %1860, %v26
    %v1862 = vpop.permute.xlu0 %1861
    %1863 = vset.pattern.permute.xlu0 8
    %1864 = vperm.xlu0 %1863, %v27
    %v1865 = vpop.permute.xlu0 %1864
    %1866 = vset.pattern.permute.xlu0 8
    %1867 = vperm.xlu0 %1866, %v28
    %v1868 = vpop.permute.xlu0 %1867
    %1869 = vset.pattern.permute.xlu0 8
    %1870 = vperm.xlu0 %1869, %v29
    %v1871 = vpop.permute.xlu0 %1870
    %1872 = vset.pattern.permute.xlu0 8
    %1873 = vperm.xlu0 %1872, %v30
    %v1874 = vpop.permute.xlu0 %1873
    %1875 = vset.pattern.permute.xlu0 8
    %1876 = vperm.xlu0 %1875, %v31
    %v1877 = vpop.permute.xlu0 %1876
    %1878 = vset.pattern.permute.xlu0 8
    %1879 = vperm.xlu0 %1878, %v32
    %v1880 = vpop.permute.xlu0 %1879
    %1881 = vset.pattern.permute.xlu0 8
    %1882 = vperm.xlu0 %1881, %v33
    %v1883 = vpop.permute.xlu0 %1882
    %1884 = vset.pattern.permute.xlu0 8
    %1885 = vperm.xlu0 %1884, %v34
    %v1886 = vpop.permute.xlu0 %1885
    %1887 = vset.pattern.permute.xlu0 8
    %1888 = vperm.xlu0 %1887, %v35
    %v1889 = vpop.permute.xlu0 %1888
    %1890 = vset.pattern.permute.xlu0 8
    %1891 = vperm.xlu0 %1890, %v36
    %v1892 = vpop.permute.xlu0 %1891
    %1893 = vset.pattern.permute.xlu0 8
    %1894 = vperm.xlu0 %1893, %v37
    %v1895 = vpop.permute.xlu0 %1894
    %1896 = vset.pattern.permute.xlu0 8
    %1897 = vperm.xlu0 %1896, %v38
    %v1898 = vpop.permute.xlu0 %1897
    %1899 = vset.pattern.permute.xlu0 8
    %1900 = vperm.xlu0 %1899, %v39
    %v1901 = vpop.permute.xlu0 %1900
    %1902 = vset.pattern.permute.xlu0 8
    %1903 = vperm.xlu0 %1902, %v40
    %v1904 = vpop.permute.xlu0 %1903
    %1905 = vset.pattern.permute.xlu0 8
    %1906 = vperm.xlu0 %1905, %v41
    %v1907 = vpop.permute.xlu0 %1906
    %1908 = vset.pattern.permute.xlu0 8
    %1909 = vperm.xlu0 %1908, %v42
    %v1910 = vpop.permute.xlu0 %1909
    %1911 = vset.pattern.permute.xlu0 8
    %1912 = vperm.xlu0 %1911, %v43
    %v1913 = vpop.permute.xlu0 %1912
    %1914 = vset.pattern.permute.xlu0 8
    %1915 = vperm.xlu0 %1914, %v44
    %v1916 = vpop.permute.xlu0 %1915
    %1917 = vset.pattern.permute.xlu0 8
    %1918 = vperm.xlu0 %1917, %v45
    %v1919 = vpop.permute.xlu0 %1918
    %1920 = vset.pattern.permute.xlu0 8
    %1921 = vperm.xlu0 %1920, %v46
    %v1922 = vpop.permute.xlu0 %1921
    %1923 = vset.pattern.permute.xlu0 8
    %1924 = vperm.xlu0 %1923, %v47
    %v1925 = vpop.permute.xlu0 %1924
    %1926 = vset.pattern.permute.xlu0 8
    %1927 = vperm.xlu0 %1926, %v48
    %v1928 = vpop.permute.xlu0 %1927
    %1929 = vset.pattern.permute.xlu0 8
    %1930 = vperm.xlu0 %1929, %v49
    %v1931 = vpop.permute.xlu0 %1930
    %1932 = vset.pattern.permute.xlu0 8
    %1933 = vperm.xlu0 %1932, %v50
    %v1934 = vpop.permute.xlu0 %1933
    %1935 = vset.pattern.permute.xlu0 8
    %1936 = vperm.xlu0 %1935, %v51
    %v1937 = vpop.permute.xlu0 %1936
    %1938 = vset.pattern.permute.xlu0 8
    %1939 = vperm.xlu0 %1938, %v52
    %v1940 = vpop.permute.xlu0 %1939
    %1941 = vset.pattern.permute.xlu0 8
    %1942 = vperm.xlu0 %1941, %v53
    %v1943 = vpop.permute.xlu0 %1942
    %vm1944 = vcmp.eq.s32.totalorder %v1850, %v55
    %vm1945 = vcmp.eq.s32.totalorder %v1853, %v55
    %vm1946 = vcmp.eq.s32.totalorder %v1856, %v55
    %vm1947 = vcmp.eq.s32.totalorder %v1859, %v55
    %vm1948 = vcmp.eq.s32.totalorder %v1862, %v55
    %vm1949 = vcmp.eq.s32.totalorder %v1865, %v55
    %vm1950 = vcmp.eq.s32.totalorder %v1868, %v55
    %vm1951 = vcmp.eq.s32.totalorder %v1871, %v55
    %vm1952 = vcmp.eq.s32.totalorder %v1874, %v55
    %vm1953 = vcmp.eq.s32.totalorder %v1877, %v55
    %vm1954 = vcmp.eq.s32.totalorder %v1880, %v55
    %vm1955 = vcmp.eq.s32.totalorder %v1883, %v55
    %vm1956 = vcmp.eq.s32.totalorder %v1886, %v55
    %vm1957 = vcmp.eq.s32.totalorder %v1889, %v55
    %vm1958 = vcmp.eq.s32.totalorder %v1892, %v55
    %vm1959 = vcmp.eq.s32.totalorder %v1895, %v55
    %vm1960 = vcmp.eq.s32.totalorder %v1898, %v55
    %vm1961 = vcmp.eq.s32.totalorder %v1901, %v55
    %vm1962 = vcmp.eq.s32.totalorder %v1904, %v55
    %vm1963 = vcmp.eq.s32.totalorder %v1907, %v55
    %vm1964 = vcmp.eq.s32.totalorder %v1910, %v55
    %vm1965 = vcmp.eq.s32.totalorder %v1913, %v55
    %vm1966 = vcmp.eq.s32.totalorder %v1916, %v55
    %vm1967 = vcmp.eq.s32.totalorder %v1919, %v55
    %vm1968 = vcmp.eq.s32.totalorder %v1922, %v55
    %vm1969 = vcmp.eq.s32.totalorder %v1925, %v55
    %vm1970 = vcmp.eq.s32.totalorder %v1928, %v55
    %vm1971 = vcmp.eq.s32.totalorder %v1931, %v55
    %vm1972 = vcmp.eq.s32.totalorder %v1934, %v55
    %vm1973 = vcmp.eq.s32.totalorder %v1937, %v55
    %vm1974 = vcmp.eq.s32.totalorder %v1940, %v55
    %vm1975 = vcmp.eq.s32.totalorder %v1943, %v55
    %v1976 = vsel %vm1944, 1, 0
    %v1977 = vsel %vm1945, 1, 0
    %v1978 = vsel %vm1946, 1, 0
    %v1979 = vsel %vm1947, 1, 0
    %v1980 = vsel %vm1948, 1, 0
    %v1981 = vsel %vm1949, 1, 0
    %v1982 = vsel %vm1950, 1, 0
    %v1983 = vsel %vm1951, 1, 0
    %v1984 = vsel %vm1952, 1, 0
    %v1985 = vsel %vm1953, 1, 0
    %v1986 = vsel %vm1954, 1, 0
    %v1987 = vsel %vm1955, 1, 0
    %v1988 = vsel %vm1956, 1, 0
    %v1989 = vsel %vm1957, 1, 0
    %v1990 = vsel %vm1958, 1, 0
    %v1991 = vsel %vm1959, 1, 0
    %v1992 = vsel %vm1960, 1, 0
    %v1993 = vsel %vm1961, 1, 0
    %v1994 = vsel %vm1962, 1, 0
    %v1995 = vsel %vm1963, 1, 0
    %v1996 = vsel %vm1964, 1, 0
    %v1997 = vsel %vm1965, 1, 0
    %v1998 = vsel %vm1966, 1, 0
    %v1999 = vsel %vm1967, 1, 0
    %v2000 = vsel %vm1968, 1, 0
    %v2001 = vsel %vm1969, 1, 0
    %v2002 = vsel %vm1970, 1, 0
    %v2003 = vsel %vm1971, 1, 0
    %v2004 = vsel %vm1972, 1, 0
    %v2005 = vsel %vm1973, 1, 0
    %v2006 = vsel %vm1974, 1, 0
    %v2007 = vsel %vm1975, 1, 0
    %v2008 = vcvt.s32.f32 %v1976
    %v2009 = vcvt.s32.f32 %v1977
    %v2010 = vcvt.s32.f32 %v1978
    %v2011 = vcvt.s32.f32 %v1979
    %v2012 = vcvt.s32.f32 %v1980
    %v2013 = vcvt.s32.f32 %v1981
    %v2014 = vcvt.s32.f32 %v1982
    %v2015 = vcvt.s32.f32 %v1983
    %v2016 = vcvt.s32.f32 %v1984
    %v2017 = vcvt.s32.f32 %v1985
    %v2018 = vcvt.s32.f32 %v1986
    %v2019 = vcvt.s32.f32 %v1987
    %v2020 = vcvt.s32.f32 %v1988
    %v2021 = vcvt.s32.f32 %v1989
    %v2022 = vcvt.s32.f32 %v1990
    %v2023 = vcvt.s32.f32 %v1991
    %v2024 = vcvt.s32.f32 %v1992
    %v2025 = vcvt.s32.f32 %v1993
    %v2026 = vcvt.s32.f32 %v1994
    %v2027 = vcvt.s32.f32 %v1995
    %v2028 = vcvt.s32.f32 %v1996
    %v2029 = vcvt.s32.f32 %v1997
    %v2030 = vcvt.s32.f32 %v1998
    %v2031 = vcvt.s32.f32 %v1999
    %v2032 = vcvt.s32.f32 %v2000
    %v2033 = vcvt.s32.f32 %v2001
    %v2034 = vcvt.s32.f32 %v2002
    %v2035 = vcvt.s32.f32 %v2003
    %v2036 = vcvt.s32.f32 %v2004
    %v2037 = vcvt.s32.f32 %v2005
    %v2038 = vcvt.s32.f32 %v2006
    %v2039 = vcvt.s32.f32 %v2007
    %v2040 = vpack.c.bf16 %v2008, %v2008
    %v2041 = vpack.c.bf16 %v2009, %v2009
    %v2042 = vpack.c.bf16 %v2010, %v2010
    %v2043 = vpack.c.bf16 %v2011, %v2011
    %v2044 = vpack.c.bf16 %v2012, %v2012
    %v2045 = vpack.c.bf16 %v2013, %v2013
    %v2046 = vpack.c.bf16 %v2014, %v2014
    %v2047 = vpack.c.bf16 %v2015, %v2015
    %v2048 = vpack.c.bf16 %v2016, %v2016
    %v2049 = vpack.c.bf16 %v2017, %v2017
    %v2050 = vpack.c.bf16 %v2018, %v2018
    %v2051 = vpack.c.bf16 %v2019, %v2019
    %v2052 = vpack.c.bf16 %v2020, %v2020
    %v2053 = vpack.c.bf16 %v2021, %v2021
    %v2054 = vpack.c.bf16 %v2022, %v2022
    %v2055 = vpack.c.bf16 %v2023, %v2023
    %v2056 = vpack.c.bf16 %v2024, %v2024
    %v2057 = vpack.c.bf16 %v2025, %v2025
    %v2058 = vpack.c.bf16 %v2026, %v2026
    %v2059 = vpack.c.bf16 %v2027, %v2027
    %v2060 = vpack.c.bf16 %v2028, %v2028
    %v2061 = vpack.c.bf16 %v2029, %v2029
    %v2062 = vpack.c.bf16 %v2030, %v2030
    %v2063 = vpack.c.bf16 %v2031, %v2031
    %v2064 = vpack.c.bf16 %v2032, %v2032
    %v2065 = vpack.c.bf16 %v2033, %v2033
    %v2066 = vpack.c.bf16 %v2034, %v2034
    %v2067 = vpack.c.bf16 %v2035, %v2035
    %v2068 = vpack.c.bf16 %v2036, %v2036
    %v2069 = vpack.c.bf16 %v2037, %v2037
    %v2070 = vpack.c.bf16 %v2038, %v2038
    %v2071 = vpack.c.bf16 %v2039, %v2039
    %2072 = vset.pattern.permute.xlu0 9
    %2073 = vperm.xlu0 %2072, %v22
    %v2074 = vpop.permute.xlu0 %2073
    %2075 = vset.pattern.permute.xlu0 9
    %2076 = vperm.xlu0 %2075, %v23
    %v2077 = vpop.permute.xlu0 %2076
    %2078 = vset.pattern.permute.xlu0 9
    %2079 = vperm.xlu0 %2078, %v24
    %v2080 = vpop.permute.xlu0 %2079
    %2081 = vset.pattern.permute.xlu0 9
    %2082 = vperm.xlu0 %2081, %v25
    %v2083 = vpop.permute.xlu0 %2082
    %2084 = vset.pattern.permute.xlu0 9
    %2085 = vperm.xlu0 %2084, %v26
    %v2086 = vpop.permute.xlu0 %2085
    %2087 = vset.pattern.permute.xlu0 9
    %2088 = vperm.xlu0 %2087, %v27
    %v2089 = vpop.permute.xlu0 %2088
    %2090 = vset.pattern.permute.xlu0 9
    %2091 = vperm.xlu0 %2090, %v28
    %v2092 = vpop.permute.xlu0 %2091
    %2093 = vset.pattern.permute.xlu0 9
    %2094 = vperm.xlu0 %2093, %v29
    %v2095 = vpop.permute.xlu0 %2094
    %2096 = vset.pattern.permute.xlu0 9
    %2097 = vperm.xlu0 %2096, %v30
    %v2098 = vpop.permute.xlu0 %2097
    %2099 = vset.pattern.permute.xlu0 9
    %2100 = vperm.xlu0 %2099, %v31
    %v2101 = vpop.permute.xlu0 %2100
    %2102 = vset.pattern.permute.xlu0 9
    %2103 = vperm.xlu0 %2102, %v32
    %v2104 = vpop.permute.xlu0 %2103
    %2105 = vset.pattern.permute.xlu0 9
    %2106 = vperm.xlu0 %2105, %v33
    %v2107 = vpop.permute.xlu0 %2106
    %2108 = vset.pattern.permute.xlu0 9
    %2109 = vperm.xlu0 %2108, %v34
    %v2110 = vpop.permute.xlu0 %2109
    %2111 = vset.pattern.permute.xlu0 9
    %2112 = vperm.xlu0 %2111, %v35
    %v2113 = vpop.permute.xlu0 %2112
    %2114 = vset.pattern.permute.xlu0 9
    %2115 = vperm.xlu0 %2114, %v36
    %v2116 = vpop.permute.xlu0 %2115
    %2117 = vset.pattern.permute.xlu0 9
    %2118 = vperm.xlu0 %2117, %v37
    %v2119 = vpop.permute.xlu0 %2118
    %2120 = vset.pattern.permute.xlu0 9
    %2121 = vperm.xlu0 %2120, %v38
    %v2122 = vpop.permute.xlu0 %2121
    %2123 = vset.pattern.permute.xlu0 9
    %2124 = vperm.xlu0 %2123, %v39
    %v2125 = vpop.permute.xlu0 %2124
    %2126 = vset.pattern.permute.xlu0 9
    %2127 = vperm.xlu0 %2126, %v40
    %v2128 = vpop.permute.xlu0 %2127
    %2129 = vset.pattern.permute.xlu0 9
    %2130 = vperm.xlu0 %2129, %v41
    %v2131 = vpop.permute.xlu0 %2130
    %2132 = vset.pattern.permute.xlu0 9
    %2133 = vperm.xlu0 %2132, %v42
    %v2134 = vpop.permute.xlu0 %2133
    %2135 = vset.pattern.permute.xlu0 9
    %2136 = vperm.xlu0 %2135, %v43
    %v2137 = vpop.permute.xlu0 %2136
    %2138 = vset.pattern.permute.xlu0 9
    %2139 = vperm.xlu0 %2138, %v44
    %v2140 = vpop.permute.xlu0 %2139
    %2141 = vset.pattern.permute.xlu0 9
    %2142 = vperm.xlu0 %2141, %v45
    %v2143 = vpop.permute.xlu0 %2142
    %2144 = vset.pattern.permute.xlu0 9
    %2145 = vperm.xlu0 %2144, %v46
    %v2146 = vpop.permute.xlu0 %2145
    %2147 = vset.pattern.permute.xlu0 9
    %2148 = vperm.xlu0 %2147, %v47
    %v2149 = vpop.permute.xlu0 %2148
    %2150 = vset.pattern.permute.xlu0 9
    %2151 = vperm.xlu0 %2150, %v48
    %v2152 = vpop.permute.xlu0 %2151
    %2153 = vset.pattern.permute.xlu0 9
    %2154 = vperm.xlu0 %2153, %v49
    %v2155 = vpop.permute.xlu0 %2154
    %2156 = vset.pattern.permute.xlu0 9
    %2157 = vperm.xlu0 %2156, %v50
    %v2158 = vpop.permute.xlu0 %2157
    %2159 = vset.pattern.permute.xlu0 9
    %2160 = vperm.xlu0 %2159, %v51
    %v2161 = vpop.permute.xlu0 %2160
    %2162 = vset.pattern.permute.xlu0 9
    %2163 = vperm.xlu0 %2162, %v52
    %v2164 = vpop.permute.xlu0 %2163
    %2165 = vset.pattern.permute.xlu0 9
    %2166 = vperm.xlu0 %2165, %v53
    %v2167 = vpop.permute.xlu0 %2166
    %vm2168 = vcmp.eq.s32.totalorder %v2074, %v55
    %vm2169 = vcmp.eq.s32.totalorder %v2077, %v55
    %vm2170 = vcmp.eq.s32.totalorder %v2080, %v55
    %vm2171 = vcmp.eq.s32.totalorder %v2083, %v55
    %vm2172 = vcmp.eq.s32.totalorder %v2086, %v55
    %vm2173 = vcmp.eq.s32.totalorder %v2089, %v55
    %vm2174 = vcmp.eq.s32.totalorder %v2092, %v55
    %vm2175 = vcmp.eq.s32.totalorder %v2095, %v55
    %vm2176 = vcmp.eq.s32.totalorder %v2098, %v55
    %vm2177 = vcmp.eq.s32.totalorder %v2101, %v55
    %vm2178 = vcmp.eq.s32.totalorder %v2104, %v55
    %vm2179 = vcmp.eq.s32.totalorder %v2107, %v55
    %vm2180 = vcmp.eq.s32.totalorder %v2110, %v55
    %vm2181 = vcmp.eq.s32.totalorder %v2113, %v55
    %vm2182 = vcmp.eq.s32.totalorder %v2116, %v55
    %vm2183 = vcmp.eq.s32.totalorder %v2119, %v55
    %vm2184 = vcmp.eq.s32.totalorder %v2122, %v55
    %vm2185 = vcmp.eq.s32.totalorder %v2125, %v55
    %vm2186 = vcmp.eq.s32.totalorder %v2128, %v55
    %vm2187 = vcmp.eq.s32.totalorder %v2131, %v55
    %vm2188 = vcmp.eq.s32.totalorder %v2134, %v55
    %vm2189 = vcmp.eq.s32.totalorder %v2137, %v55
    %vm2190 = vcmp.eq.s32.totalorder %v2140, %v55
    %vm2191 = vcmp.eq.s32.totalorder %v2143, %v55
    %vm2192 = vcmp.eq.s32.totalorder %v2146, %v55
    %vm2193 = vcmp.eq.s32.totalorder %v2149, %v55
    %vm2194 = vcmp.eq.s32.totalorder %v2152, %v55
    %vm2195 = vcmp.eq.s32.totalorder %v2155, %v55
    %vm2196 = vcmp.eq.s32.totalorder %v2158, %v55
    %vm2197 = vcmp.eq.s32.totalorder %v2161, %v55
    %vm2198 = vcmp.eq.s32.totalorder %v2164, %v55
    %vm2199 = vcmp.eq.s32.totalorder %v2167, %v55
    %v2200 = vsel %vm2168, 1, 0
    %v2201 = vsel %vm2169, 1, 0
    %v2202 = vsel %vm2170, 1, 0
    %v2203 = vsel %vm2171, 1, 0
    %v2204 = vsel %vm2172, 1, 0
    %v2205 = vsel %vm2173, 1, 0
    %v2206 = vsel %vm2174, 1, 0
    %v2207 = vsel %vm2175, 1, 0
    %v2208 = vsel %vm2176, 1, 0
    %v2209 = vsel %vm2177, 1, 0
    %v2210 = vsel %vm2178, 1, 0
    %v2211 = vsel %vm2179, 1, 0
    %v2212 = vsel %vm2180, 1, 0
    %v2213 = vsel %vm2181, 1, 0
    %v2214 = vsel %vm2182, 1, 0
    %v2215 = vsel %vm2183, 1, 0
    %v2216 = vsel %vm2184, 1, 0
    %v2217 = vsel %vm2185, 1, 0
    %v2218 = vsel %vm2186, 1, 0
    %v2219 = vsel %vm2187, 1, 0
    %v2220 = vsel %vm2188, 1, 0
    %v2221 = vsel %vm2189, 1, 0
    %v2222 = vsel %vm2190, 1, 0
    %v2223 = vsel %vm2191, 1, 0
    %v2224 = vsel %vm2192, 1, 0
    %v2225 = vsel %vm2193, 1, 0
    %v2226 = vsel %vm2194, 1, 0
    %v2227 = vsel %vm2195, 1, 0
    %v2228 = vsel %vm2196, 1, 0
    %v2229 = vsel %vm2197, 1, 0
    %v2230 = vsel %vm2198, 1, 0
    %v2231 = vsel %vm2199, 1, 0
    %v2232 = vcvt.s32.f32 %v2200
    %v2233 = vcvt.s32.f32 %v2201
    %v2234 = vcvt.s32.f32 %v2202
    %v2235 = vcvt.s32.f32 %v2203
    %v2236 = vcvt.s32.f32 %v2204
    %v2237 = vcvt.s32.f32 %v2205
    %v2238 = vcvt.s32.f32 %v2206
    %v2239 = vcvt.s32.f32 %v2207
    %v2240 = vcvt.s32.f32 %v2208
    %v2241 = vcvt.s32.f32 %v2209
    %v2242 = vcvt.s32.f32 %v2210
    %v2243 = vcvt.s32.f32 %v2211
    %v2244 = vcvt.s32.f32 %v2212
    %v2245 = vcvt.s32.f32 %v2213
    %v2246 = vcvt.s32.f32 %v2214
    %v2247 = vcvt.s32.f32 %v2215
    %v2248 = vcvt.s32.f32 %v2216
    %v2249 = vcvt.s32.f32 %v2217
    %v2250 = vcvt.s32.f32 %v2218
    %v2251 = vcvt.s32.f32 %v2219
    %v2252 = vcvt.s32.f32 %v2220
    %v2253 = vcvt.s32.f32 %v2221
    %v2254 = vcvt.s32.f32 %v2222
    %v2255 = vcvt.s32.f32 %v2223
    %v2256 = vcvt.s32.f32 %v2224
    %v2257 = vcvt.s32.f32 %v2225
    %v2258 = vcvt.s32.f32 %v2226
    %v2259 = vcvt.s32.f32 %v2227
    %v2260 = vcvt.s32.f32 %v2228
    %v2261 = vcvt.s32.f32 %v2229
    %v2262 = vcvt.s32.f32 %v2230
    %v2263 = vcvt.s32.f32 %v2231
    %v2264 = vpack.c.bf16 %v2232, %v2232
    %v2265 = vpack.c.bf16 %v2233, %v2233
    %v2266 = vpack.c.bf16 %v2234, %v2234
    %v2267 = vpack.c.bf16 %v2235, %v2235
    %v2268 = vpack.c.bf16 %v2236, %v2236
    %v2269 = vpack.c.bf16 %v2237, %v2237
    %v2270 = vpack.c.bf16 %v2238, %v2238
    %v2271 = vpack.c.bf16 %v2239, %v2239
    %v2272 = vpack.c.bf16 %v2240, %v2240
    %v2273 = vpack.c.bf16 %v2241, %v2241
    %v2274 = vpack.c.bf16 %v2242, %v2242
    %v2275 = vpack.c.bf16 %v2243, %v2243
    %v2276 = vpack.c.bf16 %v2244, %v2244
    %v2277 = vpack.c.bf16 %v2245, %v2245
    %v2278 = vpack.c.bf16 %v2246, %v2246
    %v2279 = vpack.c.bf16 %v2247, %v2247
    %v2280 = vpack.c.bf16 %v2248, %v2248
    %v2281 = vpack.c.bf16 %v2249, %v2249
    %v2282 = vpack.c.bf16 %v2250, %v2250
    %v2283 = vpack.c.bf16 %v2251, %v2251
    %v2284 = vpack.c.bf16 %v2252, %v2252
    %v2285 = vpack.c.bf16 %v2253, %v2253
    %v2286 = vpack.c.bf16 %v2254, %v2254
    %v2287 = vpack.c.bf16 %v2255, %v2255
    %v2288 = vpack.c.bf16 %v2256, %v2256
    %v2289 = vpack.c.bf16 %v2257, %v2257
    %v2290 = vpack.c.bf16 %v2258, %v2258
    %v2291 = vpack.c.bf16 %v2259, %v2259
    %v2292 = vpack.c.bf16 %v2260, %v2260
    %v2293 = vpack.c.bf16 %v2261, %v2261
    %v2294 = vpack.c.bf16 %v2262, %v2262
    %v2295 = vpack.c.bf16 %v2263, %v2263
    %2296 = vset.pattern.permute.xlu0 10
    %2297 = vperm.xlu0 %2296, %v22
    %v2298 = vpop.permute.xlu0 %2297
    %2299 = vset.pattern.permute.xlu0 10
    %2300 = vperm.xlu0 %2299, %v23
    %v2301 = vpop.permute.xlu0 %2300
    %2302 = vset.pattern.permute.xlu0 10
    %2303 = vperm.xlu0 %2302, %v24
    %v2304 = vpop.permute.xlu0 %2303
    %2305 = vset.pattern.permute.xlu0 10
    %2306 = vperm.xlu0 %2305, %v25
    %v2307 = vpop.permute.xlu0 %2306
    %2308 = vset.pattern.permute.xlu0 10
    %2309 = vperm.xlu0 %2308, %v26
    %v2310 = vpop.permute.xlu0 %2309
    %2311 = vset.pattern.permute.xlu0 10
    %2312 = vperm.xlu0 %2311, %v27
    %v2313 = vpop.permute.xlu0 %2312
    %2314 = vset.pattern.permute.xlu0 10
    %2315 = vperm.xlu0 %2314, %v28
    %v2316 = vpop.permute.xlu0 %2315
    %2317 = vset.pattern.permute.xlu0 10
    %2318 = vperm.xlu0 %2317, %v29
    %v2319 = vpop.permute.xlu0 %2318
    %2320 = vset.pattern.permute.xlu0 10
    %2321 = vperm.xlu0 %2320, %v30
    %v2322 = vpop.permute.xlu0 %2321
    %2323 = vset.pattern.permute.xlu0 10
    %2324 = vperm.xlu0 %2323, %v31
    %v2325 = vpop.permute.xlu0 %2324
    %2326 = vset.pattern.permute.xlu0 10
    %2327 = vperm.xlu0 %2326, %v32
    %v2328 = vpop.permute.xlu0 %2327
    %2329 = vset.pattern.permute.xlu0 10
    %2330 = vperm.xlu0 %2329, %v33
    %v2331 = vpop.permute.xlu0 %2330
    %2332 = vset.pattern.permute.xlu0 10
    %2333 = vperm.xlu0 %2332, %v34
    %v2334 = vpop.permute.xlu0 %2333
    %2335 = vset.pattern.permute.xlu0 10
    %2336 = vperm.xlu0 %2335, %v35
    %v2337 = vpop.permute.xlu0 %2336
    %2338 = vset.pattern.permute.xlu0 10
    %2339 = vperm.xlu0 %2338, %v36
    %v2340 = vpop.permute.xlu0 %2339
    %2341 = vset.pattern.permute.xlu0 10
    %2342 = vperm.xlu0 %2341, %v37
    %v2343 = vpop.permute.xlu0 %2342
    %2344 = vset.pattern.permute.xlu0 10
    %2345 = vperm.xlu0 %2344, %v38
    %v2346 = vpop.permute.xlu0 %2345
    %2347 = vset.pattern.permute.xlu0 10
    %2348 = vperm.xlu0 %2347, %v39
    %v2349 = vpop.permute.xlu0 %2348
    %2350 = vset.pattern.permute.xlu0 10
    %2351 = vperm.xlu0 %2350, %v40
    %v2352 = vpop.permute.xlu0 %2351
    %2353 = vset.pattern.permute.xlu0 10
    %2354 = vperm.xlu0 %2353, %v41
    %v2355 = vpop.permute.xlu0 %2354
    %2356 = vset.pattern.permute.xlu0 10
    %2357 = vperm.xlu0 %2356, %v42
    %v2358 = vpop.permute.xlu0 %2357
    %2359 = vset.pattern.permute.xlu0 10
    %2360 = vperm.xlu0 %2359, %v43
    %v2361 = vpop.permute.xlu0 %2360
    %2362 = vset.pattern.permute.xlu0 10
    %2363 = vperm.xlu0 %2362, %v44
    %v2364 = vpop.permute.xlu0 %2363
    %2365 = vset.pattern.permute.xlu0 10
    %2366 = vperm.xlu0 %2365, %v45
    %v2367 = vpop.permute.xlu0 %2366
    %2368 = vset.pattern.permute.xlu0 10
    %2369 = vperm.xlu0 %2368, %v46
    %v2370 = vpop.permute.xlu0 %2369
    %2371 = vset.pattern.permute.xlu0 10
    %2372 = vperm.xlu0 %2371, %v47
    %v2373 = vpop.permute.xlu0 %2372
    %2374 = vset.pattern.permute.xlu0 10
    %2375 = vperm.xlu0 %2374, %v48
    %v2376 = vpop.permute.xlu0 %2375
    %2377 = vset.pattern.permute.xlu0 10
    %2378 = vperm.xlu0 %2377, %v49
    %v2379 = vpop.permute.xlu0 %2378
    %2380 = vset.pattern.permute.xlu0 10
    %2381 = vperm.xlu0 %2380, %v50
    %v2382 = vpop.permute.xlu0 %2381
    %2383 = vset.pattern.permute.xlu0 10
    %2384 = vperm.xlu0 %2383, %v51
    %v2385 = vpop.permute.xlu0 %2384
    %2386 = vset.pattern.permute.xlu0 10
    %2387 = vperm.xlu0 %2386, %v52
    %v2388 = vpop.permute.xlu0 %2387
    %2389 = vset.pattern.permute.xlu0 10
    %2390 = vperm.xlu0 %2389, %v53
    %v2391 = vpop.permute.xlu0 %2390
    %vm2392 = vcmp.eq.s32.totalorder %v2298, %v55
    %vm2393 = vcmp.eq.s32.totalorder %v2301, %v55
    %vm2394 = vcmp.eq.s32.totalorder %v2304, %v55
    %vm2395 = vcmp.eq.s32.totalorder %v2307, %v55
    %vm2396 = vcmp.eq.s32.totalorder %v2310, %v55
    %vm2397 = vcmp.eq.s32.totalorder %v2313, %v55
    %vm2398 = vcmp.eq.s32.totalorder %v2316, %v55
    %vm2399 = vcmp.eq.s32.totalorder %v2319, %v55
    %vm2400 = vcmp.eq.s32.totalorder %v2322, %v55
    %vm2401 = vcmp.eq.s32.totalorder %v2325, %v55
    %vm2402 = vcmp.eq.s32.totalorder %v2328, %v55
    %vm2403 = vcmp.eq.s32.totalorder %v2331, %v55
    %vm2404 = vcmp.eq.s32.totalorder %v2334, %v55
    %vm2405 = vcmp.eq.s32.totalorder %v2337, %v55
    %vm2406 = vcmp.eq.s32.totalorder %v2340, %v55
    %vm2407 = vcmp.eq.s32.totalorder %v2343, %v55
    %vm2408 = vcmp.eq.s32.totalorder %v2346, %v55
    %vm2409 = vcmp.eq.s32.totalorder %v2349, %v55
    %vm2410 = vcmp.eq.s32.totalorder %v2352, %v55
    %vm2411 = vcmp.eq.s32.totalorder %v2355, %v55
    %vm2412 = vcmp.eq.s32.totalorder %v2358, %v55
    %vm2413 = vcmp.eq.s32.totalorder %v2361, %v55
    %vm2414 = vcmp.eq.s32.totalorder %v2364, %v55
    %vm2415 = vcmp.eq.s32.totalorder %v2367, %v55
    %vm2416 = vcmp.eq.s32.totalorder %v2370, %v55
    %vm2417 = vcmp.eq.s32.totalorder %v2373, %v55
    %vm2418 = vcmp.eq.s32.totalorder %v2376, %v55
    %vm2419 = vcmp.eq.s32.totalorder %v2379, %v55
    %vm2420 = vcmp.eq.s32.totalorder %v2382, %v55
    %vm2421 = vcmp.eq.s32.totalorder %v2385, %v55
    %vm2422 = vcmp.eq.s32.totalorder %v2388, %v55
    %vm2423 = vcmp.eq.s32.totalorder %v2391, %v55
    %v2424 = vsel %vm2392, 1, 0
    %v2425 = vsel %vm2393, 1, 0
    %v2426 = vsel %vm2394, 1, 0
    %v2427 = vsel %vm2395, 1, 0
    %v2428 = vsel %vm2396, 1, 0
    %v2429 = vsel %vm2397, 1, 0
    %v2430 = vsel %vm2398, 1, 0
    %v2431 = vsel %vm2399, 1, 0
    %v2432 = vsel %vm2400, 1, 0
    %v2433 = vsel %vm2401, 1, 0
    %v2434 = vsel %vm2402, 1, 0
    %v2435 = vsel %vm2403, 1, 0
    %v2436 = vsel %vm2404, 1, 0
    %v2437 = vsel %vm2405, 1, 0
    %v2438 = vsel %vm2406, 1, 0
    %v2439 = vsel %vm2407, 1, 0
    %v2440 = vsel %vm2408, 1, 0
    %v2441 = vsel %vm2409, 1, 0
    %v2442 = vsel %vm2410, 1, 0
    %v2443 = vsel %vm2411, 1, 0
    %v2444 = vsel %vm2412, 1, 0
    %v2445 = vsel %vm2413, 1, 0
    %v2446 = vsel %vm2414, 1, 0
    %v2447 = vsel %vm2415, 1, 0
    %v2448 = vsel %vm2416, 1, 0
    %v2449 = vsel %vm2417, 1, 0
    %v2450 = vsel %vm2418, 1, 0
    %v2451 = vsel %vm2419, 1, 0
    %v2452 = vsel %vm2420, 1, 0
    %v2453 = vsel %vm2421, 1, 0
    %v2454 = vsel %vm2422, 1, 0
    %v2455 = vsel %vm2423, 1, 0
    %v2456 = vcvt.s32.f32 %v2424
    %v2457 = vcvt.s32.f32 %v2425
    %v2458 = vcvt.s32.f32 %v2426
    %v2459 = vcvt.s32.f32 %v2427
    %v2460 = vcvt.s32.f32 %v2428
    %v2461 = vcvt.s32.f32 %v2429
    %v2462 = vcvt.s32.f32 %v2430
    %v2463 = vcvt.s32.f32 %v2431
    %v2464 = vcvt.s32.f32 %v2432
    %v2465 = vcvt.s32.f32 %v2433
    %v2466 = vcvt.s32.f32 %v2434
    %v2467 = vcvt.s32.f32 %v2435
    %v2468 = vcvt.s32.f32 %v2436
    %v2469 = vcvt.s32.f32 %v2437
    %v2470 = vcvt.s32.f32 %v2438
    %v2471 = vcvt.s32.f32 %v2439
    %v2472 = vcvt.s32.f32 %v2440
    %v2473 = vcvt.s32.f32 %v2441
    %v2474 = vcvt.s32.f32 %v2442
    %v2475 = vcvt.s32.f32 %v2443
    %v2476 = vcvt.s32.f32 %v2444
    %v2477 = vcvt.s32.f32 %v2445
    %v2478 = vcvt.s32.f32 %v2446
    %v2479 = vcvt.s32.f32 %v2447
    %v2480 = vcvt.s32.f32 %v2448
    %v2481 = vcvt.s32.f32 %v2449
    %v2482 = vcvt.s32.f32 %v2450
    %v2483 = vcvt.s32.f32 %v2451
    %v2484 = vcvt.s32.f32 %v2452
    %v2485 = vcvt.s32.f32 %v2453
    %v2486 = vcvt.s32.f32 %v2454
    %v2487 = vcvt.s32.f32 %v2455
    %v2488 = vpack.c.bf16 %v2456, %v2456
    %v2489 = vpack.c.bf16 %v2457, %v2457
    %v2490 = vpack.c.bf16 %v2458, %v2458
    %v2491 = vpack.c.bf16 %v2459, %v2459
    %v2492 = vpack.c.bf16 %v2460, %v2460
    %v2493 = vpack.c.bf16 %v2461, %v2461
    %v2494 = vpack.c.bf16 %v2462, %v2462
    %v2495 = vpack.c.bf16 %v2463, %v2463
    %v2496 = vpack.c.bf16 %v2464, %v2464
    %v2497 = vpack.c.bf16 %v2465, %v2465
    %v2498 = vpack.c.bf16 %v2466, %v2466
    %v2499 = vpack.c.bf16 %v2467, %v2467
    %v2500 = vpack.c.bf16 %v2468, %v2468
    %v2501 = vpack.c.bf16 %v2469, %v2469
    %v2502 = vpack.c.bf16 %v2470, %v2470
    %v2503 = vpack.c.bf16 %v2471, %v2471
    %v2504 = vpack.c.bf16 %v2472, %v2472
    %v2505 = vpack.c.bf16 %v2473, %v2473
    %v2506 = vpack.c.bf16 %v2474, %v2474
    %v2507 = vpack.c.bf16 %v2475, %v2475
    %v2508 = vpack.c.bf16 %v2476, %v2476
    %v2509 = vpack.c.bf16 %v2477, %v2477
    %v2510 = vpack.c.bf16 %v2478, %v2478
    %v2511 = vpack.c.bf16 %v2479, %v2479
    %v2512 = vpack.c.bf16 %v2480, %v2480
    %v2513 = vpack.c.bf16 %v2481, %v2481
    %v2514 = vpack.c.bf16 %v2482, %v2482
    %v2515 = vpack.c.bf16 %v2483, %v2483
    %v2516 = vpack.c.bf16 %v2484, %v2484
    %v2517 = vpack.c.bf16 %v2485, %v2485
    %v2518 = vpack.c.bf16 %v2486, %v2486
    %v2519 = vpack.c.bf16 %v2487, %v2487
    %2520 = vset.pattern.permute.xlu0 11
    %2521 = vperm.xlu0 %2520, %v22
    %v2522 = vpop.permute.xlu0 %2521
    %2523 = vset.pattern.permute.xlu0 11
    %2524 = vperm.xlu0 %2523, %v23
    %v2525 = vpop.permute.xlu0 %2524
    %2526 = vset.pattern.permute.xlu0 11
    %2527 = vperm.xlu0 %2526, %v24
    %v2528 = vpop.permute.xlu0 %2527
    %2529 = vset.pattern.permute.xlu0 11
    %2530 = vperm.xlu0 %2529, %v25
    %v2531 = vpop.permute.xlu0 %2530
    %2532 = vset.pattern.permute.xlu0 11
    %2533 = vperm.xlu0 %2532, %v26
    %v2534 = vpop.permute.xlu0 %2533
    %2535 = vset.pattern.permute.xlu0 11
    %2536 = vperm.xlu0 %2535, %v27
    %v2537 = vpop.permute.xlu0 %2536
    %2538 = vset.pattern.permute.xlu0 11
    %2539 = vperm.xlu0 %2538, %v28
    %v2540 = vpop.permute.xlu0 %2539
    %2541 = vset.pattern.permute.xlu0 11
    %2542 = vperm.xlu0 %2541, %v29
    %v2543 = vpop.permute.xlu0 %2542
    %2544 = vset.pattern.permute.xlu0 11
    %2545 = vperm.xlu0 %2544, %v30
    %v2546 = vpop.permute.xlu0 %2545
    %2547 = vset.pattern.permute.xlu0 11
    %2548 = vperm.xlu0 %2547, %v31
    %v2549 = vpop.permute.xlu0 %2548
    %2550 = vset.pattern.permute.xlu0 11
    %2551 = vperm.xlu0 %2550, %v32
    %v2552 = vpop.permute.xlu0 %2551
    %2553 = vset.pattern.permute.xlu0 11
    %2554 = vperm.xlu0 %2553, %v33
    %v2555 = vpop.permute.xlu0 %2554
    %2556 = vset.pattern.permute.xlu0 11
    %2557 = vperm.xlu0 %2556, %v34
    %v2558 = vpop.permute.xlu0 %2557
    %2559 = vset.pattern.permute.xlu0 11
    %2560 = vperm.xlu0 %2559, %v35
    %v2561 = vpop.permute.xlu0 %2560
    %2562 = vset.pattern.permute.xlu0 11
    %2563 = vperm.xlu0 %2562, %v36
    %v2564 = vpop.permute.xlu0 %2563
    %2565 = vset.pattern.permute.xlu0 11
    %2566 = vperm.xlu0 %2565, %v37
    %v2567 = vpop.permute.xlu0 %2566
    %2568 = vset.pattern.permute.xlu0 11
    %2569 = vperm.xlu0 %2568, %v38
    %v2570 = vpop.permute.xlu0 %2569
    %2571 = vset.pattern.permute.xlu0 11
    %2572 = vperm.xlu0 %2571, %v39
    %v2573 = vpop.permute.xlu0 %2572
    %2574 = vset.pattern.permute.xlu0 11
    %2575 = vperm.xlu0 %2574, %v40
    %v2576 = vpop.permute.xlu0 %2575
    %2577 = vset.pattern.permute.xlu0 11
    %2578 = vperm.xlu0 %2577, %v41
    %v2579 = vpop.permute.xlu0 %2578
    %2580 = vset.pattern.permute.xlu0 11
    %2581 = vperm.xlu0 %2580, %v42
    %v2582 = vpop.permute.xlu0 %2581
    %2583 = vset.pattern.permute.xlu0 11
    %2584 = vperm.xlu0 %2583, %v43
    %v2585 = vpop.permute.xlu0 %2584
    %2586 = vset.pattern.permute.xlu0 11
    %2587 = vperm.xlu0 %2586, %v44
    %v2588 = vpop.permute.xlu0 %2587
    %2589 = vset.pattern.permute.xlu0 11
    %2590 = vperm.xlu0 %2589, %v45
    %v2591 = vpop.permute.xlu0 %2590
    %2592 = vset.pattern.permute.xlu0 11
    %2593 = vperm.xlu0 %2592, %v46
    %v2594 = vpop.permute.xlu0 %2593
    %2595 = vset.pattern.permute.xlu0 11
    %2596 = vperm.xlu0 %2595, %v47
    %v2597 = vpop.permute.xlu0 %2596
    %2598 = vset.pattern.permute.xlu0 11
    %2599 = vperm.xlu0 %2598, %v48
    %v2600 = vpop.permute.xlu0 %2599
    %2601 = vset.pattern.permute.xlu0 11
    %2602 = vperm.xlu0 %2601, %v49
    %v2603 = vpop.permute.xlu0 %2602
    %2604 = vset.pattern.permute.xlu0 11
    %2605 = vperm.xlu0 %2604, %v50
    %v2606 = vpop.permute.xlu0 %2605
    %2607 = vset.pattern.permute.xlu0 11
    %2608 = vperm.xlu0 %2607, %v51
    %v2609 = vpop.permute.xlu0 %2608
    %2610 = vset.pattern.permute.xlu0 11
    %2611 = vperm.xlu0 %2610, %v52
    %v2612 = vpop.permute.xlu0 %2611
    %2613 = vset.pattern.permute.xlu0 11
    %2614 = vperm.xlu0 %2613, %v53
    %v2615 = vpop.permute.xlu0 %2614
    %vm2616 = vcmp.eq.s32.totalorder %v2522, %v55
    %vm2617 = vcmp.eq.s32.totalorder %v2525, %v55
    %vm2618 = vcmp.eq.s32.totalorder %v2528, %v55
    %vm2619 = vcmp.eq.s32.totalorder %v2531, %v55
    %vm2620 = vcmp.eq.s32.totalorder %v2534, %v55
    %vm2621 = vcmp.eq.s32.totalorder %v2537, %v55
    %vm2622 = vcmp.eq.s32.totalorder %v2540, %v55
    %vm2623 = vcmp.eq.s32.totalorder %v2543, %v55
    %vm2624 = vcmp.eq.s32.totalorder %v2546, %v55
    %vm2625 = vcmp.eq.s32.totalorder %v2549, %v55
    %vm2626 = vcmp.eq.s32.totalorder %v2552, %v55
    %vm2627 = vcmp.eq.s32.totalorder %v2555, %v55
    %vm2628 = vcmp.eq.s32.totalorder %v2558, %v55
    %vm2629 = vcmp.eq.s32.totalorder %v2561, %v55
    %vm2630 = vcmp.eq.s32.totalorder %v2564, %v55
    %vm2631 = vcmp.eq.s32.totalorder %v2567, %v55
    %vm2632 = vcmp.eq.s32.totalorder %v2570, %v55
    %vm2633 = vcmp.eq.s32.totalorder %v2573, %v55
    %vm2634 = vcmp.eq.s32.totalorder %v2576, %v55
    %vm2635 = vcmp.eq.s32.totalorder %v2579, %v55
    %vm2636 = vcmp.eq.s32.totalorder %v2582, %v55
    %vm2637 = vcmp.eq.s32.totalorder %v2585, %v55
    %vm2638 = vcmp.eq.s32.totalorder %v2588, %v55
    %vm2639 = vcmp.eq.s32.totalorder %v2591, %v55
    %vm2640 = vcmp.eq.s32.totalorder %v2594, %v55
    %vm2641 = vcmp.eq.s32.totalorder %v2597, %v55
    %vm2642 = vcmp.eq.s32.totalorder %v2600, %v55
    %vm2643 = vcmp.eq.s32.totalorder %v2603, %v55
    %vm2644 = vcmp.eq.s32.totalorder %v2606, %v55
    %vm2645 = vcmp.eq.s32.totalorder %v2609, %v55
    %vm2646 = vcmp.eq.s32.totalorder %v2612, %v55
    %vm2647 = vcmp.eq.s32.totalorder %v2615, %v55
    %v2648 = vsel %vm2616, 1, 0
    %v2649 = vsel %vm2617, 1, 0
    %v2650 = vsel %vm2618, 1, 0
    %v2651 = vsel %vm2619, 1, 0
    %v2652 = vsel %vm2620, 1, 0
    %v2653 = vsel %vm2621, 1, 0
    %v2654 = vsel %vm2622, 1, 0
    %v2655 = vsel %vm2623, 1, 0
    %v2656 = vsel %vm2624, 1, 0
    %v2657 = vsel %vm2625, 1, 0
    %v2658 = vsel %vm2626, 1, 0
    %v2659 = vsel %vm2627, 1, 0
    %v2660 = vsel %vm2628, 1, 0
    %v2661 = vsel %vm2629, 1, 0
    %v2662 = vsel %vm2630, 1, 0
    %v2663 = vsel %vm2631, 1, 0
    %v2664 = vsel %vm2632, 1, 0
    %v2665 = vsel %vm2633, 1, 0
    %v2666 = vsel %vm2634, 1, 0
    %v2667 = vsel %vm2635, 1, 0
    %v2668 = vsel %vm2636, 1, 0
    %v2669 = vsel %vm2637, 1, 0
    %v2670 = vsel %vm2638, 1, 0
    %v2671 = vsel %vm2639, 1, 0
    %v2672 = vsel %vm2640, 1, 0
    %v2673 = vsel %vm2641, 1, 0
    %v2674 = vsel %vm2642, 1, 0
    %v2675 = vsel %vm2643, 1, 0
    %v2676 = vsel %vm2644, 1, 0
    %v2677 = vsel %vm2645, 1, 0
    %v2678 = vsel %vm2646, 1, 0
    %v2679 = vsel %vm2647, 1, 0
    %v2680 = vcvt.s32.f32 %v2648
    %v2681 = vcvt.s32.f32 %v2649
    %v2682 = vcvt.s32.f32 %v2650
    %v2683 = vcvt.s32.f32 %v2651
    %v2684 = vcvt.s32.f32 %v2652
    %v2685 = vcvt.s32.f32 %v2653
    %v2686 = vcvt.s32.f32 %v2654
    %v2687 = vcvt.s32.f32 %v2655
    %v2688 = vcvt.s32.f32 %v2656
    %v2689 = vcvt.s32.f32 %v2657
    %v2690 = vcvt.s32.f32 %v2658
    %v2691 = vcvt.s32.f32 %v2659
    %v2692 = vcvt.s32.f32 %v2660
    %v2693 = vcvt.s32.f32 %v2661
    %v2694 = vcvt.s32.f32 %v2662
    %v2695 = vcvt.s32.f32 %v2663
    %v2696 = vcvt.s32.f32 %v2664
    %v2697 = vcvt.s32.f32 %v2665
    %v2698 = vcvt.s32.f32 %v2666
    %v2699 = vcvt.s32.f32 %v2667
    %v2700 = vcvt.s32.f32 %v2668
    %v2701 = vcvt.s32.f32 %v2669
    %v2702 = vcvt.s32.f32 %v2670
    %v2703 = vcvt.s32.f32 %v2671
    %v2704 = vcvt.s32.f32 %v2672
    %v2705 = vcvt.s32.f32 %v2673
    %v2706 = vcvt.s32.f32 %v2674
    %v2707 = vcvt.s32.f32 %v2675
    %v2708 = vcvt.s32.f32 %v2676
    %v2709 = vcvt.s32.f32 %v2677
    %v2710 = vcvt.s32.f32 %v2678
    %v2711 = vcvt.s32.f32 %v2679
    %v2712 = vpack.c.bf16 %v2680, %v2680
    %v2713 = vpack.c.bf16 %v2681, %v2681
    %v2714 = vpack.c.bf16 %v2682, %v2682
    %v2715 = vpack.c.bf16 %v2683, %v2683
    %v2716 = vpack.c.bf16 %v2684, %v2684
    %v2717 = vpack.c.bf16 %v2685, %v2685
    %v2718 = vpack.c.bf16 %v2686, %v2686
    %v2719 = vpack.c.bf16 %v2687, %v2687
    %v2720 = vpack.c.bf16 %v2688, %v2688
    %v2721 = vpack.c.bf16 %v2689, %v2689
    %v2722 = vpack.c.bf16 %v2690, %v2690
    %v2723 = vpack.c.bf16 %v2691, %v2691
    %v2724 = vpack.c.bf16 %v2692, %v2692
    %v2725 = vpack.c.bf16 %v2693, %v2693
    %v2726 = vpack.c.bf16 %v2694, %v2694
    %v2727 = vpack.c.bf16 %v2695, %v2695
    %v2728 = vpack.c.bf16 %v2696, %v2696
    %v2729 = vpack.c.bf16 %v2697, %v2697
    %v2730 = vpack.c.bf16 %v2698, %v2698
    %v2731 = vpack.c.bf16 %v2699, %v2699
    %v2732 = vpack.c.bf16 %v2700, %v2700
    %v2733 = vpack.c.bf16 %v2701, %v2701
    %v2734 = vpack.c.bf16 %v2702, %v2702
    %v2735 = vpack.c.bf16 %v2703, %v2703
    %v2736 = vpack.c.bf16 %v2704, %v2704
    %v2737 = vpack.c.bf16 %v2705, %v2705
    %v2738 = vpack.c.bf16 %v2706, %v2706
    %v2739 = vpack.c.bf16 %v2707, %v2707
    %v2740 = vpack.c.bf16 %v2708, %v2708
    %v2741 = vpack.c.bf16 %v2709, %v2709
    %v2742 = vpack.c.bf16 %v2710, %v2710
    %v2743 = vpack.c.bf16 %v2711, %v2711
    %2744 = vset.pattern.permute.xlu0 12
    %2745 = vperm.xlu0 %2744, %v22
    %v2746 = vpop.permute.xlu0 %2745
    %2747 = vset.pattern.permute.xlu0 12
    %2748 = vperm.xlu0 %2747, %v23
    %v2749 = vpop.permute.xlu0 %2748
    %2750 = vset.pattern.permute.xlu0 12
    %2751 = vperm.xlu0 %2750, %v24
    %v2752 = vpop.permute.xlu0 %2751
    %2753 = vset.pattern.permute.xlu0 12
    %2754 = vperm.xlu0 %2753, %v25
    %v2755 = vpop.permute.xlu0 %2754
    %2756 = vset.pattern.permute.xlu0 12
    %2757 = vperm.xlu0 %2756, %v26
    %v2758 = vpop.permute.xlu0 %2757
    %2759 = vset.pattern.permute.xlu0 12
    %2760 = vperm.xlu0 %2759, %v27
    %v2761 = vpop.permute.xlu0 %2760
    %2762 = vset.pattern.permute.xlu0 12
    %2763 = vperm.xlu0 %2762, %v28
    %v2764 = vpop.permute.xlu0 %2763
    %2765 = vset.pattern.permute.xlu0 12
    %2766 = vperm.xlu0 %2765, %v29
    %v2767 = vpop.permute.xlu0 %2766
    %2768 = vset.pattern.permute.xlu0 12
    %2769 = vperm.xlu0 %2768, %v30
    %v2770 = vpop.permute.xlu0 %2769
    %2771 = vset.pattern.permute.xlu0 12
    %2772 = vperm.xlu0 %2771, %v31
    %v2773 = vpop.permute.xlu0 %2772
    %2774 = vset.pattern.permute.xlu0 12
    %2775 = vperm.xlu0 %2774, %v32
    %v2776 = vpop.permute.xlu0 %2775
    %2777 = vset.pattern.permute.xlu0 12
    %2778 = vperm.xlu0 %2777, %v33
    %v2779 = vpop.permute.xlu0 %2778
    %2780 = vset.pattern.permute.xlu0 12
    %2781 = vperm.xlu0 %2780, %v34
    %v2782 = vpop.permute.xlu0 %2781
    %2783 = vset.pattern.permute.xlu0 12
    %2784 = vperm.xlu0 %2783, %v35
    %v2785 = vpop.permute.xlu0 %2784
    %2786 = vset.pattern.permute.xlu0 12
    %2787 = vperm.xlu0 %2786, %v36
    %v2788 = vpop.permute.xlu0 %2787
    %2789 = vset.pattern.permute.xlu0 12
    %2790 = vperm.xlu0 %2789, %v37
    %v2791 = vpop.permute.xlu0 %2790
    %2792 = vset.pattern.permute.xlu0 12
    %2793 = vperm.xlu0 %2792, %v38
    %v2794 = vpop.permute.xlu0 %2793
    %2795 = vset.pattern.permute.xlu0 12
    %2796 = vperm.xlu0 %2795, %v39
    %v2797 = vpop.permute.xlu0 %2796
    %2798 = vset.pattern.permute.xlu0 12
    %2799 = vperm.xlu0 %2798, %v40
    %v2800 = vpop.permute.xlu0 %2799
    %2801 = vset.pattern.permute.xlu0 12
    %2802 = vperm.xlu0 %2801, %v41
    %v2803 = vpop.permute.xlu0 %2802
    %2804 = vset.pattern.permute.xlu0 12
    %2805 = vperm.xlu0 %2804, %v42
    %v2806 = vpop.permute.xlu0 %2805
    %2807 = vset.pattern.permute.xlu0 12
    %2808 = vperm.xlu0 %2807, %v43
    %v2809 = vpop.permute.xlu0 %2808
    %2810 = vset.pattern.permute.xlu0 12
    %2811 = vperm.xlu0 %2810, %v44
    %v2812 = vpop.permute.xlu0 %2811
    %2813 = vset.pattern.permute.xlu0 12
    %2814 = vperm.xlu0 %2813, %v45
    %v2815 = vpop.permute.xlu0 %2814
    %2816 = vset.pattern.permute.xlu0 12
    %2817 = vperm.xlu0 %2816, %v46
    %v2818 = vpop.permute.xlu0 %2817
    %2819 = vset.pattern.permute.xlu0 12
    %2820 = vperm.xlu0 %2819, %v47
    %v2821 = vpop.permute.xlu0 %2820
    %2822 = vset.pattern.permute.xlu0 12
    %2823 = vperm.xlu0 %2822, %v48
    %v2824 = vpop.permute.xlu0 %2823
    %2825 = vset.pattern.permute.xlu0 12
    %2826 = vperm.xlu0 %2825, %v49
    %v2827 = vpop.permute.xlu0 %2826
    %2828 = vset.pattern.permute.xlu0 12
    %2829 = vperm.xlu0 %2828, %v50
    %v2830 = vpop.permute.xlu0 %2829
    %2831 = vset.pattern.permute.xlu0 12
    %2832 = vperm.xlu0 %2831, %v51
    %v2833 = vpop.permute.xlu0 %2832
    %2834 = vset.pattern.permute.xlu0 12
    %2835 = vperm.xlu0 %2834, %v52
    %v2836 = vpop.permute.xlu0 %2835
    %2837 = vset.pattern.permute.xlu0 12
    %2838 = vperm.xlu0 %2837, %v53
    %v2839 = vpop.permute.xlu0 %2838
    %vm2840 = vcmp.eq.s32.totalorder %v2746, %v55
    %vm2841 = vcmp.eq.s32.totalorder %v2749, %v55
    %vm2842 = vcmp.eq.s32.totalorder %v2752, %v55
    %vm2843 = vcmp.eq.s32.totalorder %v2755, %v55
    %vm2844 = vcmp.eq.s32.totalorder %v2758, %v55
    %vm2845 = vcmp.eq.s32.totalorder %v2761, %v55
    %vm2846 = vcmp.eq.s32.totalorder %v2764, %v55
    %vm2847 = vcmp.eq.s32.totalorder %v2767, %v55
    %vm2848 = vcmp.eq.s32.totalorder %v2770, %v55
    %vm2849 = vcmp.eq.s32.totalorder %v2773, %v55
    %vm2850 = vcmp.eq.s32.totalorder %v2776, %v55
    %vm2851 = vcmp.eq.s32.totalorder %v2779, %v55
    %vm2852 = vcmp.eq.s32.totalorder %v2782, %v55
    %vm2853 = vcmp.eq.s32.totalorder %v2785, %v55
    %vm2854 = vcmp.eq.s32.totalorder %v2788, %v55
    %vm2855 = vcmp.eq.s32.totalorder %v2791, %v55
    %vm2856 = vcmp.eq.s32.totalorder %v2794, %v55
    %vm2857 = vcmp.eq.s32.totalorder %v2797, %v55
    %vm2858 = vcmp.eq.s32.totalorder %v2800, %v55
    %vm2859 = vcmp.eq.s32.totalorder %v2803, %v55
    %vm2860 = vcmp.eq.s32.totalorder %v2806, %v55
    %vm2861 = vcmp.eq.s32.totalorder %v2809, %v55
    %vm2862 = vcmp.eq.s32.totalorder %v2812, %v55
    %vm2863 = vcmp.eq.s32.totalorder %v2815, %v55
    %vm2864 = vcmp.eq.s32.totalorder %v2818, %v55
    %vm2865 = vcmp.eq.s32.totalorder %v2821, %v55
    %vm2866 = vcmp.eq.s32.totalorder %v2824, %v55
    %vm2867 = vcmp.eq.s32.totalorder %v2827, %v55
    %vm2868 = vcmp.eq.s32.totalorder %v2830, %v55
    %vm2869 = vcmp.eq.s32.totalorder %v2833, %v55
    %vm2870 = vcmp.eq.s32.totalorder %v2836, %v55
    %vm2871 = vcmp.eq.s32.totalorder %v2839, %v55
    %v2872 = vsel %vm2840, 1, 0
    %v2873 = vsel %vm2841, 1, 0
    %v2874 = vsel %vm2842, 1, 0
    %v2875 = vsel %vm2843, 1, 0
    %v2876 = vsel %vm2844, 1, 0
    %v2877 = vsel %vm2845, 1, 0
    %v2878 = vsel %vm2846, 1, 0
    %v2879 = vsel %vm2847, 1, 0
    %v2880 = vsel %vm2848, 1, 0
    %v2881 = vsel %vm2849, 1, 0
    %v2882 = vsel %vm2850, 1, 0
    %v2883 = vsel %vm2851, 1, 0
    %v2884 = vsel %vm2852, 1, 0
    %v2885 = vsel %vm2853, 1, 0
    %v2886 = vsel %vm2854, 1, 0
    %v2887 = vsel %vm2855, 1, 0
    %v2888 = vsel %vm2856, 1, 0
    %v2889 = vsel %vm2857, 1, 0
    %v2890 = vsel %vm2858, 1, 0
    %v2891 = vsel %vm2859, 1, 0
    %v2892 = vsel %vm2860, 1, 0
    %v2893 = vsel %vm2861, 1, 0
    %v2894 = vsel %vm2862, 1, 0
    %v2895 = vsel %vm2863, 1, 0
    %v2896 = vsel %vm2864, 1, 0
    %v2897 = vsel %vm2865, 1, 0
    %v2898 = vsel %vm2866, 1, 0
    %v2899 = vsel %vm2867, 1, 0
    %v2900 = vsel %vm2868, 1, 0
    %v2901 = vsel %vm2869, 1, 0
    %v2902 = vsel %vm2870, 1, 0
    %v2903 = vsel %vm2871, 1, 0
    %v2904 = vcvt.s32.f32 %v2872
    %v2905 = vcvt.s32.f32 %v2873
    %v2906 = vcvt.s32.f32 %v2874
    %v2907 = vcvt.s32.f32 %v2875
    %v2908 = vcvt.s32.f32 %v2876
    %v2909 = vcvt.s32.f32 %v2877
    %v2910 = vcvt.s32.f32 %v2878
    %v2911 = vcvt.s32.f32 %v2879
    %v2912 = vcvt.s32.f32 %v2880
    %v2913 = vcvt.s32.f32 %v2881
    %v2914 = vcvt.s32.f32 %v2882
    %v2915 = vcvt.s32.f32 %v2883
    %v2916 = vcvt.s32.f32 %v2884
    %v2917 = vcvt.s32.f32 %v2885
    %v2918 = vcvt.s32.f32 %v2886
    %v2919 = vcvt.s32.f32 %v2887
    %v2920 = vcvt.s32.f32 %v2888
    %v2921 = vcvt.s32.f32 %v2889
    %v2922 = vcvt.s32.f32 %v2890
    %v2923 = vcvt.s32.f32 %v2891
    %v2924 = vcvt.s32.f32 %v2892
    %v2925 = vcvt.s32.f32 %v2893
    %v2926 = vcvt.s32.f32 %v2894
    %v2927 = vcvt.s32.f32 %v2895
    %v2928 = vcvt.s32.f32 %v2896
    %v2929 = vcvt.s32.f32 %v2897
    %v2930 = vcvt.s32.f32 %v2898
    %v2931 = vcvt.s32.f32 %v2899
    %v2932 = vcvt.s32.f32 %v2900
    %v2933 = vcvt.s32.f32 %v2901
    %v2934 = vcvt.s32.f32 %v2902
    %v2935 = vcvt.s32.f32 %v2903
    %v2936 = vpack.c.bf16 %v2904, %v2904
    %v2937 = vpack.c.bf16 %v2905, %v2905
    %v2938 = vpack.c.bf16 %v2906, %v2906
    %v2939 = vpack.c.bf16 %v2907, %v2907
    %v2940 = vpack.c.bf16 %v2908, %v2908
    %v2941 = vpack.c.bf16 %v2909, %v2909
    %v2942 = vpack.c.bf16 %v2910, %v2910
    %v2943 = vpack.c.bf16 %v2911, %v2911
    %v2944 = vpack.c.bf16 %v2912, %v2912
    %v2945 = vpack.c.bf16 %v2913, %v2913
    %v2946 = vpack.c.bf16 %v2914, %v2914
    %v2947 = vpack.c.bf16 %v2915, %v2915
    %v2948 = vpack.c.bf16 %v2916, %v2916
    %v2949 = vpack.c.bf16 %v2917, %v2917
    %v2950 = vpack.c.bf16 %v2918, %v2918
    %v2951 = vpack.c.bf16 %v2919, %v2919
    %v2952 = vpack.c.bf16 %v2920, %v2920
    %v2953 = vpack.c.bf16 %v2921, %v2921
    %v2954 = vpack.c.bf16 %v2922, %v2922
    %v2955 = vpack.c.bf16 %v2923, %v2923
    %v2956 = vpack.c.bf16 %v2924, %v2924
    %v2957 = vpack.c.bf16 %v2925, %v2925
    %v2958 = vpack.c.bf16 %v2926, %v2926
    %v2959 = vpack.c.bf16 %v2927, %v2927
    %v2960 = vpack.c.bf16 %v2928, %v2928
    %v2961 = vpack.c.bf16 %v2929, %v2929
    %v2962 = vpack.c.bf16 %v2930, %v2930
    %v2963 = vpack.c.bf16 %v2931, %v2931
    %v2964 = vpack.c.bf16 %v2932, %v2932
    %v2965 = vpack.c.bf16 %v2933, %v2933
    %v2966 = vpack.c.bf16 %v2934, %v2934
    %v2967 = vpack.c.bf16 %v2935, %v2935
    %2968 = vset.pattern.permute.xlu0 13
    %2969 = vperm.xlu0 %2968, %v22
    %v2970 = vpop.permute.xlu0 %2969
    %2971 = vset.pattern.permute.xlu0 13
    %2972 = vperm.xlu0 %2971, %v23
    %v2973 = vpop.permute.xlu0 %2972
    %2974 = vset.pattern.permute.xlu0 13
    %2975 = vperm.xlu0 %2974, %v24
    %v2976 = vpop.permute.xlu0 %2975
    %2977 = vset.pattern.permute.xlu0 13
    %2978 = vperm.xlu0 %2977, %v25
    %v2979 = vpop.permute.xlu0 %2978
    %2980 = vset.pattern.permute.xlu0 13
    %2981 = vperm.xlu0 %2980, %v26
    %v2982 = vpop.permute.xlu0 %2981
    %2983 = vset.pattern.permute.xlu0 13
    %2984 = vperm.xlu0 %2983, %v27
    %v2985 = vpop.permute.xlu0 %2984
    %2986 = vset.pattern.permute.xlu0 13
    %2987 = vperm.xlu0 %2986, %v28
    %v2988 = vpop.permute.xlu0 %2987
    %2989 = vset.pattern.permute.xlu0 13
    %2990 = vperm.xlu0 %2989, %v29
    %v2991 = vpop.permute.xlu0 %2990
    %2992 = vset.pattern.permute.xlu0 13
    %2993 = vperm.xlu0 %2992, %v30
    %v2994 = vpop.permute.xlu0 %2993
    %2995 = vset.pattern.permute.xlu0 13
    %2996 = vperm.xlu0 %2995, %v31
    %v2997 = vpop.permute.xlu0 %2996
    %2998 = vset.pattern.permute.xlu0 13
    %2999 = vperm.xlu0 %2998, %v32
    %v3000 = vpop.permute.xlu0 %2999
    %3001 = vset.pattern.permute.xlu0 13
    %3002 = vperm.xlu0 %3001, %v33
    %v3003 = vpop.permute.xlu0 %3002
    %3004 = vset.pattern.permute.xlu0 13
    %3005 = vperm.xlu0 %3004, %v34
    %v3006 = vpop.permute.xlu0 %3005
    %3007 = vset.pattern.permute.xlu0 13
    %3008 = vperm.xlu0 %3007, %v35
    %v3009 = vpop.permute.xlu0 %3008
    %3010 = vset.pattern.permute.xlu0 13
    %3011 = vperm.xlu0 %3010, %v36
    %v3012 = vpop.permute.xlu0 %3011
    %3013 = vset.pattern.permute.xlu0 13
    %3014 = vperm.xlu0 %3013, %v37
    %v3015 = vpop.permute.xlu0 %3014
    %3016 = vset.pattern.permute.xlu0 13
    %3017 = vperm.xlu0 %3016, %v38
    %v3018 = vpop.permute.xlu0 %3017
    %3019 = vset.pattern.permute.xlu0 13
    %3020 = vperm.xlu0 %3019, %v39
    %v3021 = vpop.permute.xlu0 %3020
    %3022 = vset.pattern.permute.xlu0 13
    %3023 = vperm.xlu0 %3022, %v40
    %v3024 = vpop.permute.xlu0 %3023
    %3025 = vset.pattern.permute.xlu0 13
    %3026 = vperm.xlu0 %3025, %v41
    %v3027 = vpop.permute.xlu0 %3026
    %3028 = vset.pattern.permute.xlu0 13
    %3029 = vperm.xlu0 %3028, %v42
    %v3030 = vpop.permute.xlu0 %3029
    %3031 = vset.pattern.permute.xlu0 13
    %3032 = vperm.xlu0 %3031, %v43
    %v3033 = vpop.permute.xlu0 %3032
    %3034 = vset.pattern.permute.xlu0 13
    %3035 = vperm.xlu0 %3034, %v44
    %v3036 = vpop.permute.xlu0 %3035
    %3037 = vset.pattern.permute.xlu0 13
    %3038 = vperm.xlu0 %3037, %v45
    %v3039 = vpop.permute.xlu0 %3038
    %3040 = vset.pattern.permute.xlu0 13
    %3041 = vperm.xlu0 %3040, %v46
    %v3042 = vpop.permute.xlu0 %3041
    %3043 = vset.pattern.permute.xlu0 13
    %3044 = vperm.xlu0 %3043, %v47
    %v3045 = vpop.permute.xlu0 %3044
    %3046 = vset.pattern.permute.xlu0 13
    %3047 = vperm.xlu0 %3046, %v48
    %v3048 = vpop.permute.xlu0 %3047
    %3049 = vset.pattern.permute.xlu0 13
    %3050 = vperm.xlu0 %3049, %v49
    %v3051 = vpop.permute.xlu0 %3050
    %3052 = vset.pattern.permute.xlu0 13
    %3053 = vperm.xlu0 %3052, %v50
    %v3054 = vpop.permute.xlu0 %3053
    %3055 = vset.pattern.permute.xlu0 13
    %3056 = vperm.xlu0 %3055, %v51
    %v3057 = vpop.permute.xlu0 %3056
    %3058 = vset.pattern.permute.xlu0 13
    %3059 = vperm.xlu0 %3058, %v52
    %v3060 = vpop.permute.xlu0 %3059
    %3061 = vset.pattern.permute.xlu0 13
    %3062 = vperm.xlu0 %3061, %v53
    %v3063 = vpop.permute.xlu0 %3062
    %vm3064 = vcmp.eq.s32.totalorder %v2970, %v55
    %vm3065 = vcmp.eq.s32.totalorder %v2973, %v55
    %vm3066 = vcmp.eq.s32.totalorder %v2976, %v55
    %vm3067 = vcmp.eq.s32.totalorder %v2979, %v55
    %vm3068 = vcmp.eq.s32.totalorder %v2982, %v55
    %vm3069 = vcmp.eq.s32.totalorder %v2985, %v55
    %vm3070 = vcmp.eq.s32.totalorder %v2988, %v55
    %vm3071 = vcmp.eq.s32.totalorder %v2991, %v55
    %vm3072 = vcmp.eq.s32.totalorder %v2994, %v55
    %vm3073 = vcmp.eq.s32.totalorder %v2997, %v55
    %vm3074 = vcmp.eq.s32.totalorder %v3000, %v55
    %vm3075 = vcmp.eq.s32.totalorder %v3003, %v55
    %vm3076 = vcmp.eq.s32.totalorder %v3006, %v55
    %vm3077 = vcmp.eq.s32.totalorder %v3009, %v55
    %vm3078 = vcmp.eq.s32.totalorder %v3012, %v55
    %vm3079 = vcmp.eq.s32.totalorder %v3015, %v55
    %vm3080 = vcmp.eq.s32.totalorder %v3018, %v55
    %vm3081 = vcmp.eq.s32.totalorder %v3021, %v55
    %vm3082 = vcmp.eq.s32.totalorder %v3024, %v55
    %vm3083 = vcmp.eq.s32.totalorder %v3027, %v55
    %vm3084 = vcmp.eq.s32.totalorder %v3030, %v55
    %vm3085 = vcmp.eq.s32.totalorder %v3033, %v55
    %vm3086 = vcmp.eq.s32.totalorder %v3036, %v55
    %vm3087 = vcmp.eq.s32.totalorder %v3039, %v55
    %vm3088 = vcmp.eq.s32.totalorder %v3042, %v55
    %vm3089 = vcmp.eq.s32.totalorder %v3045, %v55
    %vm3090 = vcmp.eq.s32.totalorder %v3048, %v55
    %vm3091 = vcmp.eq.s32.totalorder %v3051, %v55
    %vm3092 = vcmp.eq.s32.totalorder %v3054, %v55
    %vm3093 = vcmp.eq.s32.totalorder %v3057, %v55
    %vm3094 = vcmp.eq.s32.totalorder %v3060, %v55
    %vm3095 = vcmp.eq.s32.totalorder %v3063, %v55
    %v3096 = vsel %vm3064, 1, 0
    %v3097 = vsel %vm3065, 1, 0
    %v3098 = vsel %vm3066, 1, 0
    %v3099 = vsel %vm3067, 1, 0
    %v3100 = vsel %vm3068, 1, 0
    %v3101 = vsel %vm3069, 1, 0
    %v3102 = vsel %vm3070, 1, 0
    %v3103 = vsel %vm3071, 1, 0
    %v3104 = vsel %vm3072, 1, 0
    %v3105 = vsel %vm3073, 1, 0
    %v3106 = vsel %vm3074, 1, 0
    %v3107 = vsel %vm3075, 1, 0
    %v3108 = vsel %vm3076, 1, 0
    %v3109 = vsel %vm3077, 1, 0
    %v3110 = vsel %vm3078, 1, 0
    %v3111 = vsel %vm3079, 1, 0
    %v3112 = vsel %vm3080, 1, 0
    %v3113 = vsel %vm3081, 1, 0
    %v3114 = vsel %vm3082, 1, 0
    %v3115 = vsel %vm3083, 1, 0
    %v3116 = vsel %vm3084, 1, 0
    %v3117 = vsel %vm3085, 1, 0
    %v3118 = vsel %vm3086, 1, 0
    %v3119 = vsel %vm3087, 1, 0
    %v3120 = vsel %vm3088, 1, 0
    %v3121 = vsel %vm3089, 1, 0
    %v3122 = vsel %vm3090, 1, 0
    %v3123 = vsel %vm3091, 1, 0
    %v3124 = vsel %vm3092, 1, 0
    %v3125 = vsel %vm3093, 1, 0
    %v3126 = vsel %vm3094, 1, 0
    %v3127 = vsel %vm3095, 1, 0
    %v3128 = vcvt.s32.f32 %v3096
    %v3129 = vcvt.s32.f32 %v3097
    %v3130 = vcvt.s32.f32 %v3098
    %v3131 = vcvt.s32.f32 %v3099
    %v3132 = vcvt.s32.f32 %v3100
    %v3133 = vcvt.s32.f32 %v3101
    %v3134 = vcvt.s32.f32 %v3102
    %v3135 = vcvt.s32.f32 %v3103
    %v3136 = vcvt.s32.f32 %v3104
    %v3137 = vcvt.s32.f32 %v3105
    %v3138 = vcvt.s32.f32 %v3106
    %v3139 = vcvt.s32.f32 %v3107
    %v3140 = vcvt.s32.f32 %v3108
    %v3141 = vcvt.s32.f32 %v3109
    %v3142 = vcvt.s32.f32 %v3110
    %v3143 = vcvt.s32.f32 %v3111
    %v3144 = vcvt.s32.f32 %v3112
    %v3145 = vcvt.s32.f32 %v3113
    %v3146 = vcvt.s32.f32 %v3114
    %v3147 = vcvt.s32.f32 %v3115
    %v3148 = vcvt.s32.f32 %v3116
    %v3149 = vcvt.s32.f32 %v3117
    %v3150 = vcvt.s32.f32 %v3118
    %v3151 = vcvt.s32.f32 %v3119
    %v3152 = vcvt.s32.f32 %v3120
    %v3153 = vcvt.s32.f32 %v3121
    %v3154 = vcvt.s32.f32 %v3122
    %v3155 = vcvt.s32.f32 %v3123
    %v3156 = vcvt.s32.f32 %v3124
    %v3157 = vcvt.s32.f32 %v3125
    %v3158 = vcvt.s32.f32 %v3126
    %v3159 = vcvt.s32.f32 %v3127
    %v3160 = vpack.c.bf16 %v3128, %v3128
    %v3161 = vpack.c.bf16 %v3129, %v3129
    %v3162 = vpack.c.bf16 %v3130, %v3130
    %v3163 = vpack.c.bf16 %v3131, %v3131
    %v3164 = vpack.c.bf16 %v3132, %v3132
    %v3165 = vpack.c.bf16 %v3133, %v3133
    %v3166 = vpack.c.bf16 %v3134, %v3134
    %v3167 = vpack.c.bf16 %v3135, %v3135
    %v3168 = vpack.c.bf16 %v3136, %v3136
    %v3169 = vpack.c.bf16 %v3137, %v3137
    %v3170 = vpack.c.bf16 %v3138, %v3138
    %v3171 = vpack.c.bf16 %v3139, %v3139
    %v3172 = vpack.c.bf16 %v3140, %v3140
    %v3173 = vpack.c.bf16 %v3141, %v3141
    %v3174 = vpack.c.bf16 %v3142, %v3142
    %v3175 = vpack.c.bf16 %v3143, %v3143
    %v3176 = vpack.c.bf16 %v3144, %v3144
    %v3177 = vpack.c.bf16 %v3145, %v3145
    %v3178 = vpack.c.bf16 %v3146, %v3146
    %v3179 = vpack.c.bf16 %v3147, %v3147
    %v3180 = vpack.c.bf16 %v3148, %v3148
    %v3181 = vpack.c.bf16 %v3149, %v3149
    %v3182 = vpack.c.bf16 %v3150, %v3150
    %v3183 = vpack.c.bf16 %v3151, %v3151
    %v3184 = vpack.c.bf16 %v3152, %v3152
    %v3185 = vpack.c.bf16 %v3153, %v3153
    %v3186 = vpack.c.bf16 %v3154, %v3154
    %v3187 = vpack.c.bf16 %v3155, %v3155
    %v3188 = vpack.c.bf16 %v3156, %v3156
    %v3189 = vpack.c.bf16 %v3157, %v3157
    %v3190 = vpack.c.bf16 %v3158, %v3158
    %v3191 = vpack.c.bf16 %v3159, %v3159
    %3192 = vset.pattern.permute.xlu0 14
    %3193 = vperm.xlu0 %3192, %v22
    %v3194 = vpop.permute.xlu0 %3193
    %3195 = vset.pattern.permute.xlu0 14
    %3196 = vperm.xlu0 %3195, %v23
    %v3197 = vpop.permute.xlu0 %3196
    %3198 = vset.pattern.permute.xlu0 14
    %3199 = vperm.xlu0 %3198, %v24
    %v3200 = vpop.permute.xlu0 %3199
    %3201 = vset.pattern.permute.xlu0 14
    %3202 = vperm.xlu0 %3201, %v25
    %v3203 = vpop.permute.xlu0 %3202
    %3204 = vset.pattern.permute.xlu0 14
    %3205 = vperm.xlu0 %3204, %v26
    %v3206 = vpop.permute.xlu0 %3205
    %3207 = vset.pattern.permute.xlu0 14
    %3208 = vperm.xlu0 %3207, %v27
    %v3209 = vpop.permute.xlu0 %3208
    %3210 = vset.pattern.permute.xlu0 14
    %3211 = vperm.xlu0 %3210, %v28
    %v3212 = vpop.permute.xlu0 %3211
    %3213 = vset.pattern.permute.xlu0 14
    %3214 = vperm.xlu0 %3213, %v29
    %v3215 = vpop.permute.xlu0 %3214
    %3216 = vset.pattern.permute.xlu0 14
    %3217 = vperm.xlu0 %3216, %v30
    %v3218 = vpop.permute.xlu0 %3217
    %3219 = vset.pattern.permute.xlu0 14
    %3220 = vperm.xlu0 %3219, %v31
    %v3221 = vpop.permute.xlu0 %3220
    %3222 = vset.pattern.permute.xlu0 14
    %3223 = vperm.xlu0 %3222, %v32
    %v3224 = vpop.permute.xlu0 %3223
    %3225 = vset.pattern.permute.xlu0 14
    %3226 = vperm.xlu0 %3225, %v33
    %v3227 = vpop.permute.xlu0 %3226
    %3228 = vset.pattern.permute.xlu0 14
    %3229 = vperm.xlu0 %3228, %v34
    %v3230 = vpop.permute.xlu0 %3229
    %3231 = vset.pattern.permute.xlu0 14
    %3232 = vperm.xlu0 %3231, %v35
    %v3233 = vpop.permute.xlu0 %3232
    %3234 = vset.pattern.permute.xlu0 14
    %3235 = vperm.xlu0 %3234, %v36
    %v3236 = vpop.permute.xlu0 %3235
    %3237 = vset.pattern.permute.xlu0 14
    %3238 = vperm.xlu0 %3237, %v37
    %v3239 = vpop.permute.xlu0 %3238
    %3240 = vset.pattern.permute.xlu0 14
    %3241 = vperm.xlu0 %3240, %v38
    %v3242 = vpop.permute.xlu0 %3241
    %3243 = vset.pattern.permute.xlu0 14
    %3244 = vperm.xlu0 %3243, %v39
    %v3245 = vpop.permute.xlu0 %3244
    %3246 = vset.pattern.permute.xlu0 14
    %3247 = vperm.xlu0 %3246, %v40
    %v3248 = vpop.permute.xlu0 %3247
    %3249 = vset.pattern.permute.xlu0 14
    %3250 = vperm.xlu0 %3249, %v41
    %v3251 = vpop.permute.xlu0 %3250
    %3252 = vset.pattern.permute.xlu0 14
    %3253 = vperm.xlu0 %3252, %v42
    %v3254 = vpop.permute.xlu0 %3253
    %3255 = vset.pattern.permute.xlu0 14
    %3256 = vperm.xlu0 %3255, %v43
    %v3257 = vpop.permute.xlu0 %3256
    %3258 = vset.pattern.permute.xlu0 14
    %3259 = vperm.xlu0 %3258, %v44
    %v3260 = vpop.permute.xlu0 %3259
    %3261 = vset.pattern.permute.xlu0 14
    %3262 = vperm.xlu0 %3261, %v45
    %v3263 = vpop.permute.xlu0 %3262
    %3264 = vset.pattern.permute.xlu0 14
    %3265 = vperm.xlu0 %3264, %v46
    %v3266 = vpop.permute.xlu0 %3265
    %3267 = vset.pattern.permute.xlu0 14
    %3268 = vperm.xlu0 %3267, %v47
    %v3269 = vpop.permute.xlu0 %3268
    %3270 = vset.pattern.permute.xlu0 14
    %3271 = vperm.xlu0 %3270, %v48
    %v3272 = vpop.permute.xlu0 %3271
    %3273 = vset.pattern.permute.xlu0 14
    %3274 = vperm.xlu0 %3273, %v49
    %v3275 = vpop.permute.xlu0 %3274
    %3276 = vset.pattern.permute.xlu0 14
    %3277 = vperm.xlu0 %3276, %v50
    %v3278 = vpop.permute.xlu0 %3277
    %3279 = vset.pattern.permute.xlu0 14
    %3280 = vperm.xlu0 %3279, %v51
    %v3281 = vpop.permute.xlu0 %3280
    %3282 = vset.pattern.permute.xlu0 14
    %3283 = vperm.xlu0 %3282, %v52
    %v3284 = vpop.permute.xlu0 %3283
    %3285 = vset.pattern.permute.xlu0 14
    %3286 = vperm.xlu0 %3285, %v53
    %v3287 = vpop.permute.xlu0 %3286
    %vm3288 = vcmp.eq.s32.totalorder %v3194, %v55
    %vm3289 = vcmp.eq.s32.totalorder %v3197, %v55
    %vm3290 = vcmp.eq.s32.totalorder %v3200, %v55
    %vm3291 = vcmp.eq.s32.totalorder %v3203, %v55
    %vm3292 = vcmp.eq.s32.totalorder %v3206, %v55
    %vm3293 = vcmp.eq.s32.totalorder %v3209, %v55
    %vm3294 = vcmp.eq.s32.totalorder %v3212, %v55
    %vm3295 = vcmp.eq.s32.totalorder %v3215, %v55
    %vm3296 = vcmp.eq.s32.totalorder %v3218, %v55
    %vm3297 = vcmp.eq.s32.totalorder %v3221, %v55
    %vm3298 = vcmp.eq.s32.totalorder %v3224, %v55
    %vm3299 = vcmp.eq.s32.totalorder %v3227, %v55
    %vm3300 = vcmp.eq.s32.totalorder %v3230, %v55
    %vm3301 = vcmp.eq.s32.totalorder %v3233, %v55
    %vm3302 = vcmp.eq.s32.totalorder %v3236, %v55
    %vm3303 = vcmp.eq.s32.totalorder %v3239, %v55
    %vm3304 = vcmp.eq.s32.totalorder %v3242, %v55
    %vm3305 = vcmp.eq.s32.totalorder %v3245, %v55
    %vm3306 = vcmp.eq.s32.totalorder %v3248, %v55
    %vm3307 = vcmp.eq.s32.totalorder %v3251, %v55
    %vm3308 = vcmp.eq.s32.totalorder %v3254, %v55
    %vm3309 = vcmp.eq.s32.totalorder %v3257, %v55
    %vm3310 = vcmp.eq.s32.totalorder %v3260, %v55
    %vm3311 = vcmp.eq.s32.totalorder %v3263, %v55
    %vm3312 = vcmp.eq.s32.totalorder %v3266, %v55
    %vm3313 = vcmp.eq.s32.totalorder %v3269, %v55
    %vm3314 = vcmp.eq.s32.totalorder %v3272, %v55
    %vm3315 = vcmp.eq.s32.totalorder %v3275, %v55
    %vm3316 = vcmp.eq.s32.totalorder %v3278, %v55
    %vm3317 = vcmp.eq.s32.totalorder %v3281, %v55
    %vm3318 = vcmp.eq.s32.totalorder %v3284, %v55
    %vm3319 = vcmp.eq.s32.totalorder %v3287, %v55
    %v3320 = vsel %vm3288, 1, 0
    %v3321 = vsel %vm3289, 1, 0
    %v3322 = vsel %vm3290, 1, 0
    %v3323 = vsel %vm3291, 1, 0
    %v3324 = vsel %vm3292, 1, 0
    %v3325 = vsel %vm3293, 1, 0
    %v3326 = vsel %vm3294, 1, 0
    %v3327 = vsel %vm3295, 1, 0
    %v3328 = vsel %vm3296, 1, 0
    %v3329 = vsel %vm3297, 1, 0
    %v3330 = vsel %vm3298, 1, 0
    %v3331 = vsel %vm3299, 1, 0
    %v3332 = vsel %vm3300, 1, 0
    %v3333 = vsel %vm3301, 1, 0
    %v3334 = vsel %vm3302, 1, 0
    %v3335 = vsel %vm3303, 1, 0
    %v3336 = vsel %vm3304, 1, 0
    %v3337 = vsel %vm3305, 1, 0
    %v3338 = vsel %vm3306, 1, 0
    %v3339 = vsel %vm3307, 1, 0
    %v3340 = vsel %vm3308, 1, 0
    %v3341 = vsel %vm3309, 1, 0
    %v3342 = vsel %vm3310, 1, 0
    %v3343 = vsel %vm3311, 1, 0
    %v3344 = vsel %vm3312, 1, 0
    %v3345 = vsel %vm3313, 1, 0
    %v3346 = vsel %vm3314, 1, 0
    %v3347 = vsel %vm3315, 1, 0
    %v3348 = vsel %vm3316, 1, 0
    %v3349 = vsel %vm3317, 1, 0
    %v3350 = vsel %vm3318, 1, 0
    %v3351 = vsel %vm3319, 1, 0
    %v3352 = vcvt.s32.f32 %v3320
    %v3353 = vcvt.s32.f32 %v3321
    %v3354 = vcvt.s32.f32 %v3322
    %v3355 = vcvt.s32.f32 %v3323
    %v3356 = vcvt.s32.f32 %v3324
    %v3357 = vcvt.s32.f32 %v3325
    %v3358 = vcvt.s32.f32 %v3326
    %v3359 = vcvt.s32.f32 %v3327
    %v3360 = vcvt.s32.f32 %v3328
    %v3361 = vcvt.s32.f32 %v3329
    %v3362 = vcvt.s32.f32 %v3330
    %v3363 = vcvt.s32.f32 %v3331
    %v3364 = vcvt.s32.f32 %v3332
    %v3365 = vcvt.s32.f32 %v3333
    %v3366 = vcvt.s32.f32 %v3334
    %v3367 = vcvt.s32.f32 %v3335
    %v3368 = vcvt.s32.f32 %v3336
    %v3369 = vcvt.s32.f32 %v3337
    %v3370 = vcvt.s32.f32 %v3338
    %v3371 = vcvt.s32.f32 %v3339
    %v3372 = vcvt.s32.f32 %v3340
    %v3373 = vcvt.s32.f32 %v3341
    %v3374 = vcvt.s32.f32 %v3342
    %v3375 = vcvt.s32.f32 %v3343
    %v3376 = vcvt.s32.f32 %v3344
    %v3377 = vcvt.s32.f32 %v3345
    %v3378 = vcvt.s32.f32 %v3346
    %v3379 = vcvt.s32.f32 %v3347
    %v3380 = vcvt.s32.f32 %v3348
    %v3381 = vcvt.s32.f32 %v3349
    %v3382 = vcvt.s32.f32 %v3350
    %v3383 = vcvt.s32.f32 %v3351
    %v3384 = vpack.c.bf16 %v3352, %v3352
    %v3385 = vpack.c.bf16 %v3353, %v3353
    %v3386 = vpack.c.bf16 %v3354, %v3354
    %v3387 = vpack.c.bf16 %v3355, %v3355
    %v3388 = vpack.c.bf16 %v3356, %v3356
    %v3389 = vpack.c.bf16 %v3357, %v3357
    %v3390 = vpack.c.bf16 %v3358, %v3358
    %v3391 = vpack.c.bf16 %v3359, %v3359
    %v3392 = vpack.c.bf16 %v3360, %v3360
    %v3393 = vpack.c.bf16 %v3361, %v3361
    %v3394 = vpack.c.bf16 %v3362, %v3362
    %v3395 = vpack.c.bf16 %v3363, %v3363
    %v3396 = vpack.c.bf16 %v3364, %v3364
    %v3397 = vpack.c.bf16 %v3365, %v3365
    %v3398 = vpack.c.bf16 %v3366, %v3366
    %v3399 = vpack.c.bf16 %v3367, %v3367
    %v3400 = vpack.c.bf16 %v3368, %v3368
    %v3401 = vpack.c.bf16 %v3369, %v3369
    %v3402 = vpack.c.bf16 %v3370, %v3370
    %v3403 = vpack.c.bf16 %v3371, %v3371
    %v3404 = vpack.c.bf16 %v3372, %v3372
    %v3405 = vpack.c.bf16 %v3373, %v3373
    %v3406 = vpack.c.bf16 %v3374, %v3374
    %v3407 = vpack.c.bf16 %v3375, %v3375
    %v3408 = vpack.c.bf16 %v3376, %v3376
    %v3409 = vpack.c.bf16 %v3377, %v3377
    %v3410 = vpack.c.bf16 %v3378, %v3378
    %v3411 = vpack.c.bf16 %v3379, %v3379
    %v3412 = vpack.c.bf16 %v3380, %v3380
    %v3413 = vpack.c.bf16 %v3381, %v3381
    %v3414 = vpack.c.bf16 %v3382, %v3382
    %v3415 = vpack.c.bf16 %v3383, %v3383
    %3416 = vset.pattern.permute.xlu0 15
    %3417 = vperm.xlu0 %3416, %v22
    %v3418 = vpop.permute.xlu0 %3417
    %3419 = vset.pattern.permute.xlu0 15
    %3420 = vperm.xlu0 %3419, %v23
    %v3421 = vpop.permute.xlu0 %3420
    %3422 = vset.pattern.permute.xlu0 15
    %3423 = vperm.xlu0 %3422, %v24
    %v3424 = vpop.permute.xlu0 %3423
    %3425 = vset.pattern.permute.xlu0 15
    %3426 = vperm.xlu0 %3425, %v25
    %v3427 = vpop.permute.xlu0 %3426
    %3428 = vset.pattern.permute.xlu0 15
    %3429 = vperm.xlu0 %3428, %v26
    %v3430 = vpop.permute.xlu0 %3429
    %3431 = vset.pattern.permute.xlu0 15
    %3432 = vperm.xlu0 %3431, %v27
    %v3433 = vpop.permute.xlu0 %3432
    %3434 = vset.pattern.permute.xlu0 15
    %3435 = vperm.xlu0 %3434, %v28
    %v3436 = vpop.permute.xlu0 %3435
    %3437 = vset.pattern.permute.xlu0 15
    %3438 = vperm.xlu0 %3437, %v29
    %v3439 = vpop.permute.xlu0 %3438
    %3440 = vset.pattern.permute.xlu0 15
    %3441 = vperm.xlu0 %3440, %v30
    %v3442 = vpop.permute.xlu0 %3441
    %3443 = vset.pattern.permute.xlu0 15
    %3444 = vperm.xlu0 %3443, %v31
    %v3445 = vpop.permute.xlu0 %3444
    %3446 = vset.pattern.permute.xlu0 15
    %3447 = vperm.xlu0 %3446, %v32
    %v3448 = vpop.permute.xlu0 %3447
    %3449 = vset.pattern.permute.xlu0 15
    %3450 = vperm.xlu0 %3449, %v33
    %v3451 = vpop.permute.xlu0 %3450
    %3452 = vset.pattern.permute.xlu0 15
    %3453 = vperm.xlu0 %3452, %v34
    %v3454 = vpop.permute.xlu0 %3453
    %3455 = vset.pattern.permute.xlu0 15
    %3456 = vperm.xlu0 %3455, %v35
    %v3457 = vpop.permute.xlu0 %3456
    %3458 = vset.pattern.permute.xlu0 15
    %3459 = vperm.xlu0 %3458, %v36
    %v3460 = vpop.permute.xlu0 %3459
    %3461 = vset.pattern.permute.xlu0 15
    %3462 = vperm.xlu0 %3461, %v37
    %v3463 = vpop.permute.xlu0 %3462
    %3464 = vset.pattern.permute.xlu0 15
    %3465 = vperm.xlu0 %3464, %v38
    %v3466 = vpop.permute.xlu0 %3465
    %3467 = vset.pattern.permute.xlu0 15
    %3468 = vperm.xlu0 %3467, %v39
    %v3469 = vpop.permute.xlu0 %3468
    %3470 = vset.pattern.permute.xlu0 15
    %3471 = vperm.xlu0 %3470, %v40
    %v3472 = vpop.permute.xlu0 %3471
    %3473 = vset.pattern.permute.xlu0 15
    %3474 = vperm.xlu0 %3473, %v41
    %v3475 = vpop.permute.xlu0 %3474
    %3476 = vset.pattern.permute.xlu0 15
    %3477 = vperm.xlu0 %3476, %v42
    %v3478 = vpop.permute.xlu0 %3477
    %3479 = vset.pattern.permute.xlu0 15
    %3480 = vperm.xlu0 %3479, %v43
    %v3481 = vpop.permute.xlu0 %3480
    %3482 = vset.pattern.permute.xlu0 15
    %3483 = vperm.xlu0 %3482, %v44
    %v3484 = vpop.permute.xlu0 %3483
    %3485 = vset.pattern.permute.xlu0 15
    %3486 = vperm.xlu0 %3485, %v45
    %v3487 = vpop.permute.xlu0 %3486
    %3488 = vset.pattern.permute.xlu0 15
    %3489 = vperm.xlu0 %3488, %v46
    %v3490 = vpop.permute.xlu0 %3489
    %3491 = vset.pattern.permute.xlu0 15
    %3492 = vperm.xlu0 %3491, %v47
    %v3493 = vpop.permute.xlu0 %3492
    %3494 = vset.pattern.permute.xlu0 15
    %3495 = vperm.xlu0 %3494, %v48
    %v3496 = vpop.permute.xlu0 %3495
    %3497 = vset.pattern.permute.xlu0 15
    %3498 = vperm.xlu0 %3497, %v49
    %v3499 = vpop.permute.xlu0 %3498
    %3500 = vset.pattern.permute.xlu0 15
    %3501 = vperm.xlu0 %3500, %v50
    %v3502 = vpop.permute.xlu0 %3501
    %3503 = vset.pattern.permute.xlu0 15
    %3504 = vperm.xlu0 %3503, %v51
    %v3505 = vpop.permute.xlu0 %3504
    %3506 = vset.pattern.permute.xlu0 15
    %3507 = vperm.xlu0 %3506, %v52
    %v3508 = vpop.permute.xlu0 %3507
    %3509 = vset.pattern.permute.xlu0 15
    %3510 = vperm.xlu0 %3509, %v53
    %v3511 = vpop.permute.xlu0 %3510
    %vm3512 = vcmp.eq.s32.totalorder %v3418, %v55
    %vm3513 = vcmp.eq.s32.totalorder %v3421, %v55
    %vm3514 = vcmp.eq.s32.totalorder %v3424, %v55
    %vm3515 = vcmp.eq.s32.totalorder %v3427, %v55
    %vm3516 = vcmp.eq.s32.totalorder %v3430, %v55
    %vm3517 = vcmp.eq.s32.totalorder %v3433, %v55
    %vm3518 = vcmp.eq.s32.totalorder %v3436, %v55
    %vm3519 = vcmp.eq.s32.totalorder %v3439, %v55
    %vm3520 = vcmp.eq.s32.totalorder %v3442, %v55
    %vm3521 = vcmp.eq.s32.totalorder %v3445, %v55
    %vm3522 = vcmp.eq.s32.totalorder %v3448, %v55
    %vm3523 = vcmp.eq.s32.totalorder %v3451, %v55
    %vm3524 = vcmp.eq.s32.totalorder %v3454, %v55
    %vm3525 = vcmp.eq.s32.totalorder %v3457, %v55
    %vm3526 = vcmp.eq.s32.totalorder %v3460, %v55
    %vm3527 = vcmp.eq.s32.totalorder %v3463, %v55
    %vm3528 = vcmp.eq.s32.totalorder %v3466, %v55
    %vm3529 = vcmp.eq.s32.totalorder %v3469, %v55
    %vm3530 = vcmp.eq.s32.totalorder %v3472, %v55
    %vm3531 = vcmp.eq.s32.totalorder %v3475, %v55
    %vm3532 = vcmp.eq.s32.totalorder %v3478, %v55
    %vm3533 = vcmp.eq.s32.totalorder %v3481, %v55
    %vm3534 = vcmp.eq.s32.totalorder %v3484, %v55
    %vm3535 = vcmp.eq.s32.totalorder %v3487, %v55
    %vm3536 = vcmp.eq.s32.totalorder %v3490, %v55
    %vm3537 = vcmp.eq.s32.totalorder %v3493, %v55
    %vm3538 = vcmp.eq.s32.totalorder %v3496, %v55
    %vm3539 = vcmp.eq.s32.totalorder %v3499, %v55
    %vm3540 = vcmp.eq.s32.totalorder %v3502, %v55
    %vm3541 = vcmp.eq.s32.totalorder %v3505, %v55
    %vm3542 = vcmp.eq.s32.totalorder %v3508, %v55
    %vm3543 = vcmp.eq.s32.totalorder %v3511, %v55
    %v3544 = vsel %vm3512, 1, 0
    %v3545 = vsel %vm3513, 1, 0
    %v3546 = vsel %vm3514, 1, 0
    %v3547 = vsel %vm3515, 1, 0
    %v3548 = vsel %vm3516, 1, 0
    %v3549 = vsel %vm3517, 1, 0
    %v3550 = vsel %vm3518, 1, 0
    %v3551 = vsel %vm3519, 1, 0
    %v3552 = vsel %vm3520, 1, 0
    %v3553 = vsel %vm3521, 1, 0
    %v3554 = vsel %vm3522, 1, 0
    %v3555 = vsel %vm3523, 1, 0
    %v3556 = vsel %vm3524, 1, 0
    %v3557 = vsel %vm3525, 1, 0
    %v3558 = vsel %vm3526, 1, 0
    %v3559 = vsel %vm3527, 1, 0
    %v3560 = vsel %vm3528, 1, 0
    %v3561 = vsel %vm3529, 1, 0
    %v3562 = vsel %vm3530, 1, 0
    %v3563 = vsel %vm3531, 1, 0
    %v3564 = vsel %vm3532, 1, 0
    %v3565 = vsel %vm3533, 1, 0
    %v3566 = vsel %vm3534, 1, 0
    %v3567 = vsel %vm3535, 1, 0
    %v3568 = vsel %vm3536, 1, 0
    %v3569 = vsel %vm3537, 1, 0
    %v3570 = vsel %vm3538, 1, 0
    %v3571 = vsel %vm3539, 1, 0
    %v3572 = vsel %vm3540, 1, 0
    %v3573 = vsel %vm3541, 1, 0
    %v3574 = vsel %vm3542, 1, 0
    %v3575 = vsel %vm3543, 1, 0
    %v3576 = vcvt.s32.f32 %v3544
    %v3577 = vcvt.s32.f32 %v3545
    %v3578 = vcvt.s32.f32 %v3546
    %v3579 = vcvt.s32.f32 %v3547
    %v3580 = vcvt.s32.f32 %v3548
    %v3581 = vcvt.s32.f32 %v3549
    %v3582 = vcvt.s32.f32 %v3550
    %v3583 = vcvt.s32.f32 %v3551
    %v3584 = vcvt.s32.f32 %v3552
    %v3585 = vcvt.s32.f32 %v3553
    %v3586 = vcvt.s32.f32 %v3554
    %v3587 = vcvt.s32.f32 %v3555
    %v3588 = vcvt.s32.f32 %v3556
    %v3589 = vcvt.s32.f32 %v3557
    %v3590 = vcvt.s32.f32 %v3558
    %v3591 = vcvt.s32.f32 %v3559
    %v3592 = vcvt.s32.f32 %v3560
    %v3593 = vcvt.s32.f32 %v3561
    %v3594 = vcvt.s32.f32 %v3562
    %v3595 = vcvt.s32.f32 %v3563
    %v3596 = vcvt.s32.f32 %v3564
    %v3597 = vcvt.s32.f32 %v3565
    %v3598 = vcvt.s32.f32 %v3566
    %v3599 = vcvt.s32.f32 %v3567
    %v3600 = vcvt.s32.f32 %v3568
    %v3601 = vcvt.s32.f32 %v3569
    %v3602 = vcvt.s32.f32 %v3570
    %v3603 = vcvt.s32.f32 %v3571
    %v3604 = vcvt.s32.f32 %v3572
    %v3605 = vcvt.s32.f32 %v3573
    %v3606 = vcvt.s32.f32 %v3574
    %v3607 = vcvt.s32.f32 %v3575
    %v3608 = vpack.c.bf16 %v3576, %v3576
    %v3609 = vpack.c.bf16 %v3577, %v3577
    %v3610 = vpack.c.bf16 %v3578, %v3578
    %v3611 = vpack.c.bf16 %v3579, %v3579
    %v3612 = vpack.c.bf16 %v3580, %v3580
    %v3613 = vpack.c.bf16 %v3581, %v3581
    %v3614 = vpack.c.bf16 %v3582, %v3582
    %v3615 = vpack.c.bf16 %v3583, %v3583
    %v3616 = vpack.c.bf16 %v3584, %v3584
    %v3617 = vpack.c.bf16 %v3585, %v3585
    %v3618 = vpack.c.bf16 %v3586, %v3586
    %v3619 = vpack.c.bf16 %v3587, %v3587
    %v3620 = vpack.c.bf16 %v3588, %v3588
    %v3621 = vpack.c.bf16 %v3589, %v3589
    %v3622 = vpack.c.bf16 %v3590, %v3590
    %v3623 = vpack.c.bf16 %v3591, %v3591
    %v3624 = vpack.c.bf16 %v3592, %v3592
    %v3625 = vpack.c.bf16 %v3593, %v3593
    %v3626 = vpack.c.bf16 %v3594, %v3594
    %v3627 = vpack.c.bf16 %v3595, %v3595
    %v3628 = vpack.c.bf16 %v3596, %v3596
    %v3629 = vpack.c.bf16 %v3597, %v3597
    %v3630 = vpack.c.bf16 %v3598, %v3598
    %v3631 = vpack.c.bf16 %v3599, %v3599
    %v3632 = vpack.c.bf16 %v3600, %v3600
    %v3633 = vpack.c.bf16 %v3601, %v3601
    %v3634 = vpack.c.bf16 %v3602, %v3602
    %v3635 = vpack.c.bf16 %v3603, %v3603
    %v3636 = vpack.c.bf16 %v3604, %v3604
    %v3637 = vpack.c.bf16 %v3605, %v3605
    %v3638 = vpack.c.bf16 %v3606, %v3606
    %v3639 = vpack.c.bf16 %v3607, %v3607
    %v3672 = vunpack.c.l.b16 %v248
    %v3673 = vunpack.c.l.b16 %v249
    %v3674 = vunpack.c.l.b16 %v250
    %v3675 = vunpack.c.l.b16 %v251
    %v3676 = vunpack.c.l.b16 %v252
    %v3677 = vunpack.c.l.b16 %v253
    %v3678 = vunpack.c.l.b16 %v254
    %v3679 = vunpack.c.l.b16 %v255
    %v3680 = vunpack.c.l.b16 %v256
    %v3681 = vunpack.c.l.b16 %v257
    %v3682 = vunpack.c.l.b16 %v258
    %v3683 = vunpack.c.l.b16 %v259
    %v3684 = vunpack.c.l.b16 %v260
    %v3685 = vunpack.c.l.b16 %v261
    %v3686 = vunpack.c.l.b16 %v262
    %v3687 = vunpack.c.l.b16 %v263
    %v3688 = vunpack.c.l.b16 %v264
    %v3689 = vunpack.c.l.b16 %v265
    %v3690 = vunpack.c.l.b16 %v266
    %v3691 = vunpack.c.l.b16 %v267
    %v3692 = vunpack.c.l.b16 %v268
    %v3693 = vunpack.c.l.b16 %v269
    %v3694 = vunpack.c.l.b16 %v270
    %v3695 = vunpack.c.l.b16 %v271
    %v3696 = vunpack.c.l.b16 %v272
    %v3697 = vunpack.c.l.b16 %v273
    %v3698 = vunpack.c.l.b16 %v274
    %v3699 = vunpack.c.l.b16 %v275
    %v3700 = vunpack.c.l.b16 %v276
    %v3701 = vunpack.c.l.b16 %v277
    %v3702 = vunpack.c.l.b16 %v278
    %v3703 = vunpack.c.l.b16 %v279
    %v3704 = vpack.c.b16 %v3673, %v3672
    %v3705 = vpack.c.b16 %v3675, %v3674
    %v3706 = vpack.c.b16 %v3677, %v3676
    %v3707 = vpack.c.b16 %v3679, %v3678
    %v3708 = vpack.c.b16 %v3681, %v3680
    %v3709 = vpack.c.b16 %v3683, %v3682
    %v3710 = vpack.c.b16 %v3685, %v3684
    %v3711 = vpack.c.b16 %v3687, %v3686
    %v3712 = vpack.c.b16 %v3689, %v3688
    %v3713 = vpack.c.b16 %v3691, %v3690
    %v3714 = vpack.c.b16 %v3693, %v3692
    %v3715 = vpack.c.b16 %v3695, %v3694
    %v3716 = vpack.c.b16 %v3697, %v3696
    %v3717 = vpack.c.b16 %v3699, %v3698
    %v3718 = vpack.c.b16 %v3701, %v3700
    %v3719 = vpack.c.b16 %v3703, %v3702
    %v3752 = vunpack.c.l.b16 %v472
    %v3753 = vunpack.c.l.b16 %v473
    %v3754 = vunpack.c.l.b16 %v474
    %v3755 = vunpack.c.l.b16 %v475
    %v3756 = vunpack.c.l.b16 %v476
    %v3757 = vunpack.c.l.b16 %v477
    %v3758 = vunpack.c.l.b16 %v478
    %v3759 = vunpack.c.l.b16 %v479
    %v3760 = vunpack.c.l.b16 %v480
    %v3761 = vunpack.c.l.b16 %v481
    %v3762 = vunpack.c.l.b16 %v482
    %v3763 = vunpack.c.l.b16 %v483
    %v3764 = vunpack.c.l.b16 %v484
    %v3765 = vunpack.c.l.b16 %v485
    %v3766 = vunpack.c.l.b16 %v486
    %v3767 = vunpack.c.l.b16 %v487
    %v3768 = vunpack.c.l.b16 %v488
    %v3769 = vunpack.c.l.b16 %v489
    %v3770 = vunpack.c.l.b16 %v490
    %v3771 = vunpack.c.l.b16 %v491
    %v3772 = vunpack.c.l.b16 %v492
    %v3773 = vunpack.c.l.b16 %v493
    %v3774 = vunpack.c.l.b16 %v494
    %v3775 = vunpack.c.l.b16 %v495
    %v3776 = vunpack.c.l.b16 %v496
    %v3777 = vunpack.c.l.b16 %v497
    %v3778 = vunpack.c.l.b16 %v498
    %v3779 = vunpack.c.l.b16 %v499
    %v3780 = vunpack.c.l.b16 %v500
    %v3781 = vunpack.c.l.b16 %v501
    %v3782 = vunpack.c.l.b16 %v502
    %v3783 = vunpack.c.l.b16 %v503
    %v3784 = vpack.c.b16 %v3753, %v3752
    %v3785 = vpack.c.b16 %v3755, %v3754
    %v3786 = vpack.c.b16 %v3757, %v3756
    %v3787 = vpack.c.b16 %v3759, %v3758
    %v3788 = vpack.c.b16 %v3761, %v3760
    %v3789 = vpack.c.b16 %v3763, %v3762
    %v3790 = vpack.c.b16 %v3765, %v3764
    %v3791 = vpack.c.b16 %v3767, %v3766
    %v3792 = vpack.c.b16 %v3769, %v3768
    %v3793 = vpack.c.b16 %v3771, %v3770
    %v3794 = vpack.c.b16 %v3773, %v3772
    %v3795 = vpack.c.b16 %v3775, %v3774
    %v3796 = vpack.c.b16 %v3777, %v3776
    %v3797 = vpack.c.b16 %v3779, %v3778
    %v3798 = vpack.c.b16 %v3781, %v3780
    %v3799 = vpack.c.b16 %v3783, %v3782
    %3800 = vrot.lane.b32.xlu0 %v3784, 16
    %v3801 = vpop.permute.xlu0 %3800
    %3802 = vrot.lane.b32.xlu0 %v3785, 16
    %v3803 = vpop.permute.xlu0 %3802
    %3804 = vrot.lane.b32.xlu0 %v3786, 16
    %v3805 = vpop.permute.xlu0 %3804
    %3806 = vrot.lane.b32.xlu0 %v3787, 16
    %v3807 = vpop.permute.xlu0 %3806
    %3808 = vrot.lane.b32.xlu0 %v3788, 16
    %v3809 = vpop.permute.xlu0 %3808
    %3810 = vrot.lane.b32.xlu0 %v3789, 16
    %v3811 = vpop.permute.xlu0 %3810
    %3812 = vrot.lane.b32.xlu0 %v3790, 16
    %v3813 = vpop.permute.xlu0 %3812
    %3814 = vrot.lane.b32.xlu0 %v3791, 16
    %v3815 = vpop.permute.xlu0 %3814
    %3816 = vrot.lane.b32.xlu0 %v3792, 16
    %v3817 = vpop.permute.xlu0 %3816
    %3818 = vrot.lane.b32.xlu0 %v3793, 16
    %v3819 = vpop.permute.xlu0 %3818
    %3820 = vrot.lane.b32.xlu0 %v3794, 16
    %v3821 = vpop.permute.xlu0 %3820
    %3822 = vrot.lane.b32.xlu0 %v3795, 16
    %v3823 = vpop.permute.xlu0 %3822
    %3824 = vrot.lane.b32.xlu0 %v3796, 16
    %v3825 = vpop.permute.xlu0 %3824
    %3826 = vrot.lane.b32.xlu0 %v3797, 16
    %v3827 = vpop.permute.xlu0 %3826
    %3828 = vrot.lane.b32.xlu0 %v3798, 16
    %v3829 = vpop.permute.xlu0 %3828
    %3830 = vrot.lane.b32.xlu0 %v3799, 16
    %v3831 = vpop.permute.xlu0 %3830
    %v3864 = vunpack.c.l.b16 %v696
    %v3865 = vunpack.c.l.b16 %v697
    %v3866 = vunpack.c.l.b16 %v698
    %v3867 = vunpack.c.l.b16 %v699
    %v3868 = vunpack.c.l.b16 %v700
    %v3869 = vunpack.c.l.b16 %v701
    %v3870 = vunpack.c.l.b16 %v702
    %v3871 = vunpack.c.l.b16 %v703
    %v3872 = vunpack.c.l.b16 %v704
    %v3873 = vunpack.c.l.b16 %v705
    %v3874 = vunpack.c.l.b16 %v706
    %v3875 = vunpack.c.l.b16 %v707
    %v3876 = vunpack.c.l.b16 %v708
    %v3877 = vunpack.c.l.b16 %v709
    %v3878 = vunpack.c.l.b16 %v710
    %v3879 = vunpack.c.l.b16 %v711
    %v3880 = vunpack.c.l.b16 %v712
    %v3881 = vunpack.c.l.b16 %v713
    %v3882 = vunpack.c.l.b16 %v714
    %v3883 = vunpack.c.l.b16 %v715
    %v3884 = vunpack.c.l.b16 %v716
    %v3885 = vunpack.c.l.b16 %v717
    %v3886 = vunpack.c.l.b16 %v718
    %v3887 = vunpack.c.l.b16 %v719
    %v3888 = vunpack.c.l.b16 %v720
    %v3889 = vunpack.c.l.b16 %v721
    %v3890 = vunpack.c.l.b16 %v722
    %v3891 = vunpack.c.l.b16 %v723
    %v3892 = vunpack.c.l.b16 %v724
    %v3893 = vunpack.c.l.b16 %v725
    %v3894 = vunpack.c.l.b16 %v726
    %v3895 = vunpack.c.l.b16 %v727
    %v3896 = vpack.c.b16 %v3865, %v3864
    %v3897 = vpack.c.b16 %v3867, %v3866
    %v3898 = vpack.c.b16 %v3869, %v3868
    %v3899 = vpack.c.b16 %v3871, %v3870
    %v3900 = vpack.c.b16 %v3873, %v3872
    %v3901 = vpack.c.b16 %v3875, %v3874
    %v3902 = vpack.c.b16 %v3877, %v3876
    %v3903 = vpack.c.b16 %v3879, %v3878
    %v3904 = vpack.c.b16 %v3881, %v3880
    %v3905 = vpack.c.b16 %v3883, %v3882
    %v3906 = vpack.c.b16 %v3885, %v3884
    %v3907 = vpack.c.b16 %v3887, %v3886
    %v3908 = vpack.c.b16 %v3889, %v3888
    %v3909 = vpack.c.b16 %v3891, %v3890
    %v3910 = vpack.c.b16 %v3893, %v3892
    %v3911 = vpack.c.b16 %v3895, %v3894
    %3912 = vrot.lane.b32.xlu0 %v3896, 32
    %v3913 = vpop.permute.xlu0 %3912
    %3914 = vrot.lane.b32.xlu0 %v3897, 32
    %v3915 = vpop.permute.xlu0 %3914
    %3916 = vrot.lane.b32.xlu0 %v3898, 32
    %v3917 = vpop.permute.xlu0 %3916
    %3918 = vrot.lane.b32.xlu0 %v3899, 32
    %v3919 = vpop.permute.xlu0 %3918
    %3920 = vrot.lane.b32.xlu0 %v3900, 32
    %v3921 = vpop.permute.xlu0 %3920
    %3922 = vrot.lane.b32.xlu0 %v3901, 32
    %v3923 = vpop.permute.xlu0 %3922
    %3924 = vrot.lane.b32.xlu0 %v3902, 32
    %v3925 = vpop.permute.xlu0 %3924
    %3926 = vrot.lane.b32.xlu0 %v3903, 32
    %v3927 = vpop.permute.xlu0 %3926
    %3928 = vrot.lane.b32.xlu0 %v3904, 32
    %v3929 = vpop.permute.xlu0 %3928
    %3930 = vrot.lane.b32.xlu0 %v3905, 32
    %v3931 = vpop.permute.xlu0 %3930
    %3932 = vrot.lane.b32.xlu0 %v3906, 32
    %v3933 = vpop.permute.xlu0 %3932
    %3934 = vrot.lane.b32.xlu0 %v3907, 32
    %v3935 = vpop.permute.xlu0 %3934
    %3936 = vrot.lane.b32.xlu0 %v3908, 32
    %v3937 = vpop.permute.xlu0 %3936
    %3938 = vrot.lane.b32.xlu0 %v3909, 32
    %v3939 = vpop.permute.xlu0 %3938
    %3940 = vrot.lane.b32.xlu0 %v3910, 32
    %v3941 = vpop.permute.xlu0 %3940
    %3942 = vrot.lane.b32.xlu0 %v3911, 32
    %v3943 = vpop.permute.xlu0 %3942
    %v3976 = vunpack.c.l.b16 %v920
    %v3977 = vunpack.c.l.b16 %v921
    %v3978 = vunpack.c.l.b16 %v922
    %v3979 = vunpack.c.l.b16 %v923
    %v3980 = vunpack.c.l.b16 %v924
    %v3981 = vunpack.c.l.b16 %v925
    %v3982 = vunpack.c.l.b16 %v926
    %v3983 = vunpack.c.l.b16 %v927
    %v3984 = vunpack.c.l.b16 %v928
    %v3985 = vunpack.c.l.b16 %v929
    %v3986 = vunpack.c.l.b16 %v930
    %v3987 = vunpack.c.l.b16 %v931
    %v3988 = vunpack.c.l.b16 %v932
    %v3989 = vunpack.c.l.b16 %v933
    %v3990 = vunpack.c.l.b16 %v934
    %v3991 = vunpack.c.l.b16 %v935
    %v3992 = vunpack.c.l.b16 %v936
    %v3993 = vunpack.c.l.b16 %v937
    %v3994 = vunpack.c.l.b16 %v938
    %v3995 = vunpack.c.l.b16 %v939
    %v3996 = vunpack.c.l.b16 %v940
    %v3997 = vunpack.c.l.b16 %v941
    %v3998 = vunpack.c.l.b16 %v942
    %v3999 = vunpack.c.l.b16 %v943
    %v4000 = vunpack.c.l.b16 %v944
    %v4001 = vunpack.c.l.b16 %v945
    %v4002 = vunpack.c.l.b16 %v946
    %v4003 = vunpack.c.l.b16 %v947
    %v4004 = vunpack.c.l.b16 %v948
    %v4005 = vunpack.c.l.b16 %v949
    %v4006 = vunpack.c.l.b16 %v950
    %v4007 = vunpack.c.l.b16 %v951
    %v4008 = vpack.c.b16 %v3977, %v3976
    %v4009 = vpack.c.b16 %v3979, %v3978
    %v4010 = vpack.c.b16 %v3981, %v3980
    %v4011 = vpack.c.b16 %v3983, %v3982
    %v4012 = vpack.c.b16 %v3985, %v3984
    %v4013 = vpack.c.b16 %v3987, %v3986
    %v4014 = vpack.c.b16 %v3989, %v3988
    %v4015 = vpack.c.b16 %v3991, %v3990
    %v4016 = vpack.c.b16 %v3993, %v3992
    %v4017 = vpack.c.b16 %v3995, %v3994
    %v4018 = vpack.c.b16 %v3997, %v3996
    %v4019 = vpack.c.b16 %v3999, %v3998
    %v4020 = vpack.c.b16 %v4001, %v4000
    %v4021 = vpack.c.b16 %v4003, %v4002
    %v4022 = vpack.c.b16 %v4005, %v4004
    %v4023 = vpack.c.b16 %v4007, %v4006
    %4024 = vrot.lane.b32.xlu0 %v4008, 48
    %v4025 = vpop.permute.xlu0 %4024
    %4026 = vrot.lane.b32.xlu0 %v4009, 48
    %v4027 = vpop.permute.xlu0 %4026
    %4028 = vrot.lane.b32.xlu0 %v4010, 48
    %v4029 = vpop.permute.xlu0 %4028
    %4030 = vrot.lane.b32.xlu0 %v4011, 48
    %v4031 = vpop.permute.xlu0 %4030
    %4032 = vrot.lane.b32.xlu0 %v4012, 48
    %v4033 = vpop.permute.xlu0 %4032
    %4034 = vrot.lane.b32.xlu0 %v4013, 48
    %v4035 = vpop.permute.xlu0 %4034
    %4036 = vrot.lane.b32.xlu0 %v4014, 48
    %v4037 = vpop.permute.xlu0 %4036
    %4038 = vrot.lane.b32.xlu0 %v4015, 48
    %v4039 = vpop.permute.xlu0 %4038
    %4040 = vrot.lane.b32.xlu0 %v4016, 48
    %v4041 = vpop.permute.xlu0 %4040
    %4042 = vrot.lane.b32.xlu0 %v4017, 48
    %v4043 = vpop.permute.xlu0 %4042
    %4044 = vrot.lane.b32.xlu0 %v4018, 48
    %v4045 = vpop.permute.xlu0 %4044
    %4046 = vrot.lane.b32.xlu0 %v4019, 48
    %v4047 = vpop.permute.xlu0 %4046
    %4048 = vrot.lane.b32.xlu0 %v4020, 48
    %v4049 = vpop.permute.xlu0 %4048
    %4050 = vrot.lane.b32.xlu0 %v4021, 48
    %v4051 = vpop.permute.xlu0 %4050
    %4052 = vrot.lane.b32.xlu0 %v4022, 48
    %v4053 = vpop.permute.xlu0 %4052
    %4054 = vrot.lane.b32.xlu0 %v4023, 48
    %v4055 = vpop.permute.xlu0 %4054
    %v4088 = vunpack.c.l.b16 %v1144
    %v4089 = vunpack.c.l.b16 %v1145
    %v4090 = vunpack.c.l.b16 %v1146
    %v4091 = vunpack.c.l.b16 %v1147
    %v4092 = vunpack.c.l.b16 %v1148
    %v4093 = vunpack.c.l.b16 %v1149
    %v4094 = vunpack.c.l.b16 %v1150
    %v4095 = vunpack.c.l.b16 %v1151
    %v4096 = vunpack.c.l.b16 %v1152
    %v4097 = vunpack.c.l.b16 %v1153
    %v4098 = vunpack.c.l.b16 %v1154
    %v4099 = vunpack.c.l.b16 %v1155
    %v4100 = vunpack.c.l.b16 %v1156
    %v4101 = vunpack.c.l.b16 %v1157
    %v4102 = vunpack.c.l.b16 %v1158
    %v4103 = vunpack.c.l.b16 %v1159
    %v4104 = vunpack.c.l.b16 %v1160
    %v4105 = vunpack.c.l.b16 %v1161
    %v4106 = vunpack.c.l.b16 %v1162
    %v4107 = vunpack.c.l.b16 %v1163
    %v4108 = vunpack.c.l.b16 %v1164
    %v4109 = vunpack.c.l.b16 %v1165
    %v4110 = vunpack.c.l.b16 %v1166
    %v4111 = vunpack.c.l.b16 %v1167
    %v4112 = vunpack.c.l.b16 %v1168
    %v4113 = vunpack.c.l.b16 %v1169
    %v4114 = vunpack.c.l.b16 %v1170
    %v4115 = vunpack.c.l.b16 %v1171
    %v4116 = vunpack.c.l.b16 %v1172
    %v4117 = vunpack.c.l.b16 %v1173
    %v4118 = vunpack.c.l.b16 %v1174
    %v4119 = vunpack.c.l.b16 %v1175
    %v4120 = vpack.c.b16 %v4089, %v4088
    %v4121 = vpack.c.b16 %v4091, %v4090
    %v4122 = vpack.c.b16 %v4093, %v4092
    %v4123 = vpack.c.b16 %v4095, %v4094
    %v4124 = vpack.c.b16 %v4097, %v4096
    %v4125 = vpack.c.b16 %v4099, %v4098
    %v4126 = vpack.c.b16 %v4101, %v4100
    %v4127 = vpack.c.b16 %v4103, %v4102
    %v4128 = vpack.c.b16 %v4105, %v4104
    %v4129 = vpack.c.b16 %v4107, %v4106
    %v4130 = vpack.c.b16 %v4109, %v4108
    %v4131 = vpack.c.b16 %v4111, %v4110
    %v4132 = vpack.c.b16 %v4113, %v4112
    %v4133 = vpack.c.b16 %v4115, %v4114
    %v4134 = vpack.c.b16 %v4117, %v4116
    %v4135 = vpack.c.b16 %v4119, %v4118
    %4136 = vrot.lane.b32.xlu0 %v4120, 64
    %v4137 = vpop.permute.xlu0 %4136
    %4138 = vrot.lane.b32.xlu0 %v4121, 64
    %v4139 = vpop.permute.xlu0 %4138
    %4140 = vrot.lane.b32.xlu0 %v4122, 64
    %v4141 = vpop.permute.xlu0 %4140
    %4142 = vrot.lane.b32.xlu0 %v4123, 64
    %v4143 = vpop.permute.xlu0 %4142
    %4144 = vrot.lane.b32.xlu0 %v4124, 64
    %v4145 = vpop.permute.xlu0 %4144
    %4146 = vrot.lane.b32.xlu0 %v4125, 64
    %v4147 = vpop.permute.xlu0 %4146
    %4148 = vrot.lane.b32.xlu0 %v4126, 64
    %v4149 = vpop.permute.xlu0 %4148
    %4150 = vrot.lane.b32.xlu0 %v4127, 64
    %v4151 = vpop.permute.xlu0 %4150
    %4152 = vrot.lane.b32.xlu0 %v4128, 64
    %v4153 = vpop.permute.xlu0 %4152
    %4154 = vrot.lane.b32.xlu0 %v4129, 64
    %v4155 = vpop.permute.xlu0 %4154
    %4156 = vrot.lane.b32.xlu0 %v4130, 64
    %v4157 = vpop.permute.xlu0 %4156
    %4158 = vrot.lane.b32.xlu0 %v4131, 64
    %v4159 = vpop.permute.xlu0 %4158
    %4160 = vrot.lane.b32.xlu0 %v4132, 64
    %v4161 = vpop.permute.xlu0 %4160
    %4162 = vrot.lane.b32.xlu0 %v4133, 64
    %v4163 = vpop.permute.xlu0 %4162
    %4164 = vrot.lane.b32.xlu0 %v4134, 64
    %v4165 = vpop.permute.xlu0 %4164
    %4166 = vrot.lane.b32.xlu0 %v4135, 64
    %v4167 = vpop.permute.xlu0 %4166
    %v4200 = vunpack.c.l.b16 %v1368
    %v4201 = vunpack.c.l.b16 %v1369
    %v4202 = vunpack.c.l.b16 %v1370
    %v4203 = vunpack.c.l.b16 %v1371
    %v4204 = vunpack.c.l.b16 %v1372
    %v4205 = vunpack.c.l.b16 %v1373
    %v4206 = vunpack.c.l.b16 %v1374
    %v4207 = vunpack.c.l.b16 %v1375
    %v4208 = vunpack.c.l.b16 %v1376
    %v4209 = vunpack.c.l.b16 %v1377
    %v4210 = vunpack.c.l.b16 %v1378
    %v4211 = vunpack.c.l.b16 %v1379
    %v4212 = vunpack.c.l.b16 %v1380
    %v4213 = vunpack.c.l.b16 %v1381
    %v4214 = vunpack.c.l.b16 %v1382
    %v4215 = vunpack.c.l.b16 %v1383
    %v4216 = vunpack.c.l.b16 %v1384
    %v4217 = vunpack.c.l.b16 %v1385
    %v4218 = vunpack.c.l.b16 %v1386
    %v4219 = vunpack.c.l.b16 %v1387
    %v4220 = vunpack.c.l.b16 %v1388
    %v4221 = vunpack.c.l.b16 %v1389
    %v4222 = vunpack.c.l.b16 %v1390
    %v4223 = vunpack.c.l.b16 %v1391
    %v4224 = vunpack.c.l.b16 %v1392
    %v4225 = vunpack.c.l.b16 %v1393
    %v4226 = vunpack.c.l.b16 %v1394
    %v4227 = vunpack.c.l.b16 %v1395
    %v4228 = vunpack.c.l.b16 %v1396
    %v4229 = vunpack.c.l.b16 %v1397
    %v4230 = vunpack.c.l.b16 %v1398
    %v4231 = vunpack.c.l.b16 %v1399
    %v4232 = vpack.c.b16 %v4201, %v4200
    %v4233 = vpack.c.b16 %v4203, %v4202
    %v4234 = vpack.c.b16 %v4205, %v4204
    %v4235 = vpack.c.b16 %v4207, %v4206
    %v4236 = vpack.c.b16 %v4209, %v4208
    %v4237 = vpack.c.b16 %v4211, %v4210
    %v4238 = vpack.c.b16 %v4213, %v4212
    %v4239 = vpack.c.b16 %v4215, %v4214
    %v4240 = vpack.c.b16 %v4217, %v4216
    %v4241 = vpack.c.b16 %v4219, %v4218
    %v4242 = vpack.c.b16 %v4221, %v4220
    %v4243 = vpack.c.b16 %v4223, %v4222
    %v4244 = vpack.c.b16 %v4225, %v4224
    %v4245 = vpack.c.b16 %v4227, %v4226
    %v4246 = vpack.c.b16 %v4229, %v4228
    %v4247 = vpack.c.b16 %v4231, %v4230
    %4248 = vrot.lane.b32.xlu0 %v4232, 80
    %v4249 = vpop.permute.xlu0 %4248
    %4250 = vrot.lane.b32.xlu0 %v4233, 80
    %v4251 = vpop.permute.xlu0 %4250
    %4252 = vrot.lane.b32.xlu0 %v4234, 80
    %v4253 = vpop.permute.xlu0 %4252
    %4254 = vrot.lane.b32.xlu0 %v4235, 80
    %v4255 = vpop.permute.xlu0 %4254
    %4256 = vrot.lane.b32.xlu0 %v4236, 80
    %v4257 = vpop.permute.xlu0 %4256
    %4258 = vrot.lane.b32.xlu0 %v4237, 80
    %v4259 = vpop.permute.xlu0 %4258
    %4260 = vrot.lane.b32.xlu0 %v4238, 80
    %v4261 = vpop.permute.xlu0 %4260
    %4262 = vrot.lane.b32.xlu0 %v4239, 80
    %v4263 = vpop.permute.xlu0 %4262
    %4264 = vrot.lane.b32.xlu0 %v4240, 80
    %v4265 = vpop.permute.xlu0 %4264
    %4266 = vrot.lane.b32.xlu0 %v4241, 80
    %v4267 = vpop.permute.xlu0 %4266
    %4268 = vrot.lane.b32.xlu0 %v4242, 80
    %v4269 = vpop.permute.xlu0 %4268
    %4270 = vrot.lane.b32.xlu0 %v4243, 80
    %v4271 = vpop.permute.xlu0 %4270
    %4272 = vrot.lane.b32.xlu0 %v4244, 80
    %v4273 = vpop.permute.xlu0 %4272
    %4274 = vrot.lane.b32.xlu0 %v4245, 80
    %v4275 = vpop.permute.xlu0 %4274
    %4276 = vrot.lane.b32.xlu0 %v4246, 80
    %v4277 = vpop.permute.xlu0 %4276
    %4278 = vrot.lane.b32.xlu0 %v4247, 80
    %v4279 = vpop.permute.xlu0 %4278
    %v4312 = vunpack.c.l.b16 %v1592
    %v4313 = vunpack.c.l.b16 %v1593
    %v4314 = vunpack.c.l.b16 %v1594
    %v4315 = vunpack.c.l.b16 %v1595
    %v4316 = vunpack.c.l.b16 %v1596
    %v4317 = vunpack.c.l.b16 %v1597
    %v4318 = vunpack.c.l.b16 %v1598
    %v4319 = vunpack.c.l.b16 %v1599
    %v4320 = vunpack.c.l.b16 %v1600
    %v4321 = vunpack.c.l.b16 %v1601
    %v4322 = vunpack.c.l.b16 %v1602
    %v4323 = vunpack.c.l.b16 %v1603
    %v4324 = vunpack.c.l.b16 %v1604
    %v4325 = vunpack.c.l.b16 %v1605
    %v4326 = vunpack.c.l.b16 %v1606
    %v4327 = vunpack.c.l.b16 %v1607
    %v4328 = vunpack.c.l.b16 %v1608
    %v4329 = vunpack.c.l.b16 %v1609
    %v4330 = vunpack.c.l.b16 %v1610
    %v4331 = vunpack.c.l.b16 %v1611
    %v4332 = vunpack.c.l.b16 %v1612
    %v4333 = vunpack.c.l.b16 %v1613
    %v4334 = vunpack.c.l.b16 %v1614
    %v4335 = vunpack.c.l.b16 %v1615
    %v4336 = vunpack.c.l.b16 %v1616
    %v4337 = vunpack.c.l.b16 %v1617
    %v4338 = vunpack.c.l.b16 %v1618
    %v4339 = vunpack.c.l.b16 %v1619
    %v4340 = vunpack.c.l.b16 %v1620
    %v4341 = vunpack.c.l.b16 %v1621
    %v4342 = vunpack.c.l.b16 %v1622
    %v4343 = vunpack.c.l.b16 %v1623
    %v4344 = vpack.c.b16 %v4313, %v4312
    %v4345 = vpack.c.b16 %v4315, %v4314
    %v4346 = vpack.c.b16 %v4317, %v4316
    %v4347 = vpack.c.b16 %v4319, %v4318
    %v4348 = vpack.c.b16 %v4321, %v4320
    %v4349 = vpack.c.b16 %v4323, %v4322
    %v4350 = vpack.c.b16 %v4325, %v4324
    %v4351 = vpack.c.b16 %v4327, %v4326
    %v4352 = vpack.c.b16 %v4329, %v4328
    %v4353 = vpack.c.b16 %v4331, %v4330
    %v4354 = vpack.c.b16 %v4333, %v4332
    %v4355 = vpack.c.b16 %v4335, %v4334
    %v4356 = vpack.c.b16 %v4337, %v4336
    %v4357 = vpack.c.b16 %v4339, %v4338
    %v4358 = vpack.c.b16 %v4341, %v4340
    %v4359 = vpack.c.b16 %v4343, %v4342
    %4360 = vrot.lane.b32.xlu0 %v4344, 96
    %v4361 = vpop.permute.xlu0 %4360
    %4362 = vrot.lane.b32.xlu0 %v4345, 96
    %v4363 = vpop.permute.xlu0 %4362
    %4364 = vrot.lane.b32.xlu0 %v4346, 96
    %v4365 = vpop.permute.xlu0 %4364
    %4366 = vrot.lane.b32.xlu0 %v4347, 96
    %v4367 = vpop.permute.xlu0 %4366
    %4368 = vrot.lane.b32.xlu0 %v4348, 96
    %v4369 = vpop.permute.xlu0 %4368
    %4370 = vrot.lane.b32.xlu0 %v4349, 96
    %v4371 = vpop.permute.xlu0 %4370
    %4372 = vrot.lane.b32.xlu0 %v4350, 96
    %v4373 = vpop.permute.xlu0 %4372
    %4374 = vrot.lane.b32.xlu0 %v4351, 96
    %v4375 = vpop.permute.xlu0 %4374
    %4376 = vrot.lane.b32.xlu0 %v4352, 96
    %v4377 = vpop.permute.xlu0 %4376
    %4378 = vrot.lane.b32.xlu0 %v4353, 96
    %v4379 = vpop.permute.xlu0 %4378
    %4380 = vrot.lane.b32.xlu0 %v4354, 96
    %v4381 = vpop.permute.xlu0 %4380
    %4382 = vrot.lane.b32.xlu0 %v4355, 96
    %v4383 = vpop.permute.xlu0 %4382
    %4384 = vrot.lane.b32.xlu0 %v4356, 96
    %v4385 = vpop.permute.xlu0 %4384
    %4386 = vrot.lane.b32.xlu0 %v4357, 96
    %v4387 = vpop.permute.xlu0 %4386
    %4388 = vrot.lane.b32.xlu0 %v4358, 96
    %v4389 = vpop.permute.xlu0 %4388
    %4390 = vrot.lane.b32.xlu0 %v4359, 96
    %v4391 = vpop.permute.xlu0 %4390
    %v4424 = vunpack.c.l.b16 %v1816
    %v4425 = vunpack.c.l.b16 %v1817
    %v4426 = vunpack.c.l.b16 %v1818
    %v4427 = vunpack.c.l.b16 %v1819
    %v4428 = vunpack.c.l.b16 %v1820
    %v4429 = vunpack.c.l.b16 %v1821
    %v4430 = vunpack.c.l.b16 %v1822
    %v4431 = vunpack.c.l.b16 %v1823
    %v4432 = vunpack.c.l.b16 %v1824
    %v4433 = vunpack.c.l.b16 %v1825
    %v4434 = vunpack.c.l.b16 %v1826
    %v4435 = vunpack.c.l.b16 %v1827
    %v4436 = vunpack.c.l.b16 %v1828
    %v4437 = vunpack.c.l.b16 %v1829
    %v4438 = vunpack.c.l.b16 %v1830
    %v4439 = vunpack.c.l.b16 %v1831
    %v4440 = vunpack.c.l.b16 %v1832
    %v4441 = vunpack.c.l.b16 %v1833
    %v4442 = vunpack.c.l.b16 %v1834
    %v4443 = vunpack.c.l.b16 %v1835
    %v4444 = vunpack.c.l.b16 %v1836
    %v4445 = vunpack.c.l.b16 %v1837
    %v4446 = vunpack.c.l.b16 %v1838
    %v4447 = vunpack.c.l.b16 %v1839
    %v4448 = vunpack.c.l.b16 %v1840
    %v4449 = vunpack.c.l.b16 %v1841
    %v4450 = vunpack.c.l.b16 %v1842
    %v4451 = vunpack.c.l.b16 %v1843
    %v4452 = vunpack.c.l.b16 %v1844
    %v4453 = vunpack.c.l.b16 %v1845
    %v4454 = vunpack.c.l.b16 %v1846
    %v4455 = vunpack.c.l.b16 %v1847
    %v4456 = vpack.c.b16 %v4425, %v4424
    %v4457 = vpack.c.b16 %v4427, %v4426
    %v4458 = vpack.c.b16 %v4429, %v4428
    %v4459 = vpack.c.b16 %v4431, %v4430
    %v4460 = vpack.c.b16 %v4433, %v4432
    %v4461 = vpack.c.b16 %v4435, %v4434
    %v4462 = vpack.c.b16 %v4437, %v4436
    %v4463 = vpack.c.b16 %v4439, %v4438
    %v4464 = vpack.c.b16 %v4441, %v4440
    %v4465 = vpack.c.b16 %v4443, %v4442
    %v4466 = vpack.c.b16 %v4445, %v4444
    %v4467 = vpack.c.b16 %v4447, %v4446
    %v4468 = vpack.c.b16 %v4449, %v4448
    %v4469 = vpack.c.b16 %v4451, %v4450
    %v4470 = vpack.c.b16 %v4453, %v4452
    %v4471 = vpack.c.b16 %v4455, %v4454
    %4472 = vrot.lane.b32.xlu0 %v4456, 112
    %v4473 = vpop.permute.xlu0 %4472
    %4474 = vrot.lane.b32.xlu0 %v4457, 112
    %v4475 = vpop.permute.xlu0 %4474
    %4476 = vrot.lane.b32.xlu0 %v4458, 112
    %v4477 = vpop.permute.xlu0 %4476
    %4478 = vrot.lane.b32.xlu0 %v4459, 112
    %v4479 = vpop.permute.xlu0 %4478
    %4480 = vrot.lane.b32.xlu0 %v4460, 112
    %v4481 = vpop.permute.xlu0 %4480
    %4482 = vrot.lane.b32.xlu0 %v4461, 112
    %v4483 = vpop.permute.xlu0 %4482
    %4484 = vrot.lane.b32.xlu0 %v4462, 112
    %v4485 = vpop.permute.xlu0 %4484
    %4486 = vrot.lane.b32.xlu0 %v4463, 112
    %v4487 = vpop.permute.xlu0 %4486
    %4488 = vrot.lane.b32.xlu0 %v4464, 112
    %v4489 = vpop.permute.xlu0 %4488
    %4490 = vrot.lane.b32.xlu0 %v4465, 112
    %v4491 = vpop.permute.xlu0 %4490
    %4492 = vrot.lane.b32.xlu0 %v4466, 112
    %v4493 = vpop.permute.xlu0 %4492
    %4494 = vrot.lane.b32.xlu0 %v4467, 112
    %v4495 = vpop.permute.xlu0 %4494
    %4496 = vrot.lane.b32.xlu0 %v4468, 112
    %v4497 = vpop.permute.xlu0 %4496
    %4498 = vrot.lane.b32.xlu0 %v4469, 112
    %v4499 = vpop.permute.xlu0 %4498
    %4500 = vrot.lane.b32.xlu0 %v4470, 112
    %v4501 = vpop.permute.xlu0 %4500
    %4502 = vrot.lane.b32.xlu0 %v4471, 112
    %v4503 = vpop.permute.xlu0 %4502
    %v4536 = vunpack.c.l.b16 %v2040
    %v4537 = vunpack.c.l.b16 %v2041
    %v4538 = vunpack.c.l.b16 %v2042
    %v4539 = vunpack.c.l.b16 %v2043
    %v4540 = vunpack.c.l.b16 %v2044
    %v4541 = vunpack.c.l.b16 %v2045
    %v4542 = vunpack.c.l.b16 %v2046
    %v4543 = vunpack.c.l.b16 %v2047
    %v4544 = vunpack.c.l.b16 %v2048
    %v4545 = vunpack.c.l.b16 %v2049
    %v4546 = vunpack.c.l.b16 %v2050
    %v4547 = vunpack.c.l.b16 %v2051
    %v4548 = vunpack.c.l.b16 %v2052
    %v4549 = vunpack.c.l.b16 %v2053
    %v4550 = vunpack.c.l.b16 %v2054
    %v4551 = vunpack.c.l.b16 %v2055
    %v4552 = vunpack.c.l.b16 %v2056
    %v4553 = vunpack.c.l.b16 %v2057
    %v4554 = vunpack.c.l.b16 %v2058
    %v4555 = vunpack.c.l.b16 %v2059
    %v4556 = vunpack.c.l.b16 %v2060
    %v4557 = vunpack.c.l.b16 %v2061
    %v4558 = vunpack.c.l.b16 %v2062
    %v4559 = vunpack.c.l.b16 %v2063
    %v4560 = vunpack.c.l.b16 %v2064
    %v4561 = vunpack.c.l.b16 %v2065
    %v4562 = vunpack.c.l.b16 %v2066
    %v4563 = vunpack.c.l.b16 %v2067
    %v4564 = vunpack.c.l.b16 %v2068
    %v4565 = vunpack.c.l.b16 %v2069
    %v4566 = vunpack.c.l.b16 %v2070
    %v4567 = vunpack.c.l.b16 %v2071
    %v4568 = vpack.c.b16 %v4537, %v4536
    %v4569 = vpack.c.b16 %v4539, %v4538
    %v4570 = vpack.c.b16 %v4541, %v4540
    %v4571 = vpack.c.b16 %v4543, %v4542
    %v4572 = vpack.c.b16 %v4545, %v4544
    %v4573 = vpack.c.b16 %v4547, %v4546
    %v4574 = vpack.c.b16 %v4549, %v4548
    %v4575 = vpack.c.b16 %v4551, %v4550
    %v4576 = vpack.c.b16 %v4553, %v4552
    %v4577 = vpack.c.b16 %v4555, %v4554
    %v4578 = vpack.c.b16 %v4557, %v4556
    %v4579 = vpack.c.b16 %v4559, %v4558
    %v4580 = vpack.c.b16 %v4561, %v4560
    %v4581 = vpack.c.b16 %v4563, %v4562
    %v4582 = vpack.c.b16 %v4565, %v4564
    %v4583 = vpack.c.b16 %v4567, %v4566
    %v4616 = vunpack.c.l.b16 %v2264
    %v4617 = vunpack.c.l.b16 %v2265
    %v4618 = vunpack.c.l.b16 %v2266
    %v4619 = vunpack.c.l.b16 %v2267
    %v4620 = vunpack.c.l.b16 %v2268
    %v4621 = vunpack.c.l.b16 %v2269
    %v4622 = vunpack.c.l.b16 %v2270
    %v4623 = vunpack.c.l.b16 %v2271
    %v4624 = vunpack.c.l.b16 %v2272
    %v4625 = vunpack.c.l.b16 %v2273
    %v4626 = vunpack.c.l.b16 %v2274
    %v4627 = vunpack.c.l.b16 %v2275
    %v4628 = vunpack.c.l.b16 %v2276
    %v4629 = vunpack.c.l.b16 %v2277
    %v4630 = vunpack.c.l.b16 %v2278
    %v4631 = vunpack.c.l.b16 %v2279
    %v4632 = vunpack.c.l.b16 %v2280
    %v4633 = vunpack.c.l.b16 %v2281
    %v4634 = vunpack.c.l.b16 %v2282
    %v4635 = vunpack.c.l.b16 %v2283
    %v4636 = vunpack.c.l.b16 %v2284
    %v4637 = vunpack.c.l.b16 %v2285
    %v4638 = vunpack.c.l.b16 %v2286
    %v4639 = vunpack.c.l.b16 %v2287
    %v4640 = vunpack.c.l.b16 %v2288
    %v4641 = vunpack.c.l.b16 %v2289
    %v4642 = vunpack.c.l.b16 %v2290
    %v4643 = vunpack.c.l.b16 %v2291
    %v4644 = vunpack.c.l.b16 %v2292
    %v4645 = vunpack.c.l.b16 %v2293
    %v4646 = vunpack.c.l.b16 %v2294
    %v4647 = vunpack.c.l.b16 %v2295
    %v4648 = vpack.c.b16 %v4617, %v4616
    %v4649 = vpack.c.b16 %v4619, %v4618
    %v4650 = vpack.c.b16 %v4621, %v4620
    %v4651 = vpack.c.b16 %v4623, %v4622
    %v4652 = vpack.c.b16 %v4625, %v4624
    %v4653 = vpack.c.b16 %v4627, %v4626
    %v4654 = vpack.c.b16 %v4629, %v4628
    %v4655 = vpack.c.b16 %v4631, %v4630
    %v4656 = vpack.c.b16 %v4633, %v4632
    %v4657 = vpack.c.b16 %v4635, %v4634
    %v4658 = vpack.c.b16 %v4637, %v4636
    %v4659 = vpack.c.b16 %v4639, %v4638
    %v4660 = vpack.c.b16 %v4641, %v4640
    %v4661 = vpack.c.b16 %v4643, %v4642
    %v4662 = vpack.c.b16 %v4645, %v4644
    %v4663 = vpack.c.b16 %v4647, %v4646
    %4664 = vrot.lane.b32.xlu0 %v4648, 16
    %v4665 = vpop.permute.xlu0 %4664
    %4666 = vrot.lane.b32.xlu0 %v4649, 16
    %v4667 = vpop.permute.xlu0 %4666
    %4668 = vrot.lane.b32.xlu0 %v4650, 16
    %v4669 = vpop.permute.xlu0 %4668
    %4670 = vrot.lane.b32.xlu0 %v4651, 16
    %v4671 = vpop.permute.xlu0 %4670
    %4672 = vrot.lane.b32.xlu0 %v4652, 16
    %v4673 = vpop.permute.xlu0 %4672
    %4674 = vrot.lane.b32.xlu0 %v4653, 16
    %v4675 = vpop.permute.xlu0 %4674
    %4676 = vrot.lane.b32.xlu0 %v4654, 16
    %v4677 = vpop.permute.xlu0 %4676
    %4678 = vrot.lane.b32.xlu0 %v4655, 16
    %v4679 = vpop.permute.xlu0 %4678
    %4680 = vrot.lane.b32.xlu0 %v4656, 16
    %v4681 = vpop.permute.xlu0 %4680
    %4682 = vrot.lane.b32.xlu0 %v4657, 16
    %v4683 = vpop.permute.xlu0 %4682
    %4684 = vrot.lane.b32.xlu0 %v4658, 16
    %v4685 = vpop.permute.xlu0 %4684
    %4686 = vrot.lane.b32.xlu0 %v4659, 16
    %v4687 = vpop.permute.xlu0 %4686
    %4688 = vrot.lane.b32.xlu0 %v4660, 16
    %v4689 = vpop.permute.xlu0 %4688
    %4690 = vrot.lane.b32.xlu0 %v4661, 16
    %v4691 = vpop.permute.xlu0 %4690
    %4692 = vrot.lane.b32.xlu0 %v4662, 16
    %v4693 = vpop.permute.xlu0 %4692
    %4694 = vrot.lane.b32.xlu0 %v4663, 16
    %v4695 = vpop.permute.xlu0 %4694
    %v4728 = vunpack.c.l.b16 %v2488
    %v4729 = vunpack.c.l.b16 %v2489
    %v4730 = vunpack.c.l.b16 %v2490
    %v4731 = vunpack.c.l.b16 %v2491
    %v4732 = vunpack.c.l.b16 %v2492
    %v4733 = vunpack.c.l.b16 %v2493
    %v4734 = vunpack.c.l.b16 %v2494
    %v4735 = vunpack.c.l.b16 %v2495
    %v4736 = vunpack.c.l.b16 %v2496
    %v4737 = vunpack.c.l.b16 %v2497
    %v4738 = vunpack.c.l.b16 %v2498
    %v4739 = vunpack.c.l.b16 %v2499
    %v4740 = vunpack.c.l.b16 %v2500
    %v4741 = vunpack.c.l.b16 %v2501
    %v4742 = vunpack.c.l.b16 %v2502
    %v4743 = vunpack.c.l.b16 %v2503
    %v4744 = vunpack.c.l.b16 %v2504
    %v4745 = vunpack.c.l.b16 %v2505
    %v4746 = vunpack.c.l.b16 %v2506
    %v4747 = vunpack.c.l.b16 %v2507
    %v4748 = vunpack.c.l.b16 %v2508
    %v4749 = vunpack.c.l.b16 %v2509
    %v4750 = vunpack.c.l.b16 %v2510
    %v4751 = vunpack.c.l.b16 %v2511
    %v4752 = vunpack.c.l.b16 %v2512
    %v4753 = vunpack.c.l.b16 %v2513
    %v4754 = vunpack.c.l.b16 %v2514
    %v4755 = vunpack.c.l.b16 %v2515
    %v4756 = vunpack.c.l.b16 %v2516
    %v4757 = vunpack.c.l.b16 %v2517
    %v4758 = vunpack.c.l.b16 %v2518
    %v4759 = vunpack.c.l.b16 %v2519
    %v4760 = vpack.c.b16 %v4729, %v4728
    %v4761 = vpack.c.b16 %v4731, %v4730
    %v4762 = vpack.c.b16 %v4733, %v4732
    %v4763 = vpack.c.b16 %v4735, %v4734
    %v4764 = vpack.c.b16 %v4737, %v4736
    %v4765 = vpack.c.b16 %v4739, %v4738
    %v4766 = vpack.c.b16 %v4741, %v4740
    %v4767 = vpack.c.b16 %v4743, %v4742
    %v4768 = vpack.c.b16 %v4745, %v4744
    %v4769 = vpack.c.b16 %v4747, %v4746
    %v4770 = vpack.c.b16 %v4749, %v4748
    %v4771 = vpack.c.b16 %v4751, %v4750
    %v4772 = vpack.c.b16 %v4753, %v4752
    %v4773 = vpack.c.b16 %v4755, %v4754
    %v4774 = vpack.c.b16 %v4757, %v4756
    %v4775 = vpack.c.b16 %v4759, %v4758
    %4776 = vrot.lane.b32.xlu0 %v4760, 32
    %v4777 = vpop.permute.xlu0 %4776
    %4778 = vrot.lane.b32.xlu0 %v4761, 32
    %v4779 = vpop.permute.xlu0 %4778
    %4780 = vrot.lane.b32.xlu0 %v4762, 32
    %v4781 = vpop.permute.xlu0 %4780
    %4782 = vrot.lane.b32.xlu0 %v4763, 32
    %v4783 = vpop.permute.xlu0 %4782
    %4784 = vrot.lane.b32.xlu0 %v4764, 32
    %v4785 = vpop.permute.xlu0 %4784
    %4786 = vrot.lane.b32.xlu0 %v4765, 32
    %v4787 = vpop.permute.xlu0 %4786
    %4788 = vrot.lane.b32.xlu0 %v4766, 32
    %v4789 = vpop.permute.xlu0 %4788
    %4790 = vrot.lane.b32.xlu0 %v4767, 32
    %v4791 = vpop.permute.xlu0 %4790
    %4792 = vrot.lane.b32.xlu0 %v4768, 32
    %v4793 = vpop.permute.xlu0 %4792
    %4794 = vrot.lane.b32.xlu0 %v4769, 32
    %v4795 = vpop.permute.xlu0 %4794
    %4796 = vrot.lane.b32.xlu0 %v4770, 32
    %v4797 = vpop.permute.xlu0 %4796
    %4798 = vrot.lane.b32.xlu0 %v4771, 32
    %v4799 = vpop.permute.xlu0 %4798
    %4800 = vrot.lane.b32.xlu0 %v4772, 32
    %v4801 = vpop.permute.xlu0 %4800
    %4802 = vrot.lane.b32.xlu0 %v4773, 32
    %v4803 = vpop.permute.xlu0 %4802
    %4804 = vrot.lane.b32.xlu0 %v4774, 32
    %v4805 = vpop.permute.xlu0 %4804
    %4806 = vrot.lane.b32.xlu0 %v4775, 32
    %v4807 = vpop.permute.xlu0 %4806
    %v4840 = vunpack.c.l.b16 %v2712
    %v4841 = vunpack.c.l.b16 %v2713
    %v4842 = vunpack.c.l.b16 %v2714
    %v4843 = vunpack.c.l.b16 %v2715
    %v4844 = vunpack.c.l.b16 %v2716
    %v4845 = vunpack.c.l.b16 %v2717
    %v4846 = vunpack.c.l.b16 %v2718
    %v4847 = vunpack.c.l.b16 %v2719
    %v4848 = vunpack.c.l.b16 %v2720
    %v4849 = vunpack.c.l.b16 %v2721
    %v4850 = vunpack.c.l.b16 %v2722
    %v4851 = vunpack.c.l.b16 %v2723
    %v4852 = vunpack.c.l.b16 %v2724
    %v4853 = vunpack.c.l.b16 %v2725
    %v4854 = vunpack.c.l.b16 %v2726
    %v4855 = vunpack.c.l.b16 %v2727
    %v4856 = vunpack.c.l.b16 %v2728
    %v4857 = vunpack.c.l.b16 %v2729
    %v4858 = vunpack.c.l.b16 %v2730
    %v4859 = vunpack.c.l.b16 %v2731
    %v4860 = vunpack.c.l.b16 %v2732
    %v4861 = vunpack.c.l.b16 %v2733
    %v4862 = vunpack.c.l.b16 %v2734
    %v4863 = vunpack.c.l.b16 %v2735
    %v4864 = vunpack.c.l.b16 %v2736
    %v4865 = vunpack.c.l.b16 %v2737
    %v4866 = vunpack.c.l.b16 %v2738
    %v4867 = vunpack.c.l.b16 %v2739
    %v4868 = vunpack.c.l.b16 %v2740
    %v4869 = vunpack.c.l.b16 %v2741
    %v4870 = vunpack.c.l.b16 %v2742
    %v4871 = vunpack.c.l.b16 %v2743
    %v4872 = vpack.c.b16 %v4841, %v4840
    %v4873 = vpack.c.b16 %v4843, %v4842
    %v4874 = vpack.c.b16 %v4845, %v4844
    %v4875 = vpack.c.b16 %v4847, %v4846
    %v4876 = vpack.c.b16 %v4849, %v4848
    %v4877 = vpack.c.b16 %v4851, %v4850
    %v4878 = vpack.c.b16 %v4853, %v4852
    %v4879 = vpack.c.b16 %v4855, %v4854
    %v4880 = vpack.c.b16 %v4857, %v4856
    %v4881 = vpack.c.b16 %v4859, %v4858
    %v4882 = vpack.c.b16 %v4861, %v4860
    %v4883 = vpack.c.b16 %v4863, %v4862
    %v4884 = vpack.c.b16 %v4865, %v4864
    %v4885 = vpack.c.b16 %v4867, %v4866
    %v4886 = vpack.c.b16 %v4869, %v4868
    %v4887 = vpack.c.b16 %v4871, %v4870
    %4888 = vrot.lane.b32.xlu0 %v4872, 48
    %v4889 = vpop.permute.xlu0 %4888
    %4890 = vrot.lane.b32.xlu0 %v4873, 48
    %v4891 = vpop.permute.xlu0 %4890
    %4892 = vrot.lane.b32.xlu0 %v4874, 48
    %v4893 = vpop.permute.xlu0 %4892
    %4894 = vrot.lane.b32.xlu0 %v4875, 48
    %v4895 = vpop.permute.xlu0 %4894
    %4896 = vrot.lane.b32.xlu0 %v4876, 48
    %v4897 = vpop.permute.xlu0 %4896
    %4898 = vrot.lane.b32.xlu0 %v4877, 48
    %v4899 = vpop.permute.xlu0 %4898
    %4900 = vrot.lane.b32.xlu0 %v4878, 48
    %v4901 = vpop.permute.xlu0 %4900
    %4902 = vrot.lane.b32.xlu0 %v4879, 48
    %v4903 = vpop.permute.xlu0 %4902
    %4904 = vrot.lane.b32.xlu0 %v4880, 48
    %v4905 = vpop.permute.xlu0 %4904
    %4906 = vrot.lane.b32.xlu0 %v4881, 48
    %v4907 = vpop.permute.xlu0 %4906
    %4908 = vrot.lane.b32.xlu0 %v4882, 48
    %v4909 = vpop.permute.xlu0 %4908
    %4910 = vrot.lane.b32.xlu0 %v4883, 48
    %v4911 = vpop.permute.xlu0 %4910
    %4912 = vrot.lane.b32.xlu0 %v4884, 48
    %v4913 = vpop.permute.xlu0 %4912
    %4914 = vrot.lane.b32.xlu0 %v4885, 48
    %v4915 = vpop.permute.xlu0 %4914
    %4916 = vrot.lane.b32.xlu0 %v4886, 48
    %v4917 = vpop.permute.xlu0 %4916
    %4918 = vrot.lane.b32.xlu0 %v4887, 48
    %v4919 = vpop.permute.xlu0 %4918
    %v4952 = vunpack.c.l.b16 %v2936
    %v4953 = vunpack.c.l.b16 %v2937
    %v4954 = vunpack.c.l.b16 %v2938
    %v4955 = vunpack.c.l.b16 %v2939
    %v4956 = vunpack.c.l.b16 %v2940
    %v4957 = vunpack.c.l.b16 %v2941
    %v4958 = vunpack.c.l.b16 %v2942
    %v4959 = vunpack.c.l.b16 %v2943
    %v4960 = vunpack.c.l.b16 %v2944
    %v4961 = vunpack.c.l.b16 %v2945
    %v4962 = vunpack.c.l.b16 %v2946
    %v4963 = vunpack.c.l.b16 %v2947
    %v4964 = vunpack.c.l.b16 %v2948
    %v4965 = vunpack.c.l.b16 %v2949
    %v4966 = vunpack.c.l.b16 %v2950
    %v4967 = vunpack.c.l.b16 %v2951
    %v4968 = vunpack.c.l.b16 %v2952
    %v4969 = vunpack.c.l.b16 %v2953
    %v4970 = vunpack.c.l.b16 %v2954
    %v4971 = vunpack.c.l.b16 %v2955
    %v4972 = vunpack.c.l.b16 %v2956
    %v4973 = vunpack.c.l.b16 %v2957
    %v4974 = vunpack.c.l.b16 %v2958
    %v4975 = vunpack.c.l.b16 %v2959
    %v4976 = vunpack.c.l.b16 %v2960
    %v4977 = vunpack.c.l.b16 %v2961
    %v4978 = vunpack.c.l.b16 %v2962
    %v4979 = vunpack.c.l.b16 %v2963
    %v4980 = vunpack.c.l.b16 %v2964
    %v4981 = vunpack.c.l.b16 %v2965
    %v4982 = vunpack.c.l.b16 %v2966
    %v4983 = vunpack.c.l.b16 %v2967
    %v4984 = vpack.c.b16 %v4953, %v4952
    %v4985 = vpack.c.b16 %v4955, %v4954
    %v4986 = vpack.c.b16 %v4957, %v4956
    %v4987 = vpack.c.b16 %v4959, %v4958
    %v4988 = vpack.c.b16 %v4961, %v4960
    %v4989 = vpack.c.b16 %v4963, %v4962
    %v4990 = vpack.c.b16 %v4965, %v4964
    %v4991 = vpack.c.b16 %v4967, %v4966
    %v4992 = vpack.c.b16 %v4969, %v4968
    %v4993 = vpack.c.b16 %v4971, %v4970
    %v4994 = vpack.c.b16 %v4973, %v4972
    %v4995 = vpack.c.b16 %v4975, %v4974
    %v4996 = vpack.c.b16 %v4977, %v4976
    %v4997 = vpack.c.b16 %v4979, %v4978
    %v4998 = vpack.c.b16 %v4981, %v4980
    %v4999 = vpack.c.b16 %v4983, %v4982
    %5000 = vrot.lane.b32.xlu0 %v4984, 64
    %v5001 = vpop.permute.xlu0 %5000
    %5002 = vrot.lane.b32.xlu0 %v4985, 64
    %v5003 = vpop.permute.xlu0 %5002
    %5004 = vrot.lane.b32.xlu0 %v4986, 64
    %v5005 = vpop.permute.xlu0 %5004
    %5006 = vrot.lane.b32.xlu0 %v4987, 64
    %v5007 = vpop.permute.xlu0 %5006
    %5008 = vrot.lane.b32.xlu0 %v4988, 64
    %v5009 = vpop.permute.xlu0 %5008
    %5010 = vrot.lane.b32.xlu0 %v4989, 64
    %v5011 = vpop.permute.xlu0 %5010
    %5012 = vrot.lane.b32.xlu0 %v4990, 64
    %v5013 = vpop.permute.xlu0 %5012
    %5014 = vrot.lane.b32.xlu0 %v4991, 64
    %v5015 = vpop.permute.xlu0 %5014
    %5016 = vrot.lane.b32.xlu0 %v4992, 64
    %v5017 = vpop.permute.xlu0 %5016
    %5018 = vrot.lane.b32.xlu0 %v4993, 64
    %v5019 = vpop.permute.xlu0 %5018
    %5020 = vrot.lane.b32.xlu0 %v4994, 64
    %v5021 = vpop.permute.xlu0 %5020
    %5022 = vrot.lane.b32.xlu0 %v4995, 64
    %v5023 = vpop.permute.xlu0 %5022
    %5024 = vrot.lane.b32.xlu0 %v4996, 64
    %v5025 = vpop.permute.xlu0 %5024
    %5026 = vrot.lane.b32.xlu0 %v4997, 64
    %v5027 = vpop.permute.xlu0 %5026
    %5028 = vrot.lane.b32.xlu0 %v4998, 64
    %v5029 = vpop.permute.xlu0 %5028
    %5030 = vrot.lane.b32.xlu0 %v4999, 64
    %v5031 = vpop.permute.xlu0 %5030
    %v5064 = vunpack.c.l.b16 %v3160
    %v5065 = vunpack.c.l.b16 %v3161
    %v5066 = vunpack.c.l.b16 %v3162
    %v5067 = vunpack.c.l.b16 %v3163
    %v5068 = vunpack.c.l.b16 %v3164
    %v5069 = vunpack.c.l.b16 %v3165
    %v5070 = vunpack.c.l.b16 %v3166
    %v5071 = vunpack.c.l.b16 %v3167
    %v5072 = vunpack.c.l.b16 %v3168
    %v5073 = vunpack.c.l.b16 %v3169
    %v5074 = vunpack.c.l.b16 %v3170
    %v5075 = vunpack.c.l.b16 %v3171
    %v5076 = vunpack.c.l.b16 %v3172
    %v5077 = vunpack.c.l.b16 %v3173
    %v5078 = vunpack.c.l.b16 %v3174
    %v5079 = vunpack.c.l.b16 %v3175
    %v5080 = vunpack.c.l.b16 %v3176
    %v5081 = vunpack.c.l.b16 %v3177
    %v5082 = vunpack.c.l.b16 %v3178
    %v5083 = vunpack.c.l.b16 %v3179
    %v5084 = vunpack.c.l.b16 %v3180
    %v5085 = vunpack.c.l.b16 %v3181
    %v5086 = vunpack.c.l.b16 %v3182
    %v5087 = vunpack.c.l.b16 %v3183
    %v5088 = vunpack.c.l.b16 %v3184
    %v5089 = vunpack.c.l.b16 %v3185
    %v5090 = vunpack.c.l.b16 %v3186
    %v5091 = vunpack.c.l.b16 %v3187
    %v5092 = vunpack.c.l.b16 %v3188
    %v5093 = vunpack.c.l.b16 %v3189
    %v5094 = vunpack.c.l.b16 %v3190
    %v5095 = vunpack.c.l.b16 %v3191
    %v5096 = vpack.c.b16 %v5065, %v5064
    %v5097 = vpack.c.b16 %v5067, %v5066
    %v5098 = vpack.c.b16 %v5069, %v5068
    %v5099 = vpack.c.b16 %v5071, %v5070
    %v5100 = vpack.c.b16 %v5073, %v5072
    %v5101 = vpack.c.b16 %v5075, %v5074
    %v5102 = vpack.c.b16 %v5077, %v5076
    %v5103 = vpack.c.b16 %v5079, %v5078
    %v5104 = vpack.c.b16 %v5081, %v5080
    %v5105 = vpack.c.b16 %v5083, %v5082
    %v5106 = vpack.c.b16 %v5085, %v5084
    %v5107 = vpack.c.b16 %v5087, %v5086
    %v5108 = vpack.c.b16 %v5089, %v5088
    %v5109 = vpack.c.b16 %v5091, %v5090
    %v5110 = vpack.c.b16 %v5093, %v5092
    %v5111 = vpack.c.b16 %v5095, %v5094
    %5112 = vrot.lane.b32.xlu0 %v5096, 80
    %v5113 = vpop.permute.xlu0 %5112
    %5114 = vrot.lane.b32.xlu0 %v5097, 80
    %v5115 = vpop.permute.xlu0 %5114
    %5116 = vrot.lane.b32.xlu0 %v5098, 80
    %v5117 = vpop.permute.xlu0 %5116
    %5118 = vrot.lane.b32.xlu0 %v5099, 80
    %v5119 = vpop.permute.xlu0 %5118
    %5120 = vrot.lane.b32.xlu0 %v5100, 80
    %v5121 = vpop.permute.xlu0 %5120
    %5122 = vrot.lane.b32.xlu0 %v5101, 80
    %v5123 = vpop.permute.xlu0 %5122
    %5124 = vrot.lane.b32.xlu0 %v5102, 80
    %v5125 = vpop.permute.xlu0 %5124
    %5126 = vrot.lane.b32.xlu0 %v5103, 80
    %v5127 = vpop.permute.xlu0 %5126
    %5128 = vrot.lane.b32.xlu0 %v5104, 80
    %v5129 = vpop.permute.xlu0 %5128
    %5130 = vrot.lane.b32.xlu0 %v5105, 80
    %v5131 = vpop.permute.xlu0 %5130
    %5132 = vrot.lane.b32.xlu0 %v5106, 80
    %v5133 = vpop.permute.xlu0 %5132
    %5134 = vrot.lane.b32.xlu0 %v5107, 80
    %v5135 = vpop.permute.xlu0 %5134
    %5136 = vrot.lane.b32.xlu0 %v5108, 80
    %v5137 = vpop.permute.xlu0 %5136
    %5138 = vrot.lane.b32.xlu0 %v5109, 80
    %v5139 = vpop.permute.xlu0 %5138
    %5140 = vrot.lane.b32.xlu0 %v5110, 80
    %v5141 = vpop.permute.xlu0 %5140
    %5142 = vrot.lane.b32.xlu0 %v5111, 80
    %v5143 = vpop.permute.xlu0 %5142
    %v5176 = vunpack.c.l.b16 %v3384
    %v5177 = vunpack.c.l.b16 %v3385
    %v5178 = vunpack.c.l.b16 %v3386
    %v5179 = vunpack.c.l.b16 %v3387
    %v5180 = vunpack.c.l.b16 %v3388
    %v5181 = vunpack.c.l.b16 %v3389
    %v5182 = vunpack.c.l.b16 %v3390
    %v5183 = vunpack.c.l.b16 %v3391
    %v5184 = vunpack.c.l.b16 %v3392
    %v5185 = vunpack.c.l.b16 %v3393
    %v5186 = vunpack.c.l.b16 %v3394
    %v5187 = vunpack.c.l.b16 %v3395
    %v5188 = vunpack.c.l.b16 %v3396
    %v5189 = vunpack.c.l.b16 %v3397
    %v5190 = vunpack.c.l.b16 %v3398
    %v5191 = vunpack.c.l.b16 %v3399
    %v5192 = vunpack.c.l.b16 %v3400
    %v5193 = vunpack.c.l.b16 %v3401
    %v5194 = vunpack.c.l.b16 %v3402
    %v5195 = vunpack.c.l.b16 %v3403
    %v5196 = vunpack.c.l.b16 %v3404
    %v5197 = vunpack.c.l.b16 %v3405
    %v5198 = vunpack.c.l.b16 %v3406
    %v5199 = vunpack.c.l.b16 %v3407
    %v5200 = vunpack.c.l.b16 %v3408
    %v5201 = vunpack.c.l.b16 %v3409
    %v5202 = vunpack.c.l.b16 %v3410
    %v5203 = vunpack.c.l.b16 %v3411
    %v5204 = vunpack.c.l.b16 %v3412
    %v5205 = vunpack.c.l.b16 %v3413
    %v5206 = vunpack.c.l.b16 %v3414
    %v5207 = vunpack.c.l.b16 %v3415
    %v5208 = vpack.c.b16 %v5177, %v5176
    %v5209 = vpack.c.b16 %v5179, %v5178
    %v5210 = vpack.c.b16 %v5181, %v5180
    %v5211 = vpack.c.b16 %v5183, %v5182
    %v5212 = vpack.c.b16 %v5185, %v5184
    %v5213 = vpack.c.b16 %v5187, %v5186
    %v5214 = vpack.c.b16 %v5189, %v5188
    %v5215 = vpack.c.b16 %v5191, %v5190
    %v5216 = vpack.c.b16 %v5193, %v5192
    %v5217 = vpack.c.b16 %v5195, %v5194
    %v5218 = vpack.c.b16 %v5197, %v5196
    %v5219 = vpack.c.b16 %v5199, %v5198
    %v5220 = vpack.c.b16 %v5201, %v5200
    %v5221 = vpack.c.b16 %v5203, %v5202
    %v5222 = vpack.c.b16 %v5205, %v5204
    %v5223 = vpack.c.b16 %v5207, %v5206
    %5224 = vrot.lane.b32.xlu0 %v5208, 96
    %v5225 = vpop.permute.xlu0 %5224
    %5226 = vrot.lane.b32.xlu0 %v5209, 96
    %v5227 = vpop.permute.xlu0 %5226
    %5228 = vrot.lane.b32.xlu0 %v5210, 96
    %v5229 = vpop.permute.xlu0 %5228
    %5230 = vrot.lane.b32.xlu0 %v5211, 96
    %v5231 = vpop.permute.xlu0 %5230
    %5232 = vrot.lane.b32.xlu0 %v5212, 96
    %v5233 = vpop.permute.xlu0 %5232
    %5234 = vrot.lane.b32.xlu0 %v5213, 96
    %v5235 = vpop.permute.xlu0 %5234
    %5236 = vrot.lane.b32.xlu0 %v5214, 96
    %v5237 = vpop.permute.xlu0 %5236
    %5238 = vrot.lane.b32.xlu0 %v5215, 96
    %v5239 = vpop.permute.xlu0 %5238
    %5240 = vrot.lane.b32.xlu0 %v5216, 96
    %v5241 = vpop.permute.xlu0 %5240
    %5242 = vrot.lane.b32.xlu0 %v5217, 96
    %v5243 = vpop.permute.xlu0 %5242
    %5244 = vrot.lane.b32.xlu0 %v5218, 96
    %v5245 = vpop.permute.xlu0 %5244
    %5246 = vrot.lane.b32.xlu0 %v5219, 96
    %v5247 = vpop.permute.xlu0 %5246
    %5248 = vrot.lane.b32.xlu0 %v5220, 96
    %v5249 = vpop.permute.xlu0 %5248
    %5250 = vrot.lane.b32.xlu0 %v5221, 96
    %v5251 = vpop.permute.xlu0 %5250
    %5252 = vrot.lane.b32.xlu0 %v5222, 96
    %v5253 = vpop.permute.xlu0 %5252
    %5254 = vrot.lane.b32.xlu0 %v5223, 96
    %v5255 = vpop.permute.xlu0 %5254
    %v5288 = vunpack.c.l.b16 %v3608
    %v5289 = vunpack.c.l.b16 %v3609
    %v5290 = vunpack.c.l.b16 %v3610
    %v5291 = vunpack.c.l.b16 %v3611
    %v5292 = vunpack.c.l.b16 %v3612
    %v5293 = vunpack.c.l.b16 %v3613
    %v5294 = vunpack.c.l.b16 %v3614
    %v5295 = vunpack.c.l.b16 %v3615
    %v5296 = vunpack.c.l.b16 %v3616
    %v5297 = vunpack.c.l.b16 %v3617
    %v5298 = vunpack.c.l.b16 %v3618
    %v5299 = vunpack.c.l.b16 %v3619
    %v5300 = vunpack.c.l.b16 %v3620
    %v5301 = vunpack.c.l.b16 %v3621
    %v5302 = vunpack.c.l.b16 %v3622
    %v5303 = vunpack.c.l.b16 %v3623
    %v5304 = vunpack.c.l.b16 %v3624
    %v5305 = vunpack.c.l.b16 %v3625
    %v5306 = vunpack.c.l.b16 %v3626
    %v5307 = vunpack.c.l.b16 %v3627
    %v5308 = vunpack.c.l.b16 %v3628
    %v5309 = vunpack.c.l.b16 %v3629
    %v5310 = vunpack.c.l.b16 %v3630
    %v5311 = vunpack.c.l.b16 %v3631
    %v5312 = vunpack.c.l.b16 %v3632
    %v5313 = vunpack.c.l.b16 %v3633
    %v5314 = vunpack.c.l.b16 %v3634
    %v5315 = vunpack.c.l.b16 %v3635
    %v5316 = vunpack.c.l.b16 %v3636
    %v5317 = vunpack.c.l.b16 %v3637
    %v5318 = vunpack.c.l.b16 %v3638
    %v5319 = vunpack.c.l.b16 %v3639
    %v5320 = vpack.c.b16 %v5289, %v5288
    %v5321 = vpack.c.b16 %v5291, %v5290
    %v5322 = vpack.c.b16 %v5293, %v5292
    %v5323 = vpack.c.b16 %v5295, %v5294
    %v5324 = vpack.c.b16 %v5297, %v5296
    %v5325 = vpack.c.b16 %v5299, %v5298
    %v5326 = vpack.c.b16 %v5301, %v5300
    %v5327 = vpack.c.b16 %v5303, %v5302
    %v5328 = vpack.c.b16 %v5305, %v5304
    %v5329 = vpack.c.b16 %v5307, %v5306
    %v5330 = vpack.c.b16 %v5309, %v5308
    %v5331 = vpack.c.b16 %v5311, %v5310
    %v5332 = vpack.c.b16 %v5313, %v5312
    %v5333 = vpack.c.b16 %v5315, %v5314
    %v5334 = vpack.c.b16 %v5317, %v5316
    %v5335 = vpack.c.b16 %v5319, %v5318
    %5336 = vrot.lane.b32.xlu0 %v5320, 112
    %v5337 = vpop.permute.xlu0 %5336
    %5338 = vrot.lane.b32.xlu0 %v5321, 112
    %v5339 = vpop.permute.xlu0 %5338
    %5340 = vrot.lane.b32.xlu0 %v5322, 112
    %v5341 = vpop.permute.xlu0 %5340
    %5342 = vrot.lane.b32.xlu0 %v5323, 112
    %v5343 = vpop.permute.xlu0 %5342
    %5344 = vrot.lane.b32.xlu0 %v5324, 112
    %v5345 = vpop.permute.xlu0 %5344
    %5346 = vrot.lane.b32.xlu0 %v5325, 112
    %v5347 = vpop.permute.xlu0 %5346
    %5348 = vrot.lane.b32.xlu0 %v5326, 112
    %v5349 = vpop.permute.xlu0 %5348
    %5350 = vrot.lane.b32.xlu0 %v5327, 112
    %v5351 = vpop.permute.xlu0 %5350
    %5352 = vrot.lane.b32.xlu0 %v5328, 112
    %v5353 = vpop.permute.xlu0 %5352
    %5354 = vrot.lane.b32.xlu0 %v5329, 112
    %v5355 = vpop.permute.xlu0 %5354
    %5356 = vrot.lane.b32.xlu0 %v5330, 112
    %v5357 = vpop.permute.xlu0 %5356
    %5358 = vrot.lane.b32.xlu0 %v5331, 112
    %v5359 = vpop.permute.xlu0 %5358
    %5360 = vrot.lane.b32.xlu0 %v5332, 112
    %v5361 = vpop.permute.xlu0 %5360
    %5362 = vrot.lane.b32.xlu0 %v5333, 112
    %v5363 = vpop.permute.xlu0 %5362
    %5364 = vrot.lane.b32.xlu0 %v5334, 112
    %v5365 = vpop.permute.xlu0 %5364
    %5366 = vrot.lane.b32.xlu0 %v5335, 112
    %v5367 = vpop.permute.xlu0 %5366
    %vm5368 = vcmask 130048
    %v5371 = vsel %vm5368, %v3704, %v3801
    %v5374 = vsel %vm5368, %v3705, %v3803
    %v5377 = vsel %vm5368, %v3706, %v3805
    %v5380 = vsel %vm5368, %v3707, %v3807
    %v5383 = vsel %vm5368, %v3708, %v3809
    %v5386 = vsel %vm5368, %v3709, %v3811
    %v5389 = vsel %vm5368, %v3710, %v3813
    %v5392 = vsel %vm5368, %v3711, %v3815
    %v5395 = vsel %vm5368, %v3712, %v3817
    %v5398 = vsel %vm5368, %v3713, %v3819
    %v5401 = vsel %vm5368, %v3714, %v3821
    %v5404 = vsel %vm5368, %v3715, %v3823
    %v5407 = vsel %vm5368, %v3716, %v3825
    %v5410 = vsel %vm5368, %v3717, %v3827
    %v5413 = vsel %vm5368, %v3718, %v3829
    %v5416 = vsel %vm5368, %v3719, %v3831
    %vm5417 = vcmask 261120
    %v5419 = vsel %vm5417, %v5371, %v3913
    %v5421 = vsel %vm5417, %v5374, %v3915
    %v5423 = vsel %vm5417, %v5377, %v3917
    %v5425 = vsel %vm5417, %v5380, %v3919
    %v5427 = vsel %vm5417, %v5383, %v3921
    %v5429 = vsel %vm5417, %v5386, %v3923
    %v5431 = vsel %vm5417, %v5389, %v3925
    %v5433 = vsel %vm5417, %v5392, %v3927
    %v5435 = vsel %vm5417, %v5395, %v3929
    %v5437 = vsel %vm5417, %v5398, %v3931
    %v5439 = vsel %vm5417, %v5401, %v3933
    %v5441 = vsel %vm5417, %v5404, %v3935
    %v5443 = vsel %vm5417, %v5407, %v3937
    %v5445 = vsel %vm5417, %v5410, %v3939
    %v5447 = vsel %vm5417, %v5413, %v3941
    %v5449 = vsel %vm5417, %v5416, %v3943
    %vm5450 = vcmask 392192
    %v5452 = vsel %vm5450, %v5419, %v4025
    %v5454 = vsel %vm5450, %v5421, %v4027
    %v5456 = vsel %vm5450, %v5423, %v4029
    %v5458 = vsel %vm5450, %v5425, %v4031
    %v5460 = vsel %vm5450, %v5427, %v4033
    %v5462 = vsel %vm5450, %v5429, %v4035
    %v5464 = vsel %vm5450, %v5431, %v4037
    %v5466 = vsel %vm5450, %v5433, %v4039
    %v5468 = vsel %vm5450, %v5435, %v4041
    %v5470 = vsel %vm5450, %v5437, %v4043
    %v5472 = vsel %vm5450, %v5439, %v4045
    %v5474 = vsel %vm5450, %v5441, %v4047
    %v5476 = vsel %vm5450, %v5443, %v4049
    %v5478 = vsel %vm5450, %v5445, %v4051
    %v5480 = vsel %vm5450, %v5447, %v4053
    %v5482 = vsel %vm5450, %v5449, %v4055
    %vm5483 = vcmask 523264
    %v5485 = vsel %vm5483, %v5452, %v4137
    %v5487 = vsel %vm5483, %v5454, %v4139
    %v5489 = vsel %vm5483, %v5456, %v4141
    %v5491 = vsel %vm5483, %v5458, %v4143
    %v5493 = vsel %vm5483, %v5460, %v4145
    %v5495 = vsel %vm5483, %v5462, %v4147
    %v5497 = vsel %vm5483, %v5464, %v4149
    %v5499 = vsel %vm5483, %v5466, %v4151
    %v5501 = vsel %vm5483, %v5468, %v4153
    %v5503 = vsel %vm5483, %v5470, %v4155
    %v5505 = vsel %vm5483, %v5472, %v4157
    %v5507 = vsel %vm5483, %v5474, %v4159
    %v5509 = vsel %vm5483, %v5476, %v4161
    %v5511 = vsel %vm5483, %v5478, %v4163
    %v5513 = vsel %vm5483, %v5480, %v4165
    %v5515 = vsel %vm5483, %v5482, %v4167
    %vm5516 = vcmask 654336
    %v5518 = vsel %vm5516, %v5485, %v4249
    %v5520 = vsel %vm5516, %v5487, %v4251
    %v5522 = vsel %vm5516, %v5489, %v4253
    %v5524 = vsel %vm5516, %v5491, %v4255
    %v5526 = vsel %vm5516, %v5493, %v4257
    %v5528 = vsel %vm5516, %v5495, %v4259
    %v5530 = vsel %vm5516, %v5497, %v4261
    %v5532 = vsel %vm5516, %v5499, %v4263
    %v5534 = vsel %vm5516, %v5501, %v4265
    %v5536 = vsel %vm5516, %v5503, %v4267
    %v5538 = vsel %vm5516, %v5505, %v4269
    %v5540 = vsel %vm5516, %v5507, %v4271
    %v5542 = vsel %vm5516, %v5509, %v4273
    %v5544 = vsel %vm5516, %v5511, %v4275
    %v5546 = vsel %vm5516, %v5513, %v4277
    %v5548 = vsel %vm5516, %v5515, %v4279
    %vm5549 = vcmask 785408
    %v5551 = vsel %vm5549, %v5518, %v4361
    %v5553 = vsel %vm5549, %v5520, %v4363
    %v5555 = vsel %vm5549, %v5522, %v4365
    %v5557 = vsel %vm5549, %v5524, %v4367
    %v5559 = vsel %vm5549, %v5526, %v4369
    %v5561 = vsel %vm5549, %v5528, %v4371
    %v5563 = vsel %vm5549, %v5530, %v4373
    %v5565 = vsel %vm5549, %v5532, %v4375
    %v5567 = vsel %vm5549, %v5534, %v4377
    %v5569 = vsel %vm5549, %v5536, %v4379
    %v5571 = vsel %vm5549, %v5538, %v4381
    %v5573 = vsel %vm5549, %v5540, %v4383
    %v5575 = vsel %vm5549, %v5542, %v4385
    %v5577 = vsel %vm5549, %v5544, %v4387
    %v5579 = vsel %vm5549, %v5546, %v4389
    %v5581 = vsel %vm5549, %v5548, %v4391
    %vm5582 = vcmask 916480
    %v5584 = vsel %vm5582, %v5551, %v4473
    %v5587 = vsel %vm5582, %v5553, %v4475
    %v5590 = vsel %vm5582, %v5555, %v4477
    %v5593 = vsel %vm5582, %v5557, %v4479
    %v5596 = vsel %vm5582, %v5559, %v4481
    %v5599 = vsel %vm5582, %v5561, %v4483
    %v5602 = vsel %vm5582, %v5563, %v4485
    %v5605 = vsel %vm5582, %v5565, %v4487
    %v5608 = vsel %vm5582, %v5567, %v4489
    %v5611 = vsel %vm5582, %v5569, %v4491
    %v5614 = vsel %vm5582, %v5571, %v4493
    %v5617 = vsel %vm5582, %v5573, %v4495
    %v5620 = vsel %vm5582, %v5575, %v4497
    %v5623 = vsel %vm5582, %v5577, %v4499
    %v5626 = vsel %vm5582, %v5579, %v4501
    %v5629 = vsel %vm5582, %v5581, %v4503
    %v5633 = vsel %vm5368, %v4568, %v4665
    %v5636 = vsel %vm5368, %v4569, %v4667
    %v5639 = vsel %vm5368, %v4570, %v4669
    %v5642 = vsel %vm5368, %v4571, %v4671
    %v5645 = vsel %vm5368, %v4572, %v4673
    %v5648 = vsel %vm5368, %v4573, %v4675
    %v5651 = vsel %vm5368, %v4574, %v4677
    %v5654 = vsel %vm5368, %v4575, %v4679
    %v5657 = vsel %vm5368, %v4576, %v4681
    %v5660 = vsel %vm5368, %v4577, %v4683
    %v5663 = vsel %vm5368, %v4578, %v4685
    %v5666 = vsel %vm5368, %v4579, %v4687
    %v5669 = vsel %vm5368, %v4580, %v4689
    %v5672 = vsel %vm5368, %v4581, %v4691
    %v5675 = vsel %vm5368, %v4582, %v4693
    %v5678 = vsel %vm5368, %v4583, %v4695
    %v5680 = vsel %vm5417, %v5633, %v4777
    %v5682 = vsel %vm5417, %v5636, %v4779
    %v5684 = vsel %vm5417, %v5639, %v4781
    %v5686 = vsel %vm5417, %v5642, %v4783
    %v5688 = vsel %vm5417, %v5645, %v4785
    %v5690 = vsel %vm5417, %v5648, %v4787
    %v5692 = vsel %vm5417, %v5651, %v4789
    %v5694 = vsel %vm5417, %v5654, %v4791
    %v5696 = vsel %vm5417, %v5657, %v4793
    %v5698 = vsel %vm5417, %v5660, %v4795
    %v5700 = vsel %vm5417, %v5663, %v4797
    %v5702 = vsel %vm5417, %v5666, %v4799
    %v5704 = vsel %vm5417, %v5669, %v4801
    %v5706 = vsel %vm5417, %v5672, %v4803
    %v5708 = vsel %vm5417, %v5675, %v4805
    %v5710 = vsel %vm5417, %v5678, %v4807
    %v5712 = vsel %vm5450, %v5680, %v4889
    %v5714 = vsel %vm5450, %v5682, %v4891
    %v5716 = vsel %vm5450, %v5684, %v4893
    %v5718 = vsel %vm5450, %v5686, %v4895
    %v5720 = vsel %vm5450, %v5688, %v4897
    %v5722 = vsel %vm5450, %v5690, %v4899
    %v5724 = vsel %vm5450, %v5692, %v4901
    %v5726 = vsel %vm5450, %v5694, %v4903
    %v5728 = vsel %vm5450, %v5696, %v4905
    %v5730 = vsel %vm5450, %v5698, %v4907
    %v5732 = vsel %vm5450, %v5700, %v4909
    %v5734 = vsel %vm5450, %v5702, %v4911
    %v5736 = vsel %vm5450, %v5704, %v4913
    %v5738 = vsel %vm5450, %v5706, %v4915
    %v5740 = vsel %vm5450, %v5708, %v4917
    %v5742 = vsel %vm5450, %v5710, %v4919
    %v5744 = vsel %vm5483, %v5712, %v5001
    %v5746 = vsel %vm5483, %v5714, %v5003
    %v5748 = vsel %vm5483, %v5716, %v5005
    %v5750 = vsel %vm5483, %v5718, %v5007
    %v5752 = vsel %vm5483, %v5720, %v5009
    %v5754 = vsel %vm5483, %v5722, %v5011
    %v5756 = vsel %vm5483, %v5724, %v5013
    %v5758 = vsel %vm5483, %v5726, %v5015
    %v5760 = vsel %vm5483, %v5728, %v5017
    %v5762 = vsel %vm5483, %v5730, %v5019
    %v5764 = vsel %vm5483, %v5732, %v5021
    %v5766 = vsel %vm5483, %v5734, %v5023
    %v5768 = vsel %vm5483, %v5736, %v5025
    %v5770 = vsel %vm5483, %v5738, %v5027
    %v5772 = vsel %vm5483, %v5740, %v5029
    %v5774 = vsel %vm5483, %v5742, %v5031
    %v5776 = vsel %vm5516, %v5744, %v5113
    %v5778 = vsel %vm5516, %v5746, %v5115
    %v5780 = vsel %vm5516, %v5748, %v5117
    %v5782 = vsel %vm5516, %v5750, %v5119
    %v5784 = vsel %vm5516, %v5752, %v5121
    %v5786 = vsel %vm5516, %v5754, %v5123
    %v5788 = vsel %vm5516, %v5756, %v5125
    %v5790 = vsel %vm5516, %v5758, %v5127
    %v5792 = vsel %vm5516, %v5760, %v5129
    %v5794 = vsel %vm5516, %v5762, %v5131
    %v5796 = vsel %vm5516, %v5764, %v5133
    %v5798 = vsel %vm5516, %v5766, %v5135
    %v5800 = vsel %vm5516, %v5768, %v5137
    %v5802 = vsel %vm5516, %v5770, %v5139
    %v5804 = vsel %vm5516, %v5772, %v5141
    %v5806 = vsel %vm5516, %v5774, %v5143
    %v5808 = vsel %vm5549, %v5776, %v5225
    %v5810 = vsel %vm5549, %v5778, %v5227
    %v5812 = vsel %vm5549, %v5780, %v5229
    %v5814 = vsel %vm5549, %v5782, %v5231
    %v5816 = vsel %vm5549, %v5784, %v5233
    %v5818 = vsel %vm5549, %v5786, %v5235
    %v5820 = vsel %vm5549, %v5788, %v5237
    %v5822 = vsel %vm5549, %v5790, %v5239
    %v5824 = vsel %vm5549, %v5792, %v5241
    %v5826 = vsel %vm5549, %v5794, %v5243
    %v5828 = vsel %vm5549, %v5796, %v5245
    %v5830 = vsel %vm5549, %v5798, %v5247
    %v5832 = vsel %vm5549, %v5800, %v5249
    %v5834 = vsel %vm5549, %v5802, %v5251
    %v5836 = vsel %vm5549, %v5804, %v5253
    %v5838 = vsel %vm5549, %v5806, %v5255
    %v5840 = vsel %vm5582, %v5808, %v5337
    %v5843 = vsel %vm5582, %v5810, %v5339
    %v5846 = vsel %vm5582, %v5812, %v5341
    %v5849 = vsel %vm5582, %v5814, %v5343
    %v5852 = vsel %vm5582, %v5816, %v5345
    %v5855 = vsel %vm5582, %v5818, %v5347
    %v5858 = vsel %vm5582, %v5820, %v5349
    %v5861 = vsel %vm5582, %v5822, %v5351
    %v5864 = vsel %vm5582, %v5824, %v5353
    %v5867 = vsel %vm5582, %v5826, %v5355
    %v5870 = vsel %vm5582, %v5828, %v5357
    %v5873 = vsel %vm5582, %v5830, %v5359
    %v5876 = vsel %vm5582, %v5832, %v5361
    %v5879 = vsel %vm5582, %v5834, %v5363
    %v5882 = vsel %vm5582, %v5836, %v5365
    %v5885 = vsel %vm5582, %v5838, %v5367
    %v5889 = vunpack.c.l.b16 %v20
    %v5890 = vunpack.c.h.b16 %v20
    %v5891 = vunpack.c.l.b16 %v21
    %v5892 = vunpack.c.h.b16 %v21
    %v5893 = vpack.c.b16 %v5891, %v5889
    %v5894 = vpack.c.b16 %v5892, %v5890
    %5897 = vmatpush.bf16.msra.mxu0 %v5605
    %5898 = vmatpush.bf16.msra.mxu0 %v5602
    %5899 = vmatpush.bf16.msra.mxu0 %v5599
    %5900 = vmatpush.bf16.msra.mxu0 %v5596
    %5901 = vmatpush.bf16.msra.mxu0 %v5593
    %5902 = vmatpush.bf16.msra.mxu0 %v5590
    %5903 = vmatpush.bf16.msra.mxu0 %v5587
    %5904 = vmatpush.bf16.msra.mxu0 %v5584
    %5905 = vmatmul.bf16.gmra.mxu0 %v5893
    %v5906 = vpop.f32.mrf.mxu0
    %v5907 = vadd.f32 0.0, %v5906
    %v5908 = vpop.f32.mrf.mxu0
    %v5909 = vadd.f32 0.0, %v5908
    %5910 = vdwg.mxu0
    %5911 = vmatpush.bf16.msra.mxu0 %v5629
    %5912 = vmatpush.bf16.msra.mxu0 %v5626
    %5913 = vmatpush.bf16.msra.mxu0 %v5623
    %5914 = vmatpush.bf16.msra.mxu0 %v5620
    %5915 = vmatpush.bf16.msra.mxu0 %v5617
    %5916 = vmatpush.bf16.msra.mxu0 %v5614
    %5917 = vmatpush.bf16.msra.mxu0 %v5611
    %5918 = vmatpush.bf16.msra.mxu0 %v5608
    %5919 = vmatmul.bf16.gmra.mxu0 %v5894
    %v5920 = vpop.f32.mrf.mxu0
    %v5921 = vadd.f32 %v5907, %v5920
    %v5922 = vpop.f32.mrf.mxu0
    %v5923 = vadd.f32 %v5909, %v5922
    %5924 = vdwg.mxu0
    %5925 = vmatpush.bf16.msra.mxu0 %v5861
    %5926 = vmatpush.bf16.msra.mxu0 %v5858
    %5927 = vmatpush.bf16.msra.mxu0 %v5855
    %5928 = vmatpush.bf16.msra.mxu0 %v5852
    %5929 = vmatpush.bf16.msra.mxu0 %v5849
    %5930 = vmatpush.bf16.msra.mxu0 %v5846
    %5931 = vmatpush.bf16.msra.mxu0 %v5843
    %5932 = vmatpush.bf16.msra.mxu0 %v5840
    %5933 = vmatmul.bf16.gmra.mxu0 %v5893
    %v5934 = vpop.f32.mrf.mxu0
    %v5935 = vadd.f32 0.0, %v5934
    %v5936 = vpop.f32.mrf.mxu0
    %v5937 = vadd.f32 0.0, %v5936
    %5938 = vdwg.mxu0
    %5939 = vmatpush.bf16.msra.mxu0 %v5885
    %5940 = vmatpush.bf16.msra.mxu0 %v5882
    %5941 = vmatpush.bf16.msra.mxu0 %v5879
    %5942 = vmatpush.bf16.msra.mxu0 %v5876
    %5943 = vmatpush.bf16.msra.mxu0 %v5873
    %5944 = vmatpush.bf16.msra.mxu0 %v5870
    %5945 = vmatpush.bf16.msra.mxu0 %v5867
    %5946 = vmatpush.bf16.msra.mxu0 %v5864
    %5947 = vmatmul.bf16.gmra.mxu0 %v5894
    %v5948 = vpop.f32.mrf.mxu0
    %v5949 = vadd.f32 %v5935, %v5948
    %v5950 = vpop.f32.mrf.mxu0
    %v5951 = vadd.f32 %v5937, %v5950
    %5952 = vdwg.mxu0
    %v5953 = vld [vmem:[#allocation2] sm:$0xff]
    %v5954 = vld [vmem:[#allocation2 + $0x8] sm:$0xff]
    %v5955 = vld [vmem:[#allocation2 + $0x10] sm:$0xff]
    %v5956 = vld [vmem:[#allocation2 + $0x18] sm:$0xff]
    %v5957 = vadd.f32 %v5953, %v5921
    %v5958 = vadd.f32 %v5954, %v5949
    %v5959 = vadd.f32 %v5955, %v5923
    %v5960 = vadd.f32 %v5956, %v5951
    %5961 = vst [vmem:[#allocation2] sm:$0xff] %v5957
    %5962 = vst [vmem:[#allocation2 + $0x8] sm:$0xff] %v5958
    %5963 = vst [vmem:[#allocation2 + $0x10] sm:$0xff] %v5959
    %5964 = vst [vmem:[#allocation2 + $0x18] sm:$0xff] %v5960
    // Predicated region
    $region14: #{tpu_custom_call.1} parent=1 // pred_check
      _
    $region15: #{tpu_custom_call.1} parent=1 // pred_check_branch
      %5966 = sbr.rel (0) target = $region17
    $region16: #{tpu_custom_call.1} parent=1 // pred_region
      %5968 = vsyncadd [#allocation3], 0
      %s5969 = sshll.u32 [#allocation2], 4
      %s5970 = int_to_ptr.vmem [resolvable:$true] %s5969
      %s5971 = sshll.u32 %s2, 4
      %s5972 = int_to_ptr.hbm [resolvable:$true] %s5971
      %5977 = dma.vmem_to_hbm [thread:$0]  %s5970, 512, %s5972, [#allocation3], 256, 256, 16
    $region17: #{tpu_custom_call.1} parent=1 // pred_fallthru
      _
    // Predicated region
    $region18: #{tpu_custom_call.1} parent=1 // pred_check
      _
    $region19: #{tpu_custom_call.1} parent=1 // pred_check_branch
      %5979 = sbr.rel (0) target = $region21
    $region20: #{tpu_custom_call.1} parent=1 // pred_region
      %5981 = dma.done [#allocation3], 512
    $region21: #{tpu_custom_call.1} parent=1 // pred_fallthru
      _
    %5982 = vsyncpa [#allocation3], 1

</llo_original>
